<compile_context>
chip_gen: v6e
topology: v6e:2x2x1
jax: 0.10.0
libtpu: 0.0.40
codegen_flags: <defaults>
</compile_context>

<pallas_src>
import jax
import jax.numpy as jnp
from jax.experimental import pallas as pl
from jax.experimental.pallas import tpu as pltpu

# ---- synthetic "hps" (small) -------------------------------------------------
NUM_MELS = 8
N_FRAMES_PER_STEP = 1
PRENET_DIM = 16
ENC_EMB_DIM = 32
ATT_RNN_DIM = 32
ATT_DIM = 16
ATT_LOC_FILTERS = 4
ATT_LOC_KSIZE = 5
DEC_RNN_DIM = 32

FRAME_DIM = NUM_MELS * N_FRAMES_PER_STEP  # prenet input / mel-frame dim

B = 2        # batch
T_ENC = 8    # encoder steps (MAX_TIME)
T_DEC = 4    # decoder steps (teacher forcing)

OUT_FEAT = FRAME_DIM + 1 + T_ENC          # packed output row: mel | gate | align


# =============================== Pallas kernel ================================

def _decoder_kernel(frames_ref, mem_ref, maskadd_ref, pm_ref,
                    wpre1_ref, wpre2_ref,
                    wa_ref, ba_ref, wqt_ref, c_ref, vblk_ref,
                    wd_ref, bd_ref, wp_ref, bp_ref,
                    out_ref):
    f32 = jnp.float32

    # ---- Prenet for ALL decoder steps at once: Linear->ReLU->Linear->ReLU ----
    # TODO(synk): Tacotron2's Prenet applies dropout(0.5) even at inference;
    # omitted here for deterministic eval-mode semantics.
    h1 = jnp.maximum(
        jnp.dot(frames_ref[...], wpre1_ref[...], preferred_element_type=f32), 0.0)
    pre_all = jnp.maximum(
        jnp.dot(h1, wpre2_ref[...], preferred_element_type=f32), 0.0)   # (T_DEC*B, P)

    # ---- hoisted loads + static (sublane-aligned) weight splits ---------------
    mem = mem_ref[...]            # (B, T_ENC, E)
    pm = pm_ref[...]              # (B, T_ENC*ATT_DIM)   processed_memory (lane dense)
    maskadd = maskadd_ref[...]    # (B, T_ENC)           0 valid / -1e30 padded

    wa = wa_ref[...]              # (PRENET+E+ATT_RNN, 4*ATT_RNN)
    wax = wa[:PRENET_DIM]
    wac = wa[PRENET_DIM:PRENET_DIM + ENC_EMB_DIM]
    wah = wa[PRENET_DIM + ENC_EMB_DIM:]
    ba = ba_ref[...]              # (1, 4*ATT_RNN)  = b_ih + b_hh

    wqt = wqt_ref[...]            # (ATT_RNN, T_ENC*ATT_DIM)  pre-tiled query weight
    cmat = c_ref[...]             # (2*T_ENC, T_ENC*ATT_DIM)  folded location conv+dense
    c0, c1 = cmat[:T_ENC], cmat[T_ENC:]
    vblk = vblk_ref[...]          # (T_ENC*ATT_DIM, T_ENC)    block-diagonal "v"

    wd = wd_ref[...]              # (ATT_RNN+E+DEC_RNN, 4*DEC_RNN)
    wdh = wd[:ATT_RNN_DIM]
    wdc = wd[ATT_RNN_DIM:ATT_RNN_DIM + ENC_EMB_DIM]
    wdhh = wd[ATT_RNN_DIM + ENC_EMB_DIM:]
    bd = bd_ref[...]              # (1, 4*DEC_RNN)

    wp = wp_ref[...]              # (DEC_RNN+E, FRAME_DIM+1)  fused mel-proj | gate
    wph, wpc = wp[:DEC_RNN_DIM], wp[DEC_RNN_DIM:]
    bp = bp_ref[...]              # (1, FRAME_DIM+1)

    # Prenet contribution to the attention-LSTM gates is known for every step:
    # hoist it into one batched matmul (merged bias folded in as well).
    xg_all = jnp.dot(pre_all, wax, preferred_element_type=f32) + ba   # (T_DEC*B, 4H)

    # ---- initialize_decoder_states (register-carried state) -------------------
    h_att = jnp.zeros((B, ATT_RNN_DIM), f32)
    c_att = jnp.zeros((B, ATT_RNN_DIM), f32)
    h_dec = jnp.zeros((B, DEC_RNN_DIM), f32)
    c_dec = jnp.zeros((B, DEC_RNN_DIM), f32)
    att_w = jnp.zeros((B, T_ENC), f32)
    att_wc = jnp.zeros((B, T_ENC), f32)
    ctx = jnp.zeros((B, ENC_EMB_DIM), f32)

    H, Hd = ATT_RNN_DIM, DEC_RNN_DIM
    out_rows = []
    for t in range(T_DEC):   # fully unrolled sequential recurrence
        # ---- attention LSTM cell: input = cat(prenet(x_t), attention_context) -
        gates = (xg_all[t * B:(t + 1) * B, :]
                 + jnp.dot(ctx, wac, preferred_element_type=f32)
                 + jnp.dot(h_att, wah, preferred_element_type=f32))
        i_g = jax.nn.sigmoid(gates[:, 0:H])
        f_g = jax.nn.sigmoid(gates[:, H:2 * H])
        g_g = jnp.tanh(gates[:, 2 * H:3 * H])
        o_g = jax.nn.sigmoid(gates[:, 3 * H:4 * H])
        c_att = f_g * c_att + i_g * g_g
        h_att = o_g * jnp.tanh(c_att)
        # TODO(synk): F.dropout(p_attention_dropout) is identity in eval mode.

        # ---- location-sensitive attention (all lane-dense 2-D matmuls) --------
        q_t = jnp.dot(h_att, wqt, preferred_element_type=f32)           # (B, T*A)
        ploc = (jnp.dot(att_w, c0, preferred_element_type=f32)
                + jnp.dot(att_wc, c1, preferred_element_type=f32))      # (B, T*A)
        e = jnp.tanh(q_t + pm + ploc)                                   # (B, T*A)
        energies = jnp.dot(e, vblk, preferred_element_type=f32) + maskadd  # (B, T)
        m = jnp.max(energies, axis=-1, keepdims=True)
        p = jnp.exp(energies - m)
        aw = p * pl.reciprocal(jnp.sum(p, axis=-1, keepdims=True), approx=True)
        ctx = jnp.sum(aw[:, :, None] * mem, axis=1)                     # (B, E)
        att_wc = att_wc + aw                  # cum uses OLD value above, then +=
        att_w = aw

        # ---- decoder LSTM cell: input = cat(attention_hidden, attention_ctx) --
        gd = (jnp.dot(h_att, wdh, preferred_element_type=f32)
              + jnp.dot(ctx, wdc, preferred_element_type=f32)
              + jnp.dot(h_dec, wdhh, preferred_element_type=f32)
              + bd)
        i_d = jax.nn.sigmoid(gd[:, 0:Hd])
        f_d = jax.nn.sigmoid(gd[:, Hd:2 * Hd])
        g_d = jnp.tanh(gd[:, 2 * Hd:3 * Hd])
        o_d = jax.nn.sigmoid(gd[:, 3 * Hd:4 * Hd])
        c_dec = f_d * c_dec + i_d * g_d
        h_dec = o_d * jnp.tanh(c_dec)
        # TODO(synk): F.dropout(p_decoder_dropout) is identity in eval mode.

        # ---- fused mel projection + gate layer --------------------------------
        melgate = (jnp.dot(h_dec, wph, preferred_element_type=f32)
                   + jnp.dot(ctx, wpc, preferred_element_type=f32)
                   + bp)                                                # (B, FRAME+1)

        # packed output row for this step: [mel | gate | alignment]
        out_rows.append(jnp.concatenate([melgate, aw], axis=-1))        # (B, OUT_FEAT)

    # single full-ref write-back of all T_DEC steps
    out_ref[...] = jnp.concatenate(out_rows, axis=0)                    # (T_DEC*B, OUT_FEAT)


# ================================ JAX glue ====================================

def _build_location_matrices(w_conv, w_dense):
    """Fold Conv1d(2->F, K, pad=(K-1)//2, bias=False) followed by
    Linear(F->A, bias=False) into banded matrices, returned stacked as
    (2*T_ENC, T_ENC*ATT_DIM): rows 0..T-1 act on attention_weights,
    rows T..2T-1 act on attention_weights_cum."""
    K = ATT_LOC_KSIZE
    pad = (K - 1) // 2
    s = jnp.arange(T_ENC)[:, None]
    t = jnp.arange(T_ENC)[None, :]
    k = s - t + pad
    valid = (k >= 0) & (k < K)
    k_clip = jnp.clip(k, 0, K - 1)
    wt = jnp.transpose(w_conv, (1, 2, 0))                  # (2, K, F)
    band = wt[:, k_clip, :]                                # (2, T, T, F)
    band = jnp.where(valid[None, :, :, None], band, 0.0)
    C = jnp.einsum("cstf,af->csta", band, w_dense)         # (2, T, T, A)
    return C.reshape(2 * T_ENC, T_ENC * ATT_DIM)


def init_params(key):
    ks = iter(jax.random.split(key, 24))

    def nrm(shape, scale=0.1):
        return scale * jax.random.normal(next(ks), shape, dtype=jnp.float32)

    p = {}
    p["w_pre1"] = nrm((PRENET_DIM, FRAME_DIM))
    p["w_pre2"] = nrm((PRENET_DIM, PRENET_DIM))
    p["w_ih_a"] = nrm((4 * ATT_RNN_DIM, PRENET_DIM + ENC_EMB_DIM))
    p["w_hh_a"] = nrm((4 * ATT_RNN_DIM, ATT_RNN_DIM))
    p["b_ih_a"] = nrm((4 * ATT_RNN_DIM,), 0.01)
    p["b_hh_a"] = nrm((4 * ATT_RNN_DIM,), 0.01)
    p["w_query"] = nrm((ATT_DIM, ATT_RNN_DIM))
    p["w_memory"] = nrm((ATT_DIM, ENC_EMB_DIM))
    p["v"] = nrm((1, ATT_DIM))
    p["w_loc_conv"] = nrm((ATT_LOC_FILTERS, 2, ATT_LOC_KSIZE))
    p["w_loc_dense"] = nrm((ATT_DIM, ATT_LOC_FILTERS))
    p["w_ih_d"] = nrm((4 * DEC_RNN_DIM, ATT_RNN_DIM + ENC_EMB_DIM))
    p["w_hh_d"] = nrm((4 * DEC_RNN_DIM, DEC_RNN_DIM))
    p["b_ih_d"] = nrm((4 * DEC_RNN_DIM,), 0.01)
    p["b_hh_d"] = nrm((4 * DEC_RNN_DIM,), 0.01)
    p["w_proj"] = nrm((FRAME_DIM, DEC_RNN_DIM + ENC_EMB_DIM))
    p["b_proj"] = nrm((FRAME_DIM,), 0.01)
    p["w_gate"] = nrm((1, DEC_RNN_DIM + ENC_EMB_DIM))
    p["b_gate"] = nrm((1,), 0.01)
    return p


def decoder_forward(memory, decoder_inputs, memory_lengths, p):
    # ---- parse_decoder_inputs + go frame (glue) -------------------------------
    di = jnp.transpose(decoder_inputs, (0, 2, 1)).reshape(B, T_DEC, FRAME_DIM)
    di = jnp.transpose(di, (1, 0, 2))                      # (T_DEC, B, FRAME_DIM)
    go = jnp.zeros((1, B, FRAME_DIM), jnp.float32)
    # only frames 0..T_DEC-1 (go + first T_DEC-1 teacher frames) are consumed
    frames = jnp.concatenate([go, di[:T_DEC - 1]], axis=0).reshape(
        T_DEC * B, FRAME_DIM)

    # ---- attention mask (additive) + precomputed processed_memory ------------
    # note: memory_lengths must be > 0 (zero-length rows would yield a
    # meaningless uniform softmax instead of NaN).
    valid = jnp.arange(T_ENC)[None, :] < memory_lengths[:, None]
    maskadd = jnp.where(valid, 0.0, -1e30).astype(jnp.float32)          # (B, T_ENC)
    pm = jnp.einsum("bte,ae->bta", memory, p["w_memory"])               # memory_layer
    pm_flat = pm.reshape(B, T_ENC * ATT_DIM)                            # (B, 128)

    # ---- fold / fuse weights (glue) -------------------------------------------
    c_cat = _build_location_matrices(p["w_loc_conv"], p["w_loc_dense"])  # (16, 128)
    vblk = jnp.einsum("st,a->sat", jnp.eye(T_ENC, dtype=jnp.float32),
                      p["v"][0]).reshape(T_ENC * ATT_DIM, T_ENC)         # (128, 8)
    wq_tiled = jnp.tile(p["w_query"].T, (1, T_ENC))                      # (32, 128)

    wa_cat = jnp.concatenate([p["w_ih_a"][:, :PRENET_DIM].T,
                              p["w_ih_a"][:, PRENET_DIM:].T,
                              p["w_hh_a"].T], axis=0)                    # (80, 128)
    ba = (p["b_ih_a"] + p["b_hh_a"])[None, :]
    wd_cat = jnp.concatenate([p["w_ih_d"][:, :ATT_RNN_DIM].T,
                              p["w_ih_d"][:, ATT_RNN_DIM:].T,
                              p["w_hh_d"].T], axis=0)                    # (96, 128)
    bd = (p["b_ih_d"] + p["b_hh_d"])[None, :]
    wp_cat = jnp.concatenate([p["w_proj"].T, p["w_gate"].T], axis=1)     # (64, 9)
    bp_cat = jnp.concatenate([p["b_proj"], p["b_gate"]])[None, :]        # (1, 9)

    vmem = pl.BlockSpec(memory_space=pltpu.MemorySpace.VMEM)
    out = pl.pallas_call(
        _decoder_kernel,
        out_shape=jax.ShapeDtypeStruct((T_DEC * B, OUT_FEAT), jnp.float32),
        in_specs=[vmem] * 15,
        out_specs=vmem,
    )(frames, memory, maskadd, pm_flat,
      p["w_pre1"].T, p["w_pre2"].T,
      wa_cat, ba, wq_tiled, c_cat, vblk, wd_cat, bd, wp_cat, bp_cat)

    # ---- parse_decoder_outputs (glue) -----------------------------------------
    out = out.reshape(T_DEC, B, OUT_FEAT)
    mel_k = out[:, :, :FRAME_DIM]                          # (T_DEC, B, FRAME_DIM)
    gate_k = out[:, :, FRAME_DIM]                          # (T_DEC, B)
    align_k = out[:, :, FRAME_DIM + 1:]                    # (T_DEC, B, T_ENC)

    mel_outputs = jnp.transpose(mel_k, (1, 0, 2)).reshape(
        B, T_DEC * N_FRAMES_PER_STEP, NUM_MELS)
    mel_outputs = jnp.transpose(mel_outputs, (0, 2, 1))    # (B, num_mels, T_out)
    gate_outputs = jnp.transpose(gate_k, (1, 0))           # (B, T_dec)
    alignments = jnp.transpose(align_k, (1, 0, 2))         # (B, T_dec, T_enc)
    return mel_outputs, gate_outputs, alignments


if __name__ == "__main__":
    key = jax.random.PRNGKey(0)
    k_mem, k_dec, k_par = jax.random.split(key, 3)
    memory = jax.random.normal(k_mem, (B, T_ENC, ENC_EMB_DIM), dtype=jnp.float32)
    decoder_inputs = jax.random.normal(
        k_dec, (B, NUM_MELS, T_DEC * N_FRAMES_PER_STEP), dtype=jnp.float32)
    memory_lengths = jnp.array([T_ENC, T_ENC - 3], dtype=jnp.int32)
    params = init_params(k_par)

    fwd = jax.jit(decoder_forward)
    mel_outputs, gate_outputs, alignments = fwd(
        memory, decoder_inputs, memory_lengths, params)
    jax.block_until_ready((mel_outputs, gate_outputs, alignments))

    assert mel_outputs.shape == (B, NUM_MELS, T_DEC * N_FRAMES_PER_STEP)
    assert gate_outputs.shape == (B, T_DEC)
    assert alignments.shape == (B, T_DEC, T_ENC)
    assert bool(jnp.all(jnp.isfinite(mel_outputs)))
    assert bool(jnp.all(jnp.isfinite(gate_outputs)))
    # alignment rows are softmax distributions over valid encoder positions
    # (tolerance relaxed for the approx-reciprocal softmax normalization)
    assert bool(jnp.allclose(jnp.sum(alignments, axis=-1), 1.0, atol=5e-3))
    print("KERNEL_OK")
</pallas_src>

<mosaic_0001>
module attributes {stable_mosaic.version = 11 : i64} {
  func.func @_decoder_kernel(%arg0: memref<8x8xf32, #tpu.memory_space<vmem>>, %arg1: memref<2x8x32xf32, #tpu.memory_space<vmem>>, %arg2: memref<2x8xf32, #tpu.memory_space<vmem>>, %arg3: memref<2x128xf32, #tpu.memory_space<vmem>>, %arg4: memref<8x16xf32, #tpu.memory_space<vmem>>, %arg5: memref<16x16xf32, #tpu.memory_space<vmem>>, %arg6: memref<80x128xf32, #tpu.memory_space<vmem>>, %arg7: memref<1x128xf32, #tpu.memory_space<vmem>>, %arg8: memref<32x128xf32, #tpu.memory_space<vmem>>, %arg9: memref<16x128xf32, #tpu.memory_space<vmem>>, %arg10: memref<128x8xf32, #tpu.memory_space<vmem>>, %arg11: memref<96x128xf32, #tpu.memory_space<vmem>>, %arg12: memref<1x128xf32, #tpu.memory_space<vmem>>, %arg13: memref<64x9xf32, #tpu.memory_space<vmem>>, %arg14: memref<1x9xf32, #tpu.memory_space<vmem>>, %arg15: memref<8x17xf32, #tpu.memory_space<vmem>>) attributes {dimension_semantics = [], scalar_prefetch = 0 : i64, scratch_operands = 0 : i64, tpu.core_type = #tpu.core_type<tc>} {
    %c0 = arith.constant 0 : index
    %c0_0 = arith.constant 0 : index
    %0 = vector.load %arg0[%c0, %c0_0] : memref<8x8xf32, #tpu.memory_space<vmem>>, vector<8x8xf32>
    %c0_1 = arith.constant 0 : index
    %c0_2 = arith.constant 0 : index
    %1 = vector.load %arg4[%c0_1, %c0_2] : memref<8x16xf32, #tpu.memory_space<vmem>>, vector<8x16xf32>
    %cst = arith.constant dense<0.000000e+00> : vector<8x16xf32>
    %2 = tpu.matmul %0, %1, %cst {dimension_numbers = #tpu.dot_dimension_numbers<[1], [0], [0], [1], [0, 0, 1, 1], [], []>} : vector<8x8xf32>, vector<8x16xf32>, vector<8x16xf32> -> vector<8x16xf32>
    %cst_3 = arith.constant 0.000000e+00 : f32
    %3 = vector.broadcast %cst_3 : f32 to vector<8x16xf32>
    %4 = arith.maximumf %2, %3 : vector<8x16xf32>
    %c0_4 = arith.constant 0 : index
    %c0_5 = arith.constant 0 : index
    %5 = vector.load %arg5[%c0_4, %c0_5] : memref<16x16xf32, #tpu.memory_space<vmem>>, vector<16x16xf32>
    %cst_6 = arith.constant dense<0.000000e+00> : vector<8x16xf32>
    %6 = tpu.matmul %4, %5, %cst_6 {dimension_numbers = #tpu.dot_dimension_numbers<[1], [0], [0], [1], [0, 0, 1, 1], [], []>} : vector<8x16xf32>, vector<16x16xf32>, vector<8x16xf32> -> vector<8x16xf32>
    %cst_7 = arith.constant 0.000000e+00 : f32
    %7 = vector.broadcast %cst_7 : f32 to vector<8x16xf32>
    %8 = arith.maximumf %6, %7 : vector<8x16xf32>
    %c0_8 = arith.constant 0 : index
    %c0_9 = arith.constant 0 : index
    %c0_10 = arith.constant 0 : index
    %9 = vector.load %arg1[%c0_8, %c0_9, %c0_10] : memref<2x8x32xf32, #tpu.memory_space<vmem>>, vector<2x8x32xf32>
    %c0_11 = arith.constant 0 : index
    %c0_12 = arith.constant 0 : index
    %10 = vector.load %arg3[%c0_11, %c0_12] : memref<2x128xf32, #tpu.memory_space<vmem>>, vector<2x128xf32>
    %c0_13 = arith.constant 0 : index
    %c0_14 = arith.constant 0 : index
    %11 = vector.load %arg2[%c0_13, %c0_14] : memref<2x8xf32, #tpu.memory_space<vmem>>, vector<2x8xf32>
    %c0_15 = arith.constant 0 : index
    %c0_16 = arith.constant 0 : index
    %12 = vector.load %arg6[%c0_15, %c0_16] : memref<80x128xf32, #tpu.memory_space<vmem>>, vector<80x128xf32>
    %13 = vector.extract_strided_slice %12 {offsets = [0, 0], sizes = [16, 128], strides = [1, 1]} : vector<80x128xf32> to vector<16x128xf32>
    %14 = vector.extract_strided_slice %12 {offsets = [16, 0], sizes = [32, 128], strides = [1, 1]} : vector<80x128xf32> to vector<32x128xf32>
    %15 = vector.extract_strided_slice %12 {offsets = [48, 0], sizes = [32, 128], strides = [1, 1]} : vector<80x128xf32> to vector<32x128xf32>
    %c0_17 = arith.constant 0 : index
    %c0_18 = arith.constant 0 : index
    %16 = vector.load %arg7[%c0_17, %c0_18] : memref<1x128xf32, #tpu.memory_space<vmem>>, vector<1x128xf32>
    %c0_19 = arith.constant 0 : index
    %c0_20 = arith.constant 0 : index
    %17 = vector.load %arg8[%c0_19, %c0_20] : memref<32x128xf32, #tpu.memory_space<vmem>>, vector<32x128xf32>
    %c0_21 = arith.constant 0 : index
    %c0_22 = arith.constant 0 : index
    %18 = vector.load %arg9[%c0_21, %c0_22] : memref<16x128xf32, #tpu.memory_space<vmem>>, vector<16x128xf32>
    %19 = vector.extract_strided_slice %18 {offsets = [0, 0], sizes = [8, 128], strides = [1, 1]} : vector<16x128xf32> to vector<8x128xf32>
    %20 = vector.extract_strided_slice %18 {offsets = [8, 0], sizes = [8, 128], strides = [1, 1]} : vector<16x128xf32> to vector<8x128xf32>
    %c0_23 = arith.constant 0 : index
    %c0_24 = arith.constant 0 : index
    %21 = vector.load %arg10[%c0_23, %c0_24] : memref<128x8xf32, #tpu.memory_space<vmem>>, vector<128x8xf32>
    %c0_25 = arith.constant 0 : index
    %c0_26 = arith.constant 0 : index
    %22 = vector.load %arg11[%c0_25, %c0_26] : memref<96x128xf32, #tpu.memory_space<vmem>>, vector<96x128xf32>
    %23 = vector.extract_strided_slice %22 {offsets = [0, 0], sizes = [32, 128], strides = [1, 1]} : vector<96x128xf32> to vector<32x128xf32>
    %24 = vector.extract_strided_slice %22 {offsets = [32, 0], sizes = [32, 128], strides = [1, 1]} : vector<96x128xf32> to vector<32x128xf32>
    %25 = vector.extract_strided_slice %22 {offsets = [64, 0], sizes = [32, 128], strides = [1, 1]} : vector<96x128xf32> to vector<32x128xf32>
    %c0_27 = arith.constant 0 : index
    %c0_28 = arith.constant 0 : index
    %26 = vector.load %arg12[%c0_27, %c0_28] : memref<1x128xf32, #tpu.memory_space<vmem>>, vector<1x128xf32>
    %c0_29 = arith.constant 0 : index
    %c0_30 = arith.constant 0 : index
    %27 = vector.load %arg13[%c0_29, %c0_30] : memref<64x9xf32, #tpu.memory_space<vmem>>, vector<64x9xf32>
    %28 = vector.extract_strided_slice %27 {offsets = [0, 0], sizes = [32, 9], strides = [1, 1]} : vector<64x9xf32> to vector<32x9xf32>
    %29 = vector.extract_strided_slice %27 {offsets = [32, 0], sizes = [32, 9], strides = [1, 1]} : vector<64x9xf32> to vector<32x9xf32>
    %c0_31 = arith.constant 0 : index
    %c0_32 = arith.constant 0 : index
    %30 = vector.load %arg14[%c0_31, %c0_32] : memref<1x9xf32, #tpu.memory_space<vmem>>, vector<1x9xf32>
    %cst_33 = arith.constant dense<0.000000e+00> : vector<8x128xf32>
    %31 = tpu.matmul %8, %13, %cst_33 {dimension_numbers = #tpu.dot_dimension_numbers<[1], [0], [0], [1], [0, 0, 1, 1], [], []>} : vector<8x16xf32>, vector<16x128xf32>, vector<8x128xf32> -> vector<8x128xf32>
    %32 = vector.broadcast %16 : vector<1x128xf32> to vector<8x128xf32>
    %33 = arith.addf %31, %32 : vector<8x128xf32>
    %cst_34 = arith.constant 0.000000e+00 : f32
    %34 = vector.broadcast %cst_34 : f32 to vector<2x32xf32>
    %cst_35 = arith.constant 0.000000e+00 : f32
    %35 = vector.broadcast %cst_35 : f32 to vector<2x32xf32>
    %cst_36 = arith.constant 0.000000e+00 : f32
    %36 = vector.broadcast %cst_36 : f32 to vector<2x32xf32>
    %cst_37 = arith.constant 0.000000e+00 : f32
    %37 = vector.broadcast %cst_37 : f32 to vector<2x32xf32>
    %cst_38 = arith.constant 0.000000e+00 : f32
    %38 = vector.broadcast %cst_38 : f32 to vector<2x8xf32>
    %cst_39 = arith.constant 0.000000e+00 : f32
    %39 = vector.broadcast %cst_39 : f32 to vector<2x8xf32>
    %cst_40 = arith.constant 0.000000e+00 : f32
    %40 = vector.broadcast %cst_40 : f32 to vector<2x32xf32>
    %41 = vector.extract_strided_slice %33 {offsets = [0, 0], sizes = [2, 128], strides = [1, 1]} : vector<8x128xf32> to vector<2x128xf32>
    %cst_41 = arith.constant dense<0.000000e+00> : vector<2x128xf32>
    %42 = tpu.matmul %40, %14, %cst_41 {dimension_numbers = #tpu.dot_dimension_numbers<[1], [0], [0], [1], [0, 0, 1, 1], [], []>} : vector<2x32xf32>, vector<32x128xf32>, vector<2x128xf32> -> vector<2x128xf32>
    %43 = arith.addf %41, %42 : vector<2x128xf32>
    %cst_42 = arith.constant dense<0.000000e+00> : vector<2x128xf32>
    %44 = tpu.matmul %34, %15, %cst_42 {dimension_numbers = #tpu.dot_dimension_numbers<[1], [0], [0], [1], [0, 0, 1, 1], [], []>} : vector<2x32xf32>, vector<32x128xf32>, vector<2x128xf32> -> vector<2x128xf32>
    %45 = arith.addf %43, %44 : vector<2x128xf32>
    %46 = vector.extract_strided_slice %45 {offsets = [0, 0], sizes = [2, 32], strides = [1, 1]} : vector<2x128xf32> to vector<2x32xf32>
    %47 = arith.negf %46 : vector<2x32xf32>
    %48 = math.exp %47 : vector<2x32xf32>
    %cst_43 = arith.constant 1.000000e+00 : f32
    %49 = vector.broadcast %cst_43 : f32 to vector<2x32xf32>
    %50 = arith.addf %49, %48 : vector<2x32xf32>
    %51 = arith.divf %49, %50 : vector<2x32xf32>
    %52 = vector.extract_strided_slice %45 {offsets = [0, 32], sizes = [2, 32], strides = [1, 1]} : vector<2x128xf32> to vector<2x32xf32>
    %53 = arith.negf %52 : vector<2x32xf32>
    %54 = math.exp %53 : vector<2x32xf32>
    %cst_44 = arith.constant 1.000000e+00 : f32
    %55 = vector.broadcast %cst_44 : f32 to vector<2x32xf32>
    %56 = arith.addf %55, %54 : vector<2x32xf32>
    %57 = arith.divf %55, %56 : vector<2x32xf32>
    %58 = vector.extract_strided_slice %45 {offsets = [0, 64], sizes = [2, 32], strides = [1, 1]} : vector<2x128xf32> to vector<2x32xf32>
    %59 = math.tanh %58 : vector<2x32xf32>
    %60 = vector.extract_strided_slice %45 {offsets = [0, 96], sizes = [2, 32], strides = [1, 1]} : vector<2x128xf32> to vector<2x32xf32>
    %61 = arith.negf %60 : vector<2x32xf32>
    %62 = math.exp %61 : vector<2x32xf32>
    %cst_45 = arith.constant 1.000000e+00 : f32
    %63 = vector.broadcast %cst_45 : f32 to vector<2x32xf32>
    %64 = arith.addf %63, %62 : vector<2x32xf32>
    %65 = arith.divf %63, %64 : vector<2x32xf32>
    %66 = arith.mulf %57, %35 : vector<2x32xf32>
    %67 = arith.mulf %51, %59 : vector<2x32xf32>
    %68 = arith.addf %66, %67 : vector<2x32xf32>
    %69 = math.tanh %68 : vector<2x32xf32>
    %70 = arith.mulf %65, %69 : vector<2x32xf32>
    %cst_46 = arith.constant dense<0.000000e+00> : vector<2x128xf32>
    %71 = tpu.matmul %70, %17, %cst_46 {dimension_numbers = #tpu.dot_dimension_numbers<[1], [0], [0], [1], [0, 0, 1, 1], [], []>} : vector<2x32xf32>, vector<32x128xf32>, vector<2x128xf32> -> vector<2x128xf32>
    %cst_47 = arith.constant dense<0.000000e+00> : vector<2x128xf32>
    %72 = tpu.matmul %38, %19, %cst_47 {dimension_numbers = #tpu.dot_dimension_numbers<[1], [0], [0], [1], [0, 0, 1, 1], [], []>} : vector<2x8xf32>, vector<8x128xf32>, vector<2x128xf32> -> vector<2x128xf32>
    %cst_48 = arith.constant dense<0.000000e+00> : vector<2x128xf32>
    %73 = tpu.matmul %39, %20, %cst_48 {dimension_numbers = #tpu.dot_dimension_numbers<[1], [0], [0], [1], [0, 0, 1, 1], [], []>} : vector<2x8xf32>, vector<8x128xf32>, vector<2x128xf32> -> vector<2x128xf32>
    %74 = arith.addf %72, %73 : vector<2x128xf32>
    %75 = arith.addf %71, %10 : vector<2x128xf32>
    %76 = arith.addf %75, %74 : vector<2x128xf32>
    %77 = math.tanh %76 : vector<2x128xf32>
    %cst_49 = arith.constant dense<0.000000e+00> : vector<2x8xf32>
    %78 = tpu.matmul %77, %21, %cst_49 {dimension_numbers = #tpu.dot_dimension_numbers<[1], [0], [0], [1], [0, 0, 1, 1], [], []>} : vector<2x128xf32>, vector<128x8xf32>, vector<2x8xf32> -> vector<2x8xf32>
    %79 = arith.addf %78, %11 : vector<2x8xf32>
    %cst_50 = arith.constant dense<0xFF800000> : vector<2xf32>
    %80 = vector.multi_reduction <maximumf>, %79, %cst_50 [1] : vector<2x8xf32> to vector<2xf32>
    %81 = vector.shape_cast %80 : vector<2xf32> to vector<2x1xf32>
    %82 = vector.broadcast %81 : vector<2x1xf32> to vector<2x8xf32>
    %83 = arith.subf %79, %82 : vector<2x8xf32>
    %84 = math.exp %83 : vector<2x8xf32>
    %cst_51 = arith.constant dense<0.000000e+00> : vector<2xf32>
    %85 = vector.multi_reduction <add>, %84, %cst_51 [1] : vector<2x8xf32> to vector<2xf32>
    %86 = vector.shape_cast %85 : vector<2xf32> to vector<2x1xf32>
    %87 = tpu.reciprocal %86 {approx = true} : vector<2x1xf32> -> vector<2x1xf32>
    %88 = vector.broadcast %87 : vector<2x1xf32> to vector<2x8xf32>
    %89 = arith.mulf %84, %88 : vector<2x8xf32>
    %90 = vector.shape_cast %89 : vector<2x8xf32> to vector<2x8x1xf32>
    %91 = vector.broadcast %90 : vector<2x8x1xf32> to vector<2x8x32xf32>
    %92 = arith.mulf %91, %9 : vector<2x8x32xf32>
    %cst_52 = arith.constant dense<0.000000e+00> : vector<2x32xf32>
    %93 = vector.multi_reduction <add>, %92, %cst_52 [1] : vector<2x8x32xf32> to vector<2x32xf32>
    %94 = arith.addf %39, %89 : vector<2x8xf32>
    %cst_53 = arith.constant dense<0.000000e+00> : vector<2x128xf32>
    %95 = tpu.matmul %70, %23, %cst_53 {dimension_numbers = #tpu.dot_dimension_numbers<[1], [0], [0], [1], [0, 0, 1, 1], [], []>} : vector<2x32xf32>, vector<32x128xf32>, vector<2x128xf32> -> vector<2x128xf32>
    %cst_54 = arith.constant dense<0.000000e+00> : vector<2x128xf32>
    %96 = tpu.matmul %93, %24, %cst_54 {dimension_numbers = #tpu.dot_dimension_numbers<[1], [0], [0], [1], [0, 0, 1, 1], [], []>} : vector<2x32xf32>, vector<32x128xf32>, vector<2x128xf32> -> vector<2x128xf32>
    %97 = arith.addf %95, %96 : vector<2x128xf32>
    %cst_55 = arith.constant dense<0.000000e+00> : vector<2x128xf32>
    %98 = tpu.matmul %36, %25, %cst_55 {dimension_numbers = #tpu.dot_dimension_numbers<[1], [0], [0], [1], [0, 0, 1, 1], [], []>} : vector<2x32xf32>, vector<32x128xf32>, vector<2x128xf32> -> vector<2x128xf32>
    %99 = arith.addf %97, %98 : vector<2x128xf32>
    %100 = vector.broadcast %26 : vector<1x128xf32> to vector<2x128xf32>
    %101 = arith.addf %99, %100 : vector<2x128xf32>
    %102 = vector.extract_strided_slice %101 {offsets = [0, 0], sizes = [2, 32], strides = [1, 1]} : vector<2x128xf32> to vector<2x32xf32>
    %103 = arith.negf %102 : vector<2x32xf32>
    %104 = math.exp %103 : vector<2x32xf32>
    %cst_56 = arith.constant 1.000000e+00 : f32
    %105 = vector.broadcast %cst_56 : f32 to vector<2x32xf32>
    %106 = arith.addf %105, %104 : vector<2x32xf32>
    %107 = arith.divf %105, %106 : vector<2x32xf32>
    %108 = vector.extract_strided_slice %101 {offsets = [0, 32], sizes = [2, 32], strides = [1, 1]} : vector<2x128xf32> to vector<2x32xf32>
    %109 = arith.negf %108 : vector<2x32xf32>
    %110 = math.exp %109 : vector<2x32xf32>
    %cst_57 = arith.constant 1.000000e+00 : f32
    %111 = vector.broadcast %cst_57 : f32 to vector<2x32xf32>
    %112 = arith.addf %111, %110 : vector<2x32xf32>
    %113 = arith.divf %111, %112 : vector<2x32xf32>
    %114 = vector.extract_strided_slice %101 {offsets = [0, 64], sizes = [2, 32], strides = [1, 1]} : vector<2x128xf32> to vector<2x32xf32>
    %115 = math.tanh %114 : vector<2x32xf32>
    %116 = vector.extract_strided_slice %101 {offsets = [0, 96], sizes = [2, 32], strides = [1, 1]} : vector<2x128xf32> to vector<2x32xf32>
    %117 = arith.negf %116 : vector<2x32xf32>
    %118 = math.exp %117 : vector<2x32xf32>
    %cst_58 = arith.constant 1.000000e+00 : f32
    %119 = vector.broadcast %cst_58 : f32 to vector<2x32xf32>
    %120 = arith.addf %119, %118 : vector<2x32xf32>
    %121 = arith.divf %119, %120 : vector<2x32xf32>
    %122 = arith.mulf %113, %37 : vector<2x32xf32>
    %123 = arith.mulf %107, %115 : vector<2x32xf32>
    %124 = arith.addf %122, %123 : vector<2x32xf32>
    %125 = math.tanh %124 : vector<2x32xf32>
    %126 = arith.mulf %121, %125 : vector<2x32xf32>
    %cst_59 = arith.constant dense<0.000000e+00> : vector<2x9xf32>
    %127 = tpu.matmul %126, %28, %cst_59 {dimension_numbers = #tpu.dot_dimension_numbers<[1], [0], [0], [1], [0, 0, 1, 1], [], []>} : vector<2x32xf32>, vector<32x9xf32>, vector<2x9xf32> -> vector<2x9xf32>
    %cst_60 = arith.constant dense<0.000000e+00> : vector<2x9xf32>
    %128 = tpu.matmul %93, %29, %cst_60 {dimension_numbers = #tpu.dot_dimension_numbers<[1], [0], [0], [1], [0, 0, 1, 1], [], []>} : vector<2x32xf32>, vector<32x9xf32>, vector<2x9xf32> -> vector<2x9xf32>
    %129 = arith.addf %127, %128 : vector<2x9xf32>
    %130 = vector.broadcast %30 : vector<1x9xf32> to vector<2x9xf32>
    %131 = arith.addf %129, %130 : vector<2x9xf32>
    %132 = tpu.concatenate %131, %89 in 1 : vector<2x9xf32>, vector<2x8xf32> -> vector<2x17xf32>
    %133 = vector.extract_strided_slice %33 {offsets = [2, 0], sizes = [2, 128], strides = [1, 1]} : vector<8x128xf32> to vector<2x128xf32>
    %cst_61 = arith.constant dense<0.000000e+00> : vector<2x128xf32>
    %134 = tpu.matmul %93, %14, %cst_61 {dimension_numbers = #tpu.dot_dimension_numbers<[1], [0], [0], [1], [0, 0, 1, 1], [], []>} : vector<2x32xf32>, vector<32x128xf32>, vector<2x128xf32> -> vector<2x128xf32>
    %135 = arith.addf %133, %134 : vector<2x128xf32>
    %cst_62 = arith.constant dense<0.000000e+00> : vector<2x128xf32>
    %136 = tpu.matmul %70, %15, %cst_62 {dimension_numbers = #tpu.dot_dimension_numbers<[1], [0], [0], [1], [0, 0, 1, 1], [], []>} : vector<2x32xf32>, vector<32x128xf32>, vector<2x128xf32> -> vector<2x128xf32>
    %137 = arith.addf %135, %136 : vector<2x128xf32>
    %138 = vector.extract_strided_slice %137 {offsets = [0, 0], sizes = [2, 32], strides = [1, 1]} : vector<2x128xf32> to vector<2x32xf32>
    %139 = arith.negf %138 : vector<2x32xf32>
    %140 = math.exp %139 : vector<2x32xf32>
    %cst_63 = arith.constant 1.000000e+00 : f32
    %141 = vector.broadcast %cst_63 : f32 to vector<2x32xf32>
    %142 = arith.addf %141, %140 : vector<2x32xf32>
    %143 = arith.divf %141, %142 : vector<2x32xf32>
    %144 = vector.extract_strided_slice %137 {offsets = [0, 32], sizes = [2, 32], strides = [1, 1]} : vector<2x128xf32> to vector<2x32xf32>
    %145 = arith.negf %144 : vector<2x32xf32>
    %146 = math.exp %145 : vector<2x32xf32>
    %cst_64 = arith.constant 1.000000e+00 : f32
    %147 = vector.broadcast %cst_64 : f32 to vector<2x32xf32>
    %148 = arith.addf %147, %146 : vector<2x32xf32>
    %149 = arith.divf %147, %148 : vector<2x32xf32>
    %150 = vector.extract_strided_slice %137 {offsets = [0, 64], sizes = [2, 32], strides = [1, 1]} : vector<2x128xf32> to vector<2x32xf32>
    %151 = math.tanh %150 : vector<2x32xf32>
    %152 = vector.extract_strided_slice %137 {offsets = [0, 96], sizes = [2, 32], strides = [1, 1]} : vector<2x128xf32> to vector<2x32xf32>
    %153 = arith.negf %152 : vector<2x32xf32>
    %154 = math.exp %153 : vector<2x32xf32>
    %cst_65 = arith.constant 1.000000e+00 : f32
    %155 = vector.broadcast %cst_65 : f32 to vector<2x32xf32>
    %156 = arith.addf %155, %154 : vector<2x32xf32>
    %157 = arith.divf %155, %156 : vector<2x32xf32>
    %158 = arith.mulf %149, %68 : vector<2x32xf32>
    %159 = arith.mulf %143, %151 : vector<2x32xf32>
    %160 = arith.addf %158, %159 : vector<2x32xf32>
    %161 = math.tanh %160 : vector<2x32xf32>
    %162 = arith.mulf %157, %161 : vector<2x32xf32>
    %cst_66 = arith.constant dense<0.000000e+00> : vector<2x128xf32>
    %163 = tpu.matmul %162, %17, %cst_66 {dimension_numbers = #tpu.dot_dimension_numbers<[1], [0], [0], [1], [0, 0, 1, 1], [], []>} : vector<2x32xf32>, vector<32x128xf32>, vector<2x128xf32> -> vector<2x128xf32>
    %cst_67 = arith.constant dense<0.000000e+00> : vector<2x128xf32>
    %164 = tpu.matmul %89, %19, %cst_67 {dimension_numbers = #tpu.dot_dimension_numbers<[1], [0], [0], [1], [0, 0, 1, 1], [], []>} : vector<2x8xf32>, vector<8x128xf32>, vector<2x128xf32> -> vector<2x128xf32>
    %cst_68 = arith.constant dense<0.000000e+00> : vector<2x128xf32>
    %165 = tpu.matmul %94, %20, %cst_68 {dimension_numbers = #tpu.dot_dimension_numbers<[1], [0], [0], [1], [0, 0, 1, 1], [], []>} : vector<2x8xf32>, vector<8x128xf32>, vector<2x128xf32> -> vector<2x128xf32>
    %166 = arith.addf %164, %165 : vector<2x128xf32>
    %167 = arith.addf %163, %10 : vector<2x128xf32>
    %168 = arith.addf %167, %166 : vector<2x128xf32>
    %169 = math.tanh %168 : vector<2x128xf32>
    %cst_69 = arith.constant dense<0.000000e+00> : vector<2x8xf32>
    %170 = tpu.matmul %169, %21, %cst_69 {dimension_numbers = #tpu.dot_dimension_numbers<[1], [0], [0], [1], [0, 0, 1, 1], [], []>} : vector<2x128xf32>, vector<128x8xf32>, vector<2x8xf32> -> vector<2x8xf32>
    %171 = arith.addf %170, %11 : vector<2x8xf32>
    %cst_70 = arith.constant dense<0xFF800000> : vector<2xf32>
    %172 = vector.multi_reduction <maximumf>, %171, %cst_70 [1] : vector<2x8xf32> to vector<2xf32>
    %173 = vector.shape_cast %172 : vector<2xf32> to vector<2x1xf32>
    %174 = vector.broadcast %173 : vector<2x1xf32> to vector<2x8xf32>
    %175 = arith.subf %171, %174 : vector<2x8xf32>
    %176 = math.exp %175 : vector<2x8xf32>
    %cst_71 = arith.constant dense<0.000000e+00> : vector<2xf32>
    %177 = vector.multi_reduction <add>, %176, %cst_71 [1] : vector<2x8xf32> to vector<2xf32>
    %178 = vector.shape_cast %177 : vector<2xf32> to vector<2x1xf32>
    %179 = tpu.reciprocal %178 {approx = true} : vector<2x1xf32> -> vector<2x1xf32>
    %180 = vector.broadcast %179 : vector<2x1xf32> to vector<2x8xf32>
    %181 = arith.mulf %176, %180 : vector<2x8xf32>
    %182 = vector.shape_cast %181 : vector<2x8xf32> to vector<2x8x1xf32>
    %183 = vector.broadcast %182 : vector<2x8x1xf32> to vector<2x8x32xf32>
    %184 = arith.mulf %183, %9 : vector<2x8x32xf32>
    %cst_72 = arith.constant dense<0.000000e+00> : vector<2x32xf32>
    %185 = vector.multi_reduction <add>, %184, %cst_72 [1] : vector<2x8x32xf32> to vector<2x32xf32>
    %186 = arith.addf %94, %181 : vector<2x8xf32>
    %cst_73 = arith.constant dense<0.000000e+00> : vector<2x128xf32>
    %187 = tpu.matmul %162, %23, %cst_73 {dimension_numbers = #tpu.dot_dimension_numbers<[1], [0], [0], [1], [0, 0, 1, 1], [], []>} : vector<2x32xf32>, vector<32x128xf32>, vector<2x128xf32> -> vector<2x128xf32>
    %cst_74 = arith.constant dense<0.000000e+00> : vector<2x128xf32>
    %188 = tpu.matmul %185, %24, %cst_74 {dimension_numbers = #tpu.dot_dimension_numbers<[1], [0], [0], [1], [0, 0, 1, 1], [], []>} : vector<2x32xf32>, vector<32x128xf32>, vector<2x128xf32> -> vector<2x128xf32>
    %189 = arith.addf %187, %188 : vector<2x128xf32>
    %cst_75 = arith.constant dense<0.000000e+00> : vector<2x128xf32>
    %190 = tpu.matmul %126, %25, %cst_75 {dimension_numbers = #tpu.dot_dimension_numbers<[1], [0], [0], [1], [0, 0, 1, 1], [], []>} : vector<2x32xf32>, vector<32x128xf32>, vector<2x128xf32> -> vector<2x128xf32>
    %191 = arith.addf %189, %190 : vector<2x128xf32>
    %192 = vector.broadcast %26 : vector<1x128xf32> to vector<2x128xf32>
    %193 = arith.addf %191, %192 : vector<2x128xf32>
    %194 = vector.extract_strided_slice %193 {offsets = [0, 0], sizes = [2, 32], strides = [1, 1]} : vector<2x128xf32> to vector<2x32xf32>
    %195 = arith.negf %194 : vector<2x32xf32>
    %196 = math.exp %195 : vector<2x32xf32>
    %cst_76 = arith.constant 1.000000e+00 : f32
    %197 = vector.broadcast %cst_76 : f32 to vector<2x32xf32>
    %198 = arith.addf %197, %196 : vector<2x32xf32>
    %199 = arith.divf %197, %198 : vector<2x32xf32>
    %200 = vector.extract_strided_slice %193 {offsets = [0, 32], sizes = [2, 32], strides = [1, 1]} : vector<2x128xf32> to vector<2x32xf32>
    %201 = arith.negf %200 : vector<2x32xf32>
    %202 = math.exp %201 : vector<2x32xf32>
    %cst_77 = arith.constant 1.000000e+00 : f32
    %203 = vector.broadcast %cst_77 : f32 to vector<2x32xf32>
    %204 = arith.addf %203, %202 : vector<2x32xf32>
    %205 = arith.divf %203, %204 : vector<2x32xf32>
    %206 = vector.extract_strided_slice %193 {offsets = [0, 64], sizes = [2, 32], strides = [1, 1]} : vector<2x128xf32> to vector<2x32xf32>
    %207 = math.tanh %206 : vector<2x32xf32>
    %208 = vector.extract_strided_slice %193 {offsets = [0, 96], sizes = [2, 32], strides = [1, 1]} : vector<2x128xf32> to vector<2x32xf32>
    %209 = arith.negf %208 : vector<2x32xf32>
    %210 = math.exp %209 : vector<2x32xf32>
    %cst_78 = arith.constant 1.000000e+00 : f32
    %211 = vector.broadcast %cst_78 : f32 to vector<2x32xf32>
    %212 = arith.addf %211, %210 : vector<2x32xf32>
    %213 = arith.divf %211, %212 : vector<2x32xf32>
    %214 = arith.mulf %205, %124 : vector<2x32xf32>
    %215 = arith.mulf %199, %207 : vector<2x32xf32>
    %216 = arith.addf %214, %215 : vector<2x32xf32>
    %217 = math.tanh %216 : vector<2x32xf32>
    %218 = arith.mulf %213, %217 : vector<2x32xf32>
    %cst_79 = arith.constant dense<0.000000e+00> : vector<2x9xf32>
    %219 = tpu.matmul %218, %28, %cst_79 {dimension_numbers = #tpu.dot_dimension_numbers<[1], [0], [0], [1], [0, 0, 1, 1], [], []>} : vector<2x32xf32>, vector<32x9xf32>, vector<2x9xf32> -> vector<2x9xf32>
    %cst_80 = arith.constant dense<0.000000e+00> : vector<2x9xf32>
    %220 = tpu.matmul %185, %29, %cst_80 {dimension_numbers = #tpu.dot_dimension_numbers<[1], [0], [0], [1], [0, 0, 1, 1], [], []>} : vector<2x32xf32>, vector<32x9xf32>, vector<2x9xf32> -> vector<2x9xf32>
    %221 = arith.addf %219, %220 : vector<2x9xf32>
    %222 = vector.broadcast %30 : vector<1x9xf32> to vector<2x9xf32>
    %223 = arith.addf %221, %222 : vector<2x9xf32>
    %224 = tpu.concatenate %223, %181 in 1 : vector<2x9xf32>, vector<2x8xf32> -> vector<2x17xf32>
    %225 = vector.extract_strided_slice %33 {offsets = [4, 0], sizes = [2, 128], strides = [1, 1]} : vector<8x128xf32> to vector<2x128xf32>
    %cst_81 = arith.constant dense<0.000000e+00> : vector<2x128xf32>
    %226 = tpu.matmul %185, %14, %cst_81 {dimension_numbers = #tpu.dot_dimension_numbers<[1], [0], [0], [1], [0, 0, 1, 1], [], []>} : vector<2x32xf32>, vector<32x128xf32>, vector<2x128xf32> -> vector<2x128xf32>
    %227 = arith.addf %225, %226 : vector<2x128xf32>
    %cst_82 = arith.constant dense<0.000000e+00> : vector<2x128xf32>
    %228 = tpu.matmul %162, %15, %cst_82 {dimension_numbers = #tpu.dot_dimension_numbers<[1], [0], [0], [1], [0, 0, 1, 1], [], []>} : vector<2x32xf32>, vector<32x128xf32>, vector<2x128xf32> -> vector<2x128xf32>
    %229 = arith.addf %227, %228 : vector<2x128xf32>
    %230 = vector.extract_strided_slice %229 {offsets = [0, 0], sizes = [2, 32], strides = [1, 1]} : vector<2x128xf32> to vector<2x32xf32>
    %231 = arith.negf %230 : vector<2x32xf32>
    %232 = math.exp %231 : vector<2x32xf32>
    %cst_83 = arith.constant 1.000000e+00 : f32
    %233 = vector.broadcast %cst_83 : f32 to vector<2x32xf32>
    %234 = arith.addf %233, %232 : vector<2x32xf32>
    %235 = arith.divf %233, %234 : vector<2x32xf32>
    %236 = vector.extract_strided_slice %229 {offsets = [0, 32], sizes = [2, 32], strides = [1, 1]} : vector<2x128xf32> to vector<2x32xf32>
    %237 = arith.negf %236 : vector<2x32xf32>
    %238 = math.exp %237 : vector<2x32xf32>
    %cst_84 = arith.constant 1.000000e+00 : f32
    %239 = vector.broadcast %cst_84 : f32 to vector<2x32xf32>
    %240 = arith.addf %239, %238 : vector<2x32xf32>
    %241 = arith.divf %239, %240 : vector<2x32xf32>
    %242 = vector.extract_strided_slice %229 {offsets = [0, 64], sizes = [2, 32], strides = [1, 1]} : vector<2x128xf32> to vector<2x32xf32>
    %243 = math.tanh %242 : vector<2x32xf32>
    %244 = vector.extract_strided_slice %229 {offsets = [0, 96], sizes = [2, 32], strides = [1, 1]} : vector<2x128xf32> to vector<2x32xf32>
    %245 = arith.negf %244 : vector<2x32xf32>
    %246 = math.exp %245 : vector<2x32xf32>
    %cst_85 = arith.constant 1.000000e+00 : f32
    %247 = vector.broadcast %cst_85 : f32 to vector<2x32xf32>
    %248 = arith.addf %247, %246 : vector<2x32xf32>
    %249 = arith.divf %247, %248 : vector<2x32xf32>
    %250 = arith.mulf %241, %160 : vector<2x32xf32>
    %251 = arith.mulf %235, %243 : vector<2x32xf32>
    %252 = arith.addf %250, %251 : vector<2x32xf32>
    %253 = math.tanh %252 : vector<2x32xf32>
    %254 = arith.mulf %249, %253 : vector<2x32xf32>
    %cst_86 = arith.constant dense<0.000000e+00> : vector<2x128xf32>
    %255 = tpu.matmul %254, %17, %cst_86 {dimension_numbers = #tpu.dot_dimension_numbers<[1], [0], [0], [1], [0, 0, 1, 1], [], []>} : vector<2x32xf32>, vector<32x128xf32>, vector<2x128xf32> -> vector<2x128xf32>
    %cst_87 = arith.constant dense<0.000000e+00> : vector<2x128xf32>
    %256 = tpu.matmul %181, %19, %cst_87 {dimension_numbers = #tpu.dot_dimension_numbers<[1], [0], [0], [1], [0, 0, 1, 1], [], []>} : vector<2x8xf32>, vector<8x128xf32>, vector<2x128xf32> -> vector<2x128xf32>
    %cst_88 = arith.constant dense<0.000000e+00> : vector<2x128xf32>
    %257 = tpu.matmul %186, %20, %cst_88 {dimension_numbers = #tpu.dot_dimension_numbers<[1], [0], [0], [1], [0, 0, 1, 1], [], []>} : vector<2x8xf32>, vector<8x128xf32>, vector<2x128xf32> -> vector<2x128xf32>
    %258 = arith.addf %256, %257 : vector<2x128xf32>
    %259 = arith.addf %255, %10 : vector<2x128xf32>
    %260 = arith.addf %259, %258 : vector<2x128xf32>
    %261 = math.tanh %260 : vector<2x128xf32>
    %cst_89 = arith.constant dense<0.000000e+00> : vector<2x8xf32>
    %262 = tpu.matmul %261, %21, %cst_89 {dimension_numbers = #tpu.dot_dimension_numbers<[1], [0], [0], [1], [0, 0, 1, 1], [], []>} : vector<2x128xf32>, vector<128x8xf32>, vector<2x8xf32> -> vector<2x8xf32>
    %263 = arith.addf %262, %11 : vector<2x8xf32>
    %cst_90 = arith.constant dense<0xFF800000> : vector<2xf32>
    %264 = vector.multi_reduction <maximumf>, %263, %cst_90 [1] : vector<2x8xf32> to vector<2xf32>
    %265 = vector.shape_cast %264 : vector<2xf32> to vector<2x1xf32>
    %266 = vector.broadcast %265 : vector<2x1xf32> to vector<2x8xf32>
    %267 = arith.subf %263, %266 : vector<2x8xf32>
    %268 = math.exp %267 : vector<2x8xf32>
    %cst_91 = arith.constant dense<0.000000e+00> : vector<2xf32>
    %269 = vector.multi_reduction <add>, %268, %cst_91 [1] : vector<2x8xf32> to vector<2xf32>
    %270 = vector.shape_cast %269 : vector<2xf32> to vector<2x1xf32>
    %271 = tpu.reciprocal %270 {approx = true} : vector<2x1xf32> -> vector<2x1xf32>
    %272 = vector.broadcast %271 : vector<2x1xf32> to vector<2x8xf32>
    %273 = arith.mulf %268, %272 : vector<2x8xf32>
    %274 = vector.shape_cast %273 : vector<2x8xf32> to vector<2x8x1xf32>
    %275 = vector.broadcast %274 : vector<2x8x1xf32> to vector<2x8x32xf32>
    %276 = arith.mulf %275, %9 : vector<2x8x32xf32>
    %cst_92 = arith.constant dense<0.000000e+00> : vector<2x32xf32>
    %277 = vector.multi_reduction <add>, %276, %cst_92 [1] : vector<2x8x32xf32> to vector<2x32xf32>
    %278 = arith.addf %186, %273 : vector<2x8xf32>
    %cst_93 = arith.constant dense<0.000000e+00> : vector<2x128xf32>
    %279 = tpu.matmul %254, %23, %cst_93 {dimension_numbers = #tpu.dot_dimension_numbers<[1], [0], [0], [1], [0, 0, 1, 1], [], []>} : vector<2x32xf32>, vector<32x128xf32>, vector<2x128xf32> -> vector<2x128xf32>
    %cst_94 = arith.constant dense<0.000000e+00> : vector<2x128xf32>
    %280 = tpu.matmul %277, %24, %cst_94 {dimension_numbers = #tpu.dot_dimension_numbers<[1], [0], [0], [1], [0, 0, 1, 1], [], []>} : vector<2x32xf32>, vector<32x128xf32>, vector<2x128xf32> -> vector<2x128xf32>
    %281 = arith.addf %279, %280 : vector<2x128xf32>
    %cst_95 = arith.constant dense<0.000000e+00> : vector<2x128xf32>
    %282 = tpu.matmul %218, %25, %cst_95 {dimension_numbers = #tpu.dot_dimension_numbers<[1], [0], [0], [1], [0, 0, 1, 1], [], []>} : vector<2x32xf32>, vector<32x128xf32>, vector<2x128xf32> -> vector<2x128xf32>
    %283 = arith.addf %281, %282 : vector<2x128xf32>
    %284 = vector.broadcast %26 : vector<1x128xf32> to vector<2x128xf32>
    %285 = arith.addf %283, %284 : vector<2x128xf32>
    %286 = vector.extract_strided_slice %285 {offsets = [0, 0], sizes = [2, 32], strides = [1, 1]} : vector<2x128xf32> to vector<2x32xf32>
    %287 = arith.negf %286 : vector<2x32xf32>
    %288 = math.exp %287 : vector<2x32xf32>
    %cst_96 = arith.constant 1.000000e+00 : f32
    %289 = vector.broadcast %cst_96 : f32 to vector<2x32xf32>
    %290 = arith.addf %289, %288 : vector<2x32xf32>
    %291 = arith.divf %289, %290 : vector<2x32xf32>
    %292 = vector.extract_strided_slice %285 {offsets = [0, 32], sizes = [2, 32], strides = [1, 1]} : vector<2x128xf32> to vector<2x32xf32>
    %293 = arith.negf %292 : vector<2x32xf32>
    %294 = math.exp %293 : vector<2x32xf32>
    %cst_97 = arith.constant 1.000000e+00 : f32
    %295 = vector.broadcast %cst_97 : f32 to vector<2x32xf32>
    %296 = arith.addf %295, %294 : vector<2x32xf32>
    %297 = arith.divf %295, %296 : vector<2x32xf32>
    %298 = vector.extract_strided_slice %285 {offsets = [0, 64], sizes = [2, 32], strides = [1, 1]} : vector<2x128xf32> to vector<2x32xf32>
    %299 = math.tanh %298 : vector<2x32xf32>
    %300 = vector.extract_strided_slice %285 {offsets = [0, 96], sizes = [2, 32], strides = [1, 1]} : vector<2x128xf32> to vector<2x32xf32>
    %301 = arith.negf %300 : vector<2x32xf32>
    %302 = math.exp %301 : vector<2x32xf32>
    %cst_98 = arith.constant 1.000000e+00 : f32
    %303 = vector.broadcast %cst_98 : f32 to vector<2x32xf32>
    %304 = arith.addf %303, %302 : vector<2x32xf32>
    %305 = arith.divf %303, %304 : vector<2x32xf32>
    %306 = arith.mulf %297, %216 : vector<2x32xf32>
    %307 = arith.mulf %291, %299 : vector<2x32xf32>
    %308 = arith.addf %306, %307 : vector<2x32xf32>
    %309 = math.tanh %308 : vector<2x32xf32>
    %310 = arith.mulf %305, %309 : vector<2x32xf32>
    %cst_99 = arith.constant dense<0.000000e+00> : vector<2x9xf32>
    %311 = tpu.matmul %310, %28, %cst_99 {dimension_numbers = #tpu.dot_dimension_numbers<[1], [0], [0], [1], [0, 0, 1, 1], [], []>} : vector<2x32xf32>, vector<32x9xf32>, vector<2x9xf32> -> vector<2x9xf32>
    %cst_100 = arith.constant dense<0.000000e+00> : vector<2x9xf32>
    %312 = tpu.matmul %277, %29, %cst_100 {dimension_numbers = #tpu.dot_dimension_numbers<[1], [0], [0], [1], [0, 0, 1, 1], [], []>} : vector<2x32xf32>, vector<32x9xf32>, vector<2x9xf32> -> vector<2x9xf32>
    %313 = arith.addf %311, %312 : vector<2x9xf32>
    %314 = vector.broadcast %30 : vector<1x9xf32> to vector<2x9xf32>
    %315 = arith.addf %313, %314 : vector<2x9xf32>
    %316 = tpu.concatenate %315, %273 in 1 : vector<2x9xf32>, vector<2x8xf32> -> vector<2x17xf32>
    %317 = vector.extract_strided_slice %33 {offsets = [6, 0], sizes = [2, 128], strides = [1, 1]} : vector<8x128xf32> to vector<2x128xf32>
    %cst_101 = arith.constant dense<0.000000e+00> : vector<2x128xf32>
    %318 = tpu.matmul %277, %14, %cst_101 {dimension_numbers = #tpu.dot_dimension_numbers<[1], [0], [0], [1], [0, 0, 1, 1], [], []>} : vector<2x32xf32>, vector<32x128xf32>, vector<2x128xf32> -> vector<2x128xf32>
    %319 = arith.addf %317, %318 : vector<2x128xf32>
    %cst_102 = arith.constant dense<0.000000e+00> : vector<2x128xf32>
    %320 = tpu.matmul %254, %15, %cst_102 {dimension_numbers = #tpu.dot_dimension_numbers<[1], [0], [0], [1], [0, 0, 1, 1], [], []>} : vector<2x32xf32>, vector<32x128xf32>, vector<2x128xf32> -> vector<2x128xf32>
    %321 = arith.addf %319, %320 : vector<2x128xf32>
    %322 = vector.extract_strided_slice %321 {offsets = [0, 0], sizes = [2, 32], strides = [1, 1]} : vector<2x128xf32> to vector<2x32xf32>
    %323 = arith.negf %322 : vector<2x32xf32>
    %324 = math.exp %323 : vector<2x32xf32>
    %cst_103 = arith.constant 1.000000e+00 : f32
    %325 = vector.broadcast %cst_103 : f32 to vector<2x32xf32>
    %326 = arith.addf %325, %324 : vector<2x32xf32>
    %327 = arith.divf %325, %326 : vector<2x32xf32>
    %328 = vector.extract_strided_slice %321 {offsets = [0, 32], sizes = [2, 32], strides = [1, 1]} : vector<2x128xf32> to vector<2x32xf32>
    %329 = arith.negf %328 : vector<2x32xf32>
    %330 = math.exp %329 : vector<2x32xf32>
    %cst_104 = arith.constant 1.000000e+00 : f32
    %331 = vector.broadcast %cst_104 : f32 to vector<2x32xf32>
    %332 = arith.addf %331, %330 : vector<2x32xf32>
    %333 = arith.divf %331, %332 : vector<2x32xf32>
    %334 = vector.extract_strided_slice %321 {offsets = [0, 64], sizes = [2, 32], strides = [1, 1]} : vector<2x128xf32> to vector<2x32xf32>
    %335 = math.tanh %334 : vector<2x32xf32>
    %336 = vector.extract_strided_slice %321 {offsets = [0, 96], sizes = [2, 32], strides = [1, 1]} : vector<2x128xf32> to vector<2x32xf32>
    %337 = arith.negf %336 : vector<2x32xf32>
    %338 = math.exp %337 : vector<2x32xf32>
    %cst_105 = arith.constant 1.000000e+00 : f32
    %339 = vector.broadcast %cst_105 : f32 to vector<2x32xf32>
    %340 = arith.addf %339, %338 : vector<2x32xf32>
    %341 = arith.divf %339, %340 : vector<2x32xf32>
    %342 = arith.mulf %333, %252 : vector<2x32xf32>
    %343 = arith.mulf %327, %335 : vector<2x32xf32>
    %344 = arith.addf %342, %343 : vector<2x32xf32>
    %345 = math.tanh %344 : vector<2x32xf32>
    %346 = arith.mulf %341, %345 : vector<2x32xf32>
    %cst_106 = arith.constant dense<0.000000e+00> : vector<2x128xf32>
    %347 = tpu.matmul %346, %17, %cst_106 {dimension_numbers = #tpu.dot_dimension_numbers<[1], [0], [0], [1], [0, 0, 1, 1], [], []>} : vector<2x32xf32>, vector<32x128xf32>, vector<2x128xf32> -> vector<2x128xf32>
    %cst_107 = arith.constant dense<0.000000e+00> : vector<2x128xf32>
    %348 = tpu.matmul %273, %19, %cst_107 {dimension_numbers = #tpu.dot_dimension_numbers<[1], [0], [0], [1], [0, 0, 1, 1], [], []>} : vector<2x8xf32>, vector<8x128xf32>, vector<2x128xf32> -> vector<2x128xf32>
    %cst_108 = arith.constant dense<0.000000e+00> : vector<2x128xf32>
    %349 = tpu.matmul %278, %20, %cst_108 {dimension_numbers = #tpu.dot_dimension_numbers<[1], [0], [0], [1], [0, 0, 1, 1], [], []>} : vector<2x8xf32>, vector<8x128xf32>, vector<2x128xf32> -> vector<2x128xf32>
    %350 = arith.addf %348, %349 : vector<2x128xf32>
    %351 = arith.addf %347, %10 : vector<2x128xf32>
    %352 = arith.addf %351, %350 : vector<2x128xf32>
    %353 = math.tanh %352 : vector<2x128xf32>
    %cst_109 = arith.constant dense<0.000000e+00> : vector<2x8xf32>
    %354 = tpu.matmul %353, %21, %cst_109 {dimension_numbers = #tpu.dot_dimension_numbers<[1], [0], [0], [1], [0, 0, 1, 1], [], []>} : vector<2x128xf32>, vector<128x8xf32>, vector<2x8xf32> -> vector<2x8xf32>
    %355 = arith.addf %354, %11 : vector<2x8xf32>
    %cst_110 = arith.constant dense<0xFF800000> : vector<2xf32>
    %356 = vector.multi_reduction <maximumf>, %355, %cst_110 [1] : vector<2x8xf32> to vector<2xf32>
    %357 = vector.shape_cast %356 : vector<2xf32> to vector<2x1xf32>
    %358 = vector.broadcast %357 : vector<2x1xf32> to vector<2x8xf32>
    %359 = arith.subf %355, %358 : vector<2x8xf32>
    %360 = math.exp %359 : vector<2x8xf32>
    %cst_111 = arith.constant dense<0.000000e+00> : vector<2xf32>
    %361 = vector.multi_reduction <add>, %360, %cst_111 [1] : vector<2x8xf32> to vector<2xf32>
    %362 = vector.shape_cast %361 : vector<2xf32> to vector<2x1xf32>
    %363 = tpu.reciprocal %362 {approx = true} : vector<2x1xf32> -> vector<2x1xf32>
    %364 = vector.broadcast %363 : vector<2x1xf32> to vector<2x8xf32>
    %365 = arith.mulf %360, %364 : vector<2x8xf32>
    %366 = vector.shape_cast %365 : vector<2x8xf32> to vector<2x8x1xf32>
    %367 = vector.broadcast %366 : vector<2x8x1xf32> to vector<2x8x32xf32>
    %368 = arith.mulf %367, %9 : vector<2x8x32xf32>
    %cst_112 = arith.constant dense<0.000000e+00> : vector<2x32xf32>
    %369 = vector.multi_reduction <add>, %368, %cst_112 [1] : vector<2x8x32xf32> to vector<2x32xf32>
    %cst_113 = arith.constant dense<0.000000e+00> : vector<2x128xf32>
    %370 = tpu.matmul %346, %23, %cst_113 {dimension_numbers = #tpu.dot_dimension_numbers<[1], [0], [0], [1], [0, 0, 1, 1], [], []>} : vector<2x32xf32>, vector<32x128xf32>, vector<2x128xf32> -> vector<2x128xf32>
    %cst_114 = arith.constant dense<0.000000e+00> : vector<2x128xf32>
    %371 = tpu.matmul %369, %24, %cst_114 {dimension_numbers = #tpu.dot_dimension_numbers<[1], [0], [0], [1], [0, 0, 1, 1], [], []>} : vector<2x32xf32>, vector<32x128xf32>, vector<2x128xf32> -> vector<2x128xf32>
    %372 = arith.addf %370, %371 : vector<2x128xf32>
    %cst_115 = arith.constant dense<0.000000e+00> : vector<2x128xf32>
    %373 = tpu.matmul %310, %25, %cst_115 {dimension_numbers = #tpu.dot_dimension_numbers<[1], [0], [0], [1], [0, 0, 1, 1], [], []>} : vector<2x32xf32>, vector<32x128xf32>, vector<2x128xf32> -> vector<2x128xf32>
    %374 = arith.addf %372, %373 : vector<2x128xf32>
    %375 = vector.broadcast %26 : vector<1x128xf32> to vector<2x128xf32>
    %376 = arith.addf %374, %375 : vector<2x128xf32>
    %377 = vector.extract_strided_slice %376 {offsets = [0, 0], sizes = [2, 32], strides = [1, 1]} : vector<2x128xf32> to vector<2x32xf32>
    %378 = arith.negf %377 : vector<2x32xf32>
    %379 = math.exp %378 : vector<2x32xf32>
    %cst_116 = arith.constant 1.000000e+00 : f32
    %380 = vector.broadcast %cst_116 : f32 to vector<2x32xf32>
    %381 = arith.addf %380, %379 : vector<2x32xf32>
    %382 = arith.divf %380, %381 : vector<2x32xf32>
    %383 = vector.extract_strided_slice %376 {offsets = [0, 32], sizes = [2, 32], strides = [1, 1]} : vector<2x128xf32> to vector<2x32xf32>
    %384 = arith.negf %383 : vector<2x32xf32>
    %385 = math.exp %384 : vector<2x32xf32>
    %cst_117 = arith.constant 1.000000e+00 : f32
    %386 = vector.broadcast %cst_117 : f32 to vector<2x32xf32>
    %387 = arith.addf %386, %385 : vector<2x32xf32>
    %388 = arith.divf %386, %387 : vector<2x32xf32>
    %389 = vector.extract_strided_slice %376 {offsets = [0, 64], sizes = [2, 32], strides = [1, 1]} : vector<2x128xf32> to vector<2x32xf32>
    %390 = math.tanh %389 : vector<2x32xf32>
    %391 = vector.extract_strided_slice %376 {offsets = [0, 96], sizes = [2, 32], strides = [1, 1]} : vector<2x128xf32> to vector<2x32xf32>
    %392 = arith.negf %391 : vector<2x32xf32>
    %393 = math.exp %392 : vector<2x32xf32>
    %cst_118 = arith.constant 1.000000e+00 : f32
    %394 = vector.broadcast %cst_118 : f32 to vector<2x32xf32>
    %395 = arith.addf %394, %393 : vector<2x32xf32>
    %396 = arith.divf %394, %395 : vector<2x32xf32>
    %397 = arith.mulf %388, %308 : vector<2x32xf32>
    %398 = arith.mulf %382, %390 : vector<2x32xf32>
    %399 = arith.addf %397, %398 : vector<2x32xf32>
    %400 = math.tanh %399 : vector<2x32xf32>
    %401 = arith.mulf %396, %400 : vector<2x32xf32>
    %cst_119 = arith.constant dense<0.000000e+00> : vector<2x9xf32>
    %402 = tpu.matmul %401, %28, %cst_119 {dimension_numbers = #tpu.dot_dimension_numbers<[1], [0], [0], [1], [0, 0, 1, 1], [], []>} : vector<2x32xf32>, vector<32x9xf32>, vector<2x9xf32> -> vector<2x9xf32>
    %cst_120 = arith.constant dense<0.000000e+00> : vector<2x9xf32>
    %403 = tpu.matmul %369, %29, %cst_120 {dimension_numbers = #tpu.dot_dimension_numbers<[1], [0], [0], [1], [0, 0, 1, 1], [], []>} : vector<2x32xf32>, vector<32x9xf32>, vector<2x9xf32> -> vector<2x9xf32>
    %404 = arith.addf %402, %403 : vector<2x9xf32>
    %405 = vector.broadcast %30 : vector<1x9xf32> to vector<2x9xf32>
    %406 = arith.addf %404, %405 : vector<2x9xf32>
    %407 = tpu.concatenate %406, %365 in 1 : vector<2x9xf32>, vector<2x8xf32> -> vector<2x17xf32>
    %408 = tpu.concatenate %132, %224, %316, %407 in 0 : vector<2x17xf32>, vector<2x17xf32>, vector<2x17xf32>, vector<2x17xf32> -> vector<8x17xf32>
    %c0_121 = arith.constant 0 : index
    %c0_122 = arith.constant 0 : index
    %409 = vector.load %arg15[%c0_121, %c0_122] : memref<8x17xf32, #tpu.memory_space<vmem>>, vector<8x17xf32>
    tpu.vector_store %arg15[%c0_121, %c0_122], %408 {strides = array<i32>} : memref<8x17xf32, #tpu.memory_space<vmem>>, vector<8x17xf32>,
    return
  }
}

</mosaic_0001>

<llo_original>
// kernel: decoder_forward.1
$region0: #{decoder_forward.1}
  #allocation0 [shape = 'u32[]', space=smem, size = 0x4, offset = 0x4, fixed_abs, tag = 'smem constant byte address 0x4 - core index']
  #allocation1 [shape = 'u32[144,128]{1,0:T(1,128)}', space=vmem, size = 0x12000, scoped, tag = 'internal scratch']
  %s0 = inlined_call_operand.vmem [shape: f32[8,8], index: 0, kind: input, shape index: {}]
  %s1 = inlined_call_operand.vmem [shape: f32[2,8,32], index: 1, kind: input, shape index: {}]
  %s2 = inlined_call_operand.vmem [shape: f32[2,8], index: 2, kind: input, shape index: {}]
  %s3 = inlined_call_operand.vmem [shape: f32[2,128], index: 3, kind: input, shape index: {}]
  %s4 = inlined_call_operand.vmem [shape: f32[8,16], index: 4, kind: input, shape index: {}]
  %s5 = inlined_call_operand.vmem [shape: f32[16,16], index: 5, kind: input, shape index: {}]
  %s6 = inlined_call_operand.vmem [shape: f32[80,128], index: 6, kind: input, shape index: {}]
  %s7 = inlined_call_operand.vmem [shape: f32[1,128], index: 7, kind: input, shape index: {}]
  %s8 = inlined_call_operand.vmem [shape: f32[32,128], index: 8, kind: input, shape index: {}]
  %s9 = inlined_call_operand.vmem [shape: f32[16,128], index: 9, kind: input, shape index: {}]
  %s10 = inlined_call_operand.vmem [shape: f32[128,8], index: 10, kind: input, shape index: {}]
  %s11 = inlined_call_operand.vmem [shape: f32[96,128], index: 11, kind: input, shape index: {}]
  %s12 = inlined_call_operand.vmem [shape: f32[1,128], index: 12, kind: input, shape index: {}]
  %s13 = inlined_call_operand.vmem [shape: f32[64,9], index: 13, kind: input, shape index: {}]
  %s14 = inlined_call_operand.vmem [shape: f32[1,9], index: 14, kind: input, shape index: {}]
  %s15 = inlined_call_operand.vmem [shape: f32[8,17], index: 15, kind: output, shape index: {}]
  %s16 = sld [smem:[#allocation0]]
  $region70: #{decoder_forward.1} parent=0
    _
  %s18 = ssub.s32 1, %s16
  %s19 = scalar_select 0, %s18, %s16
  // Predicated region
  $region2: #{decoder_forward.1} parent=0 // pred_check
    _
  $region3: #{decoder_forward.1} parent=0 // pred_check_branch
    %21 = sbr.rel (0) target = $region5
  $region4: #{decoder_forward.1} parent=0 // pred_region
    _
  $region5: #{decoder_forward.1} parent=0 // pred_fallthru
    _
  // Predicated region
  $region6: #{decoder_forward.1} parent=0 // pred_check
    _
  $region7: #{decoder_forward.1} parent=0 // pred_check_branch
    %23 = sbr.rel (0) target = $region9
  $region8: #{decoder_forward.1} parent=0 // pred_region
    _
  $region9: #{decoder_forward.1} parent=0 // pred_fallthru
    _
  // Predicated region
  $region10: #{decoder_forward.1} parent=0 // pred_check
    _
  $region11: #{decoder_forward.1} parent=0 // pred_check_branch
    %25 = sbr.rel (0) target = $region13
  $region12: #{decoder_forward.1} parent=0 // pred_region
    _
  $region13: #{decoder_forward.1} parent=0 // pred_fallthru
    _
  // Predicated region
  $region14: #{decoder_forward.1} parent=0 // pred_check
    _
  $region15: #{decoder_forward.1} parent=0 // pred_check_branch
    %27 = sbr.rel (0) target = $region17
  $region16: #{decoder_forward.1} parent=0 // pred_region
    _
  $region17: #{decoder_forward.1} parent=0 // pred_fallthru
    _
  // Predicated region
  $region18: #{decoder_forward.1} parent=0 // pred_check
    _
  $region19: #{decoder_forward.1} parent=0 // pred_check_branch
    %29 = sbr.rel (0) target = $region21
  $region20: #{decoder_forward.1} parent=0 // pred_region
    _
  $region21: #{decoder_forward.1} parent=0 // pred_fallthru
    _
  // Predicated region
  $region22: #{decoder_forward.1} parent=0 // pred_check
    _
  $region23: #{decoder_forward.1} parent=0 // pred_check_branch
    %31 = sbr.rel (0) target = $region25
  $region24: #{decoder_forward.1} parent=0 // pred_region
    _
  $region25: #{decoder_forward.1} parent=0 // pred_fallthru
    _
  // Predicated region
  $region26: #{decoder_forward.1} parent=0 // pred_check
    _
  $region27: #{decoder_forward.1} parent=0 // pred_check_branch
    %33 = sbr.rel (0) target = $region29
  $region28: #{decoder_forward.1} parent=0 // pred_region
    _
  $region29: #{decoder_forward.1} parent=0 // pred_fallthru
    _
  // Predicated region
  $region30: #{decoder_forward.1} parent=0 // pred_check
    _
  $region31: #{decoder_forward.1} parent=0 // pred_check_branch
    %35 = sbr.rel (0) target = $region33
  $region32: #{decoder_forward.1} parent=0 // pred_region
    _
  $region33: #{decoder_forward.1} parent=0 // pred_fallthru
    _
  // Predicated region
  $region34: #{decoder_forward.1} parent=0 // pred_check
    _
  $region35: #{decoder_forward.1} parent=0 // pred_check_branch
    %37 = sbr.rel (0) target = $region37
  $region36: #{decoder_forward.1} parent=0 // pred_region
    _
  $region37: #{decoder_forward.1} parent=0 // pred_fallthru
    _
  // Predicated region
  $region38: #{decoder_forward.1} parent=0 // pred_check
    _
  $region39: #{decoder_forward.1} parent=0 // pred_check_branch
    %39 = sbr.rel (0) target = $region41
  $region40: #{decoder_forward.1} parent=0 // pred_region
    _
  $region41: #{decoder_forward.1} parent=0 // pred_fallthru
    _
  // Predicated region
  $region42: #{decoder_forward.1} parent=0 // pred_check
    _
  $region43: #{decoder_forward.1} parent=0 // pred_check_branch
    %41 = sbr.rel (0) target = $region45
  $region44: #{decoder_forward.1} parent=0 // pred_region
    _
  $region45: #{decoder_forward.1} parent=0 // pred_fallthru
    _
  // Predicated region
  $region46: #{decoder_forward.1} parent=0 // pred_check
    _
  $region47: #{decoder_forward.1} parent=0 // pred_check_branch
    %43 = sbr.rel (0) target = $region49
  $region48: #{decoder_forward.1} parent=0 // pred_region
    _
  $region49: #{decoder_forward.1} parent=0 // pred_fallthru
    _
  // Predicated region
  $region50: #{decoder_forward.1} parent=0 // pred_check
    _
  $region51: #{decoder_forward.1} parent=0 // pred_check_branch
    %45 = sbr.rel (0) target = $region53
  $region52: #{decoder_forward.1} parent=0 // pred_region
    _
  $region53: #{decoder_forward.1} parent=0 // pred_fallthru
    _
  // Predicated region
  $region54: #{decoder_forward.1} parent=0 // pred_check
    _
  $region55: #{decoder_forward.1} parent=0 // pred_check_branch
    %47 = sbr.rel (0) target = $region57
  $region56: #{decoder_forward.1} parent=0 // pred_region
    _
  $region57: #{decoder_forward.1} parent=0 // pred_fallthru
    _
  // Predicated region
  $region58: #{decoder_forward.1} parent=0 // pred_check
    _
  $region59: #{decoder_forward.1} parent=0 // pred_check_branch
    %49 = sbr.rel (0) target = $region61
  $region60: #{decoder_forward.1} parent=0 // pred_region
    _
  $region61: #{decoder_forward.1} parent=0 // pred_fallthru
    _
  %v50 = vld [vmem:[%s0] sm:$0xff]
  %v51 = vld [vmem:[%s4] sm:$0xff]
  %vm52 = vcmask 64512
  %v54 = vsel %vm52, %v50, 0
  %56 = vmatprep.subr.mxu0 0.0
  %57 = vmatpush1.msra.mxu0 0.0
  %58 = vmatprep.subr.mxu0 0.0
  %59 = vmatpush1.msra.mxu0 0.0
  %60 = vmatprep.subr.mxu0 0.0
  %61 = vmatpush1.msra.mxu0 0.0
  %62 = vmatprep.subr.mxu0 0.0
  %63 = vmatpush1.msra.mxu0 0.0
  %64 = vmatprep.subr.mxu0 0.0
  %65 = vmatpush1.msra.mxu0 0.0
  %66 = vmatprep.subr.mxu0 0.0
  %67 = vmatpush1.msra.mxu0 0.0
  %68 = vmatprep.subr.mxu0 0.0
  %69 = vmatpush1.msra.mxu0 0.0
  %70 = vmatprep.subr.mxu0 0.0
  %71 = vmatpush1.msra.mxu0 0.0
  %72 = vmatprep.subr.mxu0 0.0
  %73 = vmatpush1.msra.mxu0 0.0
  %74 = vmatprep.subr.mxu0 0.0
  %75 = vmatpush1.msra.mxu0 0.0
  %76 = vmatprep.subr.mxu0 0.0
  %77 = vmatpush1.msra.mxu0 0.0
  %78 = vmatprep.subr.mxu0 0.0
  %79 = vmatpush1.msra.mxu0 0.0
  %80 = vmatprep.subr.mxu0 0.0
  %81 = vmatpush1.msra.mxu0 0.0
  %82 = vmatprep.subr.mxu0 0.0
  %83 = vmatpush1.msra.mxu0 0.0
  %84 = vmatprep.subr.mxu0 0.0
  %85 = vmatpush1.msra.mxu0 0.0
  %86 = vmatprep.subr.mxu0 0.0
  %87 = vmatpush1.msra.mxu0 %v51
  %88 = vmatprep.subr.mxu0 0.0
  %89 = vmatpush2.msra.mxu0 0.0
  %90 = vmatprep.subr.mxu0 0.0
  %91 = vmatpush2.msra.mxu0 0.0
  %92 = vmatprep.subr.mxu0 0.0
  %93 = vmatpush2.msra.mxu0 0.0
  %94 = vmatprep.subr.mxu0 0.0
  %95 = vmatpush2.msra.mxu0 0.0
  %96 = vmatprep.subr.mxu0 0.0
  %97 = vmatpush2.msra.mxu0 0.0
  %98 = vmatprep.subr.mxu0 0.0
  %99 = vmatpush2.msra.mxu0 0.0
  %100 = vmatprep.subr.mxu0 0.0
  %101 = vmatpush2.msra.mxu0 0.0
  %102 = vmatprep.subr.mxu0 0.0
  %103 = vmatpush2.msra.mxu0 0.0
  %104 = vmatprep.subr.mxu0 0.0
  %105 = vmatpush2.msra.mxu0 0.0
  %106 = vmatprep.subr.mxu0 0.0
  %107 = vmatpush2.msra.mxu0 0.0
  %108 = vmatprep.subr.mxu0 0.0
  %109 = vmatpush2.msra.mxu0 0.0
  %110 = vmatprep.subr.mxu0 0.0
  %111 = vmatpush2.msra.mxu0 0.0
  %112 = vmatprep.subr.mxu0 0.0
  %113 = vmatpush2.msra.mxu0 0.0
  %114 = vmatprep.subr.mxu0 0.0
  %115 = vmatpush2.msra.mxu0 0.0
  %116 = vmatprep.subr.mxu0 0.0
  %117 = vmatpush2.msra.mxu0 0.0
  %118 = vmatprep.subr.mxu0 0.0
  %119 = vmatpush2.msra.mxu0 0.0
  %120 = vmatprep.mubr.f32.mxu0 0.0
  %121 = vmatmul.mubr.f32.gmra.mxu0 %v54
  %v122 = vpop.f32.mrf.mxu0
  %v123 = vadd.f32 0.0, %v122
  %v124 = vpop.f32.mrf.mxu0
  %125 = vdwg.mxu0
  %v126 = vmax.f32 %v123, 0.0
  %v127 = vld [vmem:[%s5] sm:$0xff]
  %v128 = vld [vmem:[%s5 + $0x8] sm:$0xff]
  %vm129 = vcmask 130048
  %v131 = vsel %vm129, %v126, 0
  %133 = vmatprep.subr.mxu0 0.0
  %134 = vmatpush1.msra.mxu0 0.0
  %135 = vmatprep.subr.mxu0 0.0
  %136 = vmatpush1.msra.mxu0 0.0
  %137 = vmatprep.subr.mxu0 0.0
  %138 = vmatpush1.msra.mxu0 0.0
  %139 = vmatprep.subr.mxu0 0.0
  %140 = vmatpush1.msra.mxu0 0.0
  %141 = vmatprep.subr.mxu0 0.0
  %142 = vmatpush1.msra.mxu0 0.0
  %143 = vmatprep.subr.mxu0 0.0
  %144 = vmatpush1.msra.mxu0 0.0
  %145 = vmatprep.subr.mxu0 0.0
  %146 = vmatpush1.msra.mxu0 0.0
  %147 = vmatprep.subr.mxu0 0.0
  %148 = vmatpush1.msra.mxu0 0.0
  %149 = vmatprep.subr.mxu0 0.0
  %150 = vmatpush1.msra.mxu0 0.0
  %151 = vmatprep.subr.mxu0 0.0
  %152 = vmatpush1.msra.mxu0 0.0
  %153 = vmatprep.subr.mxu0 0.0
  %154 = vmatpush1.msra.mxu0 0.0
  %155 = vmatprep.subr.mxu0 0.0
  %156 = vmatpush1.msra.mxu0 0.0
  %157 = vmatprep.subr.mxu0 0.0
  %158 = vmatpush1.msra.mxu0 0.0
  %159 = vmatprep.subr.mxu0 0.0
  %160 = vmatpush1.msra.mxu0 0.0
  %161 = vmatprep.subr.mxu0 0.0
  %162 = vmatpush1.msra.mxu0 %v128
  %163 = vmatprep.subr.mxu0 0.0
  %164 = vmatpush1.msra.mxu0 %v127
  %165 = vmatprep.subr.mxu0 0.0
  %166 = vmatpush2.msra.mxu0 0.0
  %167 = vmatprep.subr.mxu0 0.0
  %168 = vmatpush2.msra.mxu0 0.0
  %169 = vmatprep.subr.mxu0 0.0
  %170 = vmatpush2.msra.mxu0 0.0
  %171 = vmatprep.subr.mxu0 0.0
  %172 = vmatpush2.msra.mxu0 0.0
  %173 = vmatprep.subr.mxu0 0.0
  %174 = vmatpush2.msra.mxu0 0.0
  %175 = vmatprep.subr.mxu0 0.0
  %176 = vmatpush2.msra.mxu0 0.0
  %177 = vmatprep.subr.mxu0 0.0
  %178 = vmatpush2.msra.mxu0 0.0
  %179 = vmatprep.subr.mxu0 0.0
  %180 = vmatpush2.msra.mxu0 0.0
  %181 = vmatprep.subr.mxu0 0.0
  %182 = vmatpush2.msra.mxu0 0.0
  %183 = vmatprep.subr.mxu0 0.0
  %184 = vmatpush2.msra.mxu0 0.0
  %185 = vmatprep.subr.mxu0 0.0
  %186 = vmatpush2.msra.mxu0 0.0
  %187 = vmatprep.subr.mxu0 0.0
  %188 = vmatpush2.msra.mxu0 0.0
  %189 = vmatprep.subr.mxu0 0.0
  %190 = vmatpush2.msra.mxu0 0.0
  %191 = vmatprep.subr.mxu0 0.0
  %192 = vmatpush2.msra.mxu0 0.0
  %193 = vmatprep.subr.mxu0 0.0
  %194 = vmatpush2.msra.mxu0 0.0
  %195 = vmatprep.subr.mxu0 0.0
  %196 = vmatpush2.msra.mxu0 0.0
  %197 = vmatprep.mubr.f32.mxu0 0.0
  %198 = vmatmul.mubr.f32.gmra.mxu0 %v131
  %v199 = vpop.f32.mrf.mxu0
  %v200 = vadd.f32 0.0, %v199
  %v201 = vpop.f32.mrf.mxu0
  %202 = vdwg.mxu0
  %v203 = vmax.f32 %v200, 0.0
  %v204 = vld [vmem:[%s1] sm:$0xff]
  %v205 = vld [vmem:[%s1 + $0x8] sm:$0xff]
  %v206 = vld [vmem:[%s3] sm:$0x3]
  %v207 = vld [vmem:[%s2] sm:$0x3]
  %v208 = vld [vmem:[%s6] sm:$0xff]
  %v209 = vld [vmem:[%s6 + $0x8] sm:$0xff]
  %v210 = vld [vmem:[%s6 + $0x10] sm:$0xff]
  %v211 = vld [vmem:[%s6 + $0x18] sm:$0xff]
  %v212 = vld [vmem:[%s6 + $0x20] sm:$0xff]
  %v213 = vld [vmem:[%s6 + $0x28] sm:$0xff]
  %v214 = vld [vmem:[%s6 + $0x30] sm:$0xff]
  %v215 = vld [vmem:[%s6 + $0x38] sm:$0xff]
  %v216 = vld [vmem:[%s6 + $0x40] sm:$0xff]
  %v217 = vld [vmem:[%s6 + $0x48] sm:$0xff]
  %v218 = vld [vmem:[%s7] sm:$0x1]
  %v219 = vld [vmem:[%s8] sm:$0xff]
  %v220 = vld [vmem:[%s8 + $0x8] sm:$0xff]
  %v221 = vld [vmem:[%s8 + $0x10] sm:$0xff]
  %v222 = vld [vmem:[%s8 + $0x18] sm:$0xff]
  %v223 = vld [vmem:[%s9] sm:$0xff]
  %v224 = vld [vmem:[%s9 + $0x8] sm:$0xff]
  %v225 = vld [vmem:[%s10] sm:$0xff]
  %v226 = vld [vmem:[%s10 + $0x8] sm:$0xff]
  %v227 = vld [vmem:[%s10 + $0x10] sm:$0xff]
  %v228 = vld [vmem:[%s10 + $0x18] sm:$0xff]
  %v229 = vld [vmem:[%s10 + $0x20] sm:$0xff]
  %v230 = vld [vmem:[%s10 + $0x28] sm:$0xff]
  %v231 = vld [vmem:[%s10 + $0x30] sm:$0xff]
  %v232 = vld [vmem:[%s10 + $0x38] sm:$0xff]
  %v233 = vld [vmem:[%s10 + $0x40] sm:$0xff]
  %v234 = vld [vmem:[%s10 + $0x48] sm:$0xff]
  %v235 = vld [vmem:[%s10 + $0x50] sm:$0xff]
  %v236 = vld [vmem:[%s10 + $0x58] sm:$0xff]
  %v237 = vld [vmem:[%s10 + $0x60] sm:$0xff]
  %v238 = vld [vmem:[%s10 + $0x68] sm:$0xff]
  %v239 = vld [vmem:[%s10 + $0x70] sm:$0xff]
  %v240 = vld [vmem:[%s10 + $0x78] sm:$0xff]
  %v241 = vld [vmem:[%s11] sm:$0xff]
  %v242 = vld [vmem:[%s11 + $0x8] sm:$0xff]
  %v243 = vld [vmem:[%s11 + $0x10] sm:$0xff]
  %v244 = vld [vmem:[%s11 + $0x18] sm:$0xff]
  %v245 = vld [vmem:[%s11 + $0x20] sm:$0xff]
  %v246 = vld [vmem:[%s11 + $0x28] sm:$0xff]
  %v247 = vld [vmem:[%s11 + $0x30] sm:$0xff]
  %v248 = vld [vmem:[%s11 + $0x38] sm:$0xff]
  %v249 = vld [vmem:[%s11 + $0x40] sm:$0xff]
  %v250 = vld [vmem:[%s11 + $0x48] sm:$0xff]
  %v251 = vld [vmem:[%s11 + $0x50] sm:$0xff]
  %v252 = vld [vmem:[%s11 + $0x58] sm:$0xff]
  %v253 = vld [vmem:[%s12] sm:$0x1]
  %v254 = vld [vmem:[%s13] sm:$0xff]
  %v255 = vld [vmem:[%s13 + $0x8] sm:$0xff]
  %v256 = vld [vmem:[%s13 + $0x10] sm:$0xff]
  %v257 = vld [vmem:[%s13 + $0x18] sm:$0xff]
  %v258 = vld [vmem:[%s13 + $0x20] sm:$0xff]
  %v259 = vld [vmem:[%s13 + $0x28] sm:$0xff]
  %v260 = vld [vmem:[%s13 + $0x30] sm:$0xff]
  %v261 = vld [vmem:[%s13 + $0x38] sm:$0xff]
  %v262 = vld [vmem:[%s14] sm:$0x1]
  %v264 = vlaneseq
  %v265 = vshrl.u32 %v264, 7
  %v266 = vsub.s32 0, %v265
  %v267 = vrot.slane %v218, %v266
  %v270 = vsel %vm129, %v203, 0
  %272 = vmatprep.subr.mxu0 0.0
  %273 = vmatpush1.msra.mxu0 0.0
  %274 = vmatprep.subr.mxu0 0.0
  %275 = vmatpush1.msra.mxu0 0.0
  %276 = vmatprep.subr.mxu0 0.0
  %277 = vmatpush1.msra.mxu0 0.0
  %278 = vmatprep.subr.mxu0 0.0
  %279 = vmatpush1.msra.mxu0 0.0
  %280 = vmatprep.subr.mxu0 0.0
  %281 = vmatpush1.msra.mxu0 0.0
  %282 = vmatprep.subr.mxu0 0.0
  %283 = vmatpush1.msra.mxu0 0.0
  %284 = vmatprep.subr.mxu0 0.0
  %285 = vmatpush1.msra.mxu0 0.0
  %286 = vmatprep.subr.mxu0 0.0
  %287 = vmatpush1.msra.mxu0 0.0
  %288 = vmatprep.subr.mxu0 0.0
  %289 = vmatpush1.msra.mxu0 0.0
  %290 = vmatprep.subr.mxu0 0.0
  %291 = vmatpush1.msra.mxu0 0.0
  %292 = vmatprep.subr.mxu0 0.0
  %293 = vmatpush1.msra.mxu0 0.0
  %294 = vmatprep.subr.mxu0 0.0
  %295 = vmatpush1.msra.mxu0 0.0
  %296 = vmatprep.subr.mxu0 0.0
  %297 = vmatpush1.msra.mxu0 0.0
  %298 = vmatprep.subr.mxu0 0.0
  %299 = vmatpush1.msra.mxu0 0.0
  %300 = vmatprep.subr.mxu0 0.0
  %301 = vmatpush1.msra.mxu0 %v209
  %302 = vmatprep.subr.mxu0 0.0
  %303 = vmatpush1.msra.mxu0 %v208
  %304 = vmatprep.subr.mxu0 0.0
  %305 = vmatpush2.msra.mxu0 0.0
  %306 = vmatprep.subr.mxu0 0.0
  %307 = vmatpush2.msra.mxu0 0.0
  %308 = vmatprep.subr.mxu0 0.0
  %309 = vmatpush2.msra.mxu0 0.0
  %310 = vmatprep.subr.mxu0 0.0
  %311 = vmatpush2.msra.mxu0 0.0
  %312 = vmatprep.subr.mxu0 0.0
  %313 = vmatpush2.msra.mxu0 0.0
  %314 = vmatprep.subr.mxu0 0.0
  %315 = vmatpush2.msra.mxu0 0.0
  %316 = vmatprep.subr.mxu0 0.0
  %317 = vmatpush2.msra.mxu0 0.0
  %318 = vmatprep.subr.mxu0 0.0
  %319 = vmatpush2.msra.mxu0 0.0
  %320 = vmatprep.subr.mxu0 0.0
  %321 = vmatpush2.msra.mxu0 0.0
  %322 = vmatprep.subr.mxu0 0.0
  %323 = vmatpush2.msra.mxu0 0.0
  %324 = vmatprep.subr.mxu0 0.0
  %325 = vmatpush2.msra.mxu0 0.0
  %326 = vmatprep.subr.mxu0 0.0
  %327 = vmatpush2.msra.mxu0 0.0
  %328 = vmatprep.subr.mxu0 0.0
  %329 = vmatpush2.msra.mxu0 0.0
  %330 = vmatprep.subr.mxu0 0.0
  %331 = vmatpush2.msra.mxu0 0.0
  %332 = vmatprep.subr.mxu0 0.0
  %333 = vmatpush2.msra.mxu0 0.0
  %334 = vmatprep.subr.mxu0 0.0
  %335 = vmatpush2.msra.mxu0 0.0
  %336 = vmatprep.mubr.f32.mxu0 0.0
  %337 = vmatmul.mubr.f32.gmra.mxu0 %v270
  %v338 = vpop.f32.mrf.mxu0
  %v339 = vadd.f32 %v267, %v338
  %v340 = vpop.f32.mrf.mxu0
  %341 = vdwg.mxu0
  %vm342 = vcmask 261120
  %v344 = vsel %vm342, 0.0, 0
  %346 = vmatprep.subr.mxu0 0.0
  %347 = vmatpush1.msra.mxu0 0.0
  %348 = vmatprep.subr.mxu0 0.0
  %349 = vmatpush1.msra.mxu0 0.0
  %350 = vmatprep.subr.mxu0 0.0
  %351 = vmatpush1.msra.mxu0 0.0
  %352 = vmatprep.subr.mxu0 0.0
  %353 = vmatpush1.msra.mxu0 0.0
  %354 = vmatprep.subr.mxu0 0.0
  %355 = vmatpush1.msra.mxu0 0.0
  %356 = vmatprep.subr.mxu0 0.0
  %357 = vmatpush1.msra.mxu0 0.0
  %358 = vmatprep.subr.mxu0 0.0
  %359 = vmatpush1.msra.mxu0 0.0
  %360 = vmatprep.subr.mxu0 0.0
  %361 = vmatpush1.msra.mxu0 0.0
  %362 = vmatprep.subr.mxu0 0.0
  %363 = vmatpush1.msra.mxu0 0.0
  %364 = vmatprep.subr.mxu0 0.0
  %365 = vmatpush1.msra.mxu0 0.0
  %366 = vmatprep.subr.mxu0 0.0
  %367 = vmatpush1.msra.mxu0 0.0
  %368 = vmatprep.subr.mxu0 0.0
  %369 = vmatpush1.msra.mxu0 0.0
  %370 = vmatprep.subr.mxu0 0.0
  %371 = vmatpush1.msra.mxu0 %v213
  %372 = vmatprep.subr.mxu0 0.0
  %373 = vmatpush1.msra.mxu0 %v212
  %374 = vmatprep.subr.mxu0 0.0
  %375 = vmatpush1.msra.mxu0 %v211
  %376 = vmatprep.subr.mxu0 0.0
  %377 = vmatpush1.msra.mxu0 %v210
  %378 = vmatprep.subr.mxu0 0.0
  %379 = vmatpush2.msra.mxu0 0.0
  %380 = vmatprep.subr.mxu0 0.0
  %381 = vmatpush2.msra.mxu0 0.0
  %382 = vmatprep.subr.mxu0 0.0
  %383 = vmatpush2.msra.mxu0 0.0
  %384 = vmatprep.subr.mxu0 0.0
  %385 = vmatpush2.msra.mxu0 0.0
  %386 = vmatprep.subr.mxu0 0.0
  %387 = vmatpush2.msra.mxu0 0.0
  %388 = vmatprep.subr.mxu0 0.0
  %389 = vmatpush2.msra.mxu0 0.0
  %390 = vmatprep.subr.mxu0 0.0
  %391 = vmatpush2.msra.mxu0 0.0
  %392 = vmatprep.subr.mxu0 0.0
  %393 = vmatpush2.msra.mxu0 0.0
  %394 = vmatprep.subr.mxu0 0.0
  %395 = vmatpush2.msra.mxu0 0.0
  %396 = vmatprep.subr.mxu0 0.0
  %397 = vmatpush2.msra.mxu0 0.0
  %398 = vmatprep.subr.mxu0 0.0
  %399 = vmatpush2.msra.mxu0 0.0
  %400 = vmatprep.subr.mxu0 0.0
  %401 = vmatpush2.msra.mxu0 0.0
  %402 = vmatprep.subr.mxu0 0.0
  %403 = vmatpush2.msra.mxu0 0.0
  %404 = vmatprep.subr.mxu0 0.0
  %405 = vmatpush2.msra.mxu0 0.0
  %406 = vmatprep.subr.mxu0 0.0
  %407 = vmatpush2.msra.mxu0 0.0
  %408 = vmatprep.subr.mxu0 0.0
  %409 = vmatpush2.msra.mxu0 0.0
  %410 = vmatprep.mubr.f32.mxu0 0.0
  %411 = vmatmul.mubr.f32.gmra.mxu0 %v344
  %v412 = vpop.f32.mrf.mxu0
  %v413 = vadd.f32 0.0, %v412
  %v414 = vpop.f32.mrf.mxu0
  %415 = vdwg.mxu0
  %v416 = vadd.f32 %v339, %v413
  %417 = vmatprep.subr.mxu0 0.0
  %418 = vmatpush1.msra.mxu0 0.0
  %419 = vmatprep.subr.mxu0 0.0
  %420 = vmatpush1.msra.mxu0 0.0
  %421 = vmatprep.subr.mxu0 0.0
  %422 = vmatpush1.msra.mxu0 0.0
  %423 = vmatprep.subr.mxu0 0.0
  %424 = vmatpush1.msra.mxu0 0.0
  %425 = vmatprep.subr.mxu0 0.0
  %426 = vmatpush1.msra.mxu0 0.0
  %427 = vmatprep.subr.mxu0 0.0
  %428 = vmatpush1.msra.mxu0 0.0
  %429 = vmatprep.subr.mxu0 0.0
  %430 = vmatpush1.msra.mxu0 0.0
  %431 = vmatprep.subr.mxu0 0.0
  %432 = vmatpush1.msra.mxu0 0.0
  %433 = vmatprep.subr.mxu0 0.0
  %434 = vmatpush1.msra.mxu0 0.0
  %435 = vmatprep.subr.mxu0 0.0
  %436 = vmatpush1.msra.mxu0 0.0
  %437 = vmatprep.subr.mxu0 0.0
  %438 = vmatpush1.msra.mxu0 0.0
  %439 = vmatprep.subr.mxu0 0.0
  %440 = vmatpush1.msra.mxu0 0.0
  %441 = vmatprep.subr.mxu0 0.0
  %442 = vmatpush1.msra.mxu0 %v217
  %443 = vmatprep.subr.mxu0 0.0
  %444 = vmatpush1.msra.mxu0 %v216
  %445 = vmatprep.subr.mxu0 0.0
  %446 = vmatpush1.msra.mxu0 %v215
  %447 = vmatprep.subr.mxu0 0.0
  %448 = vmatpush1.msra.mxu0 %v214
  %449 = vmatprep.subr.mxu0 0.0
  %450 = vmatpush2.msra.mxu0 0.0
  %451 = vmatprep.subr.mxu0 0.0
  %452 = vmatpush2.msra.mxu0 0.0
  %453 = vmatprep.subr.mxu0 0.0
  %454 = vmatpush2.msra.mxu0 0.0
  %455 = vmatprep.subr.mxu0 0.0
  %456 = vmatpush2.msra.mxu0 0.0
  %457 = vmatprep.subr.mxu0 0.0
  %458 = vmatpush2.msra.mxu0 0.0
  %459 = vmatprep.subr.mxu0 0.0
  %460 = vmatpush2.msra.mxu0 0.0
  %461 = vmatprep.subr.mxu0 0.0
  %462 = vmatpush2.msra.mxu0 0.0
  %463 = vmatprep.subr.mxu0 0.0
  %464 = vmatpush2.msra.mxu0 0.0
  %465 = vmatprep.subr.mxu0 0.0
  %466 = vmatpush2.msra.mxu0 0.0
  %467 = vmatprep.subr.mxu0 0.0
  %468 = vmatpush2.msra.mxu0 0.0
  %469 = vmatprep.subr.mxu0 0.0
  %470 = vmatpush2.msra.mxu0 0.0
  %471 = vmatprep.subr.mxu0 0.0
  %472 = vmatpush2.msra.mxu0 0.0
  %473 = vmatprep.subr.mxu0 0.0
  %474 = vmatpush2.msra.mxu0 0.0
  %475 = vmatprep.subr.mxu0 0.0
  %476 = vmatpush2.msra.mxu0 0.0
  %477 = vmatprep.subr.mxu0 0.0
  %478 = vmatpush2.msra.mxu0 0.0
  %479 = vmatprep.subr.mxu0 0.0
  %480 = vmatpush2.msra.mxu0 0.0
  %481 = vmatprep.mubr.f32.mxu0 0.0
  %482 = vmatmul.mubr.f32.gmra.mxu0 %v344
  %v483 = vpop.f32.mrf.mxu0
  %v484 = vadd.f32 0.0, %v483
  %v485 = vpop.f32.mrf.mxu0
  %486 = vdwg.mxu0
  %v487 = vadd.f32 %v416, %v484
  %v488 = vxor.u32 %v487, 2147483648
  %v489 = vmul.f32 %v488, 1.442695
  %v490 = vpow.pop %v489
  %v491 = vadd.f32 %v490, 1.0
  %v492 = vrcp.pop %v491
  %v493 = vmul.f32 1.0, %v492
  %v494 = vtanh.pop %v487
  %v495 = vmul.f32 %v493, 0.0
  %497 = vrot.lane.b32.xlu0 %v494, 64
  %v498 = vpop.permute.xlu0 %497
  %v500 = vmul.f32 %v493, %v498
  %502 = vrot.lane.b32.xlu0 %v500, 32
  %v503 = vpop.permute.xlu0 %502
  %v505 = vadd.f32 %v495, %v503
  %v506 = vtanh.pop %v505
  %508 = vrot.lane.b32.xlu0 %v506, 64
  %v509 = vpop.permute.xlu0 %508
  %v511 = vmul.f32 %v493, %v509
  %v512 = vsel %vm52, 0.0, 0
  %514 = vmatprep.subr.mxu0 0.0
  %515 = vmatpush1.msra.mxu0 0.0
  %516 = vmatprep.subr.mxu0 0.0
  %517 = vmatpush1.msra.mxu0 0.0
  %518 = vmatprep.subr.mxu0 0.0
  %519 = vmatpush1.msra.mxu0 0.0
  %520 = vmatprep.subr.mxu0 0.0
  %521 = vmatpush1.msra.mxu0 0.0
  %522 = vmatprep.subr.mxu0 0.0
  %523 = vmatpush1.msra.mxu0 0.0
  %524 = vmatprep.subr.mxu0 0.0
  %525 = vmatpush1.msra.mxu0 0.0
  %526 = vmatprep.subr.mxu0 0.0
  %527 = vmatpush1.msra.mxu0 0.0
  %528 = vmatprep.subr.mxu0 0.0
  %529 = vmatpush1.msra.mxu0 0.0
  %530 = vmatprep.subr.mxu0 0.0
  %531 = vmatpush1.msra.mxu0 0.0
  %532 = vmatprep.subr.mxu0 0.0
  %533 = vmatpush1.msra.mxu0 0.0
  %534 = vmatprep.subr.mxu0 0.0
  %535 = vmatpush1.msra.mxu0 0.0
  %536 = vmatprep.subr.mxu0 0.0
  %537 = vmatpush1.msra.mxu0 0.0
  %538 = vmatprep.subr.mxu0 0.0
  %539 = vmatpush1.msra.mxu0 0.0
  %540 = vmatprep.subr.mxu0 0.0
  %541 = vmatpush1.msra.mxu0 0.0
  %542 = vmatprep.subr.mxu0 0.0
  %543 = vmatpush1.msra.mxu0 0.0
  %544 = vmatprep.subr.mxu0 0.0
  %545 = vmatpush1.msra.mxu0 %v224
  %546 = vmatprep.subr.mxu0 0.0
  %547 = vmatpush2.msra.mxu0 0.0
  %548 = vmatprep.subr.mxu0 0.0
  %549 = vmatpush2.msra.mxu0 0.0
  %550 = vmatprep.subr.mxu0 0.0
  %551 = vmatpush2.msra.mxu0 0.0
  %552 = vmatprep.subr.mxu0 0.0
  %553 = vmatpush2.msra.mxu0 0.0
  %554 = vmatprep.subr.mxu0 0.0
  %555 = vmatpush2.msra.mxu0 0.0
  %556 = vmatprep.subr.mxu0 0.0
  %557 = vmatpush2.msra.mxu0 0.0
  %558 = vmatprep.subr.mxu0 0.0
  %559 = vmatpush2.msra.mxu0 0.0
  %560 = vmatprep.subr.mxu0 0.0
  %561 = vmatpush2.msra.mxu0 0.0
  %562 = vmatprep.subr.mxu0 0.0
  %563 = vmatpush2.msra.mxu0 0.0
  %564 = vmatprep.subr.mxu0 0.0
  %565 = vmatpush2.msra.mxu0 0.0
  %566 = vmatprep.subr.mxu0 0.0
  %567 = vmatpush2.msra.mxu0 0.0
  %568 = vmatprep.subr.mxu0 0.0
  %569 = vmatpush2.msra.mxu0 0.0
  %570 = vmatprep.subr.mxu0 0.0
  %571 = vmatpush2.msra.mxu0 0.0
  %572 = vmatprep.subr.mxu0 0.0
  %573 = vmatpush2.msra.mxu0 0.0
  %574 = vmatprep.subr.mxu0 0.0
  %575 = vmatpush2.msra.mxu0 0.0
  %576 = vmatprep.subr.mxu0 0.0
  %577 = vmatpush2.msra.mxu0 0.0
  %578 = vmatprep.mubr.f32.mxu0 0.0
  %579 = vmatmul.mubr.f32.gmra.mxu0 %v512
  %v580 = vpop.f32.mrf.mxu0
  %v581 = vadd.f32 0.0, %v580
  %v582 = vpop.f32.mrf.mxu0
  %583 = vdwg.mxu0
  %584 = vmatprep.subr.mxu0 0.0
  %585 = vmatpush1.msra.mxu0 0.0
  %586 = vmatprep.subr.mxu0 0.0
  %587 = vmatpush1.msra.mxu0 0.0
  %588 = vmatprep.subr.mxu0 0.0
  %589 = vmatpush1.msra.mxu0 0.0
  %590 = vmatprep.subr.mxu0 0.0
  %591 = vmatpush1.msra.mxu0 0.0
  %592 = vmatprep.subr.mxu0 0.0
  %593 = vmatpush1.msra.mxu0 0.0
  %594 = vmatprep.subr.mxu0 0.0
  %595 = vmatpush1.msra.mxu0 0.0
  %596 = vmatprep.subr.mxu0 0.0
  %597 = vmatpush1.msra.mxu0 0.0
  %598 = vmatprep.subr.mxu0 0.0
  %599 = vmatpush1.msra.mxu0 0.0
  %600 = vmatprep.subr.mxu0 0.0
  %601 = vmatpush1.msra.mxu0 0.0
  %602 = vmatprep.subr.mxu0 0.0
  %603 = vmatpush1.msra.mxu0 0.0
  %604 = vmatprep.subr.mxu0 0.0
  %605 = vmatpush1.msra.mxu0 0.0
  %606 = vmatprep.subr.mxu0 0.0
  %607 = vmatpush1.msra.mxu0 0.0
  %608 = vmatprep.subr.mxu0 0.0
  %609 = vmatpush1.msra.mxu0 0.0
  %610 = vmatprep.subr.mxu0 0.0
  %611 = vmatpush1.msra.mxu0 0.0
  %612 = vmatprep.subr.mxu0 0.0
  %613 = vmatpush1.msra.mxu0 0.0
  %614 = vmatprep.subr.mxu0 0.0
  %615 = vmatpush1.msra.mxu0 %v223
  %616 = vmatprep.subr.mxu0 0.0
  %617 = vmatpush2.msra.mxu0 0.0
  %618 = vmatprep.subr.mxu0 0.0
  %619 = vmatpush2.msra.mxu0 0.0
  %620 = vmatprep.subr.mxu0 0.0
  %621 = vmatpush2.msra.mxu0 0.0
  %622 = vmatprep.subr.mxu0 0.0
  %623 = vmatpush2.msra.mxu0 0.0
  %624 = vmatprep.subr.mxu0 0.0
  %625 = vmatpush2.msra.mxu0 0.0
  %626 = vmatprep.subr.mxu0 0.0
  %627 = vmatpush2.msra.mxu0 0.0
  %628 = vmatprep.subr.mxu0 0.0
  %629 = vmatpush2.msra.mxu0 0.0
  %630 = vmatprep.subr.mxu0 0.0
  %631 = vmatpush2.msra.mxu0 0.0
  %632 = vmatprep.subr.mxu0 0.0
  %633 = vmatpush2.msra.mxu0 0.0
  %634 = vmatprep.subr.mxu0 0.0
  %635 = vmatpush2.msra.mxu0 0.0
  %636 = vmatprep.subr.mxu0 0.0
  %637 = vmatpush2.msra.mxu0 0.0
  %638 = vmatprep.subr.mxu0 0.0
  %639 = vmatpush2.msra.mxu0 0.0
  %640 = vmatprep.subr.mxu0 0.0
  %641 = vmatpush2.msra.mxu0 0.0
  %642 = vmatprep.subr.mxu0 0.0
  %643 = vmatpush2.msra.mxu0 0.0
  %644 = vmatprep.subr.mxu0 0.0
  %645 = vmatpush2.msra.mxu0 0.0
  %646 = vmatprep.subr.mxu0 0.0
  %647 = vmatpush2.msra.mxu0 0.0
  %648 = vmatprep.mubr.f32.mxu0 0.0
  %649 = vmatmul.mubr.f32.gmra.mxu0 %v512
  %v650 = vpop.f32.mrf.mxu0
  %v651 = vadd.f32 %v581, %v650
  %v652 = vpop.f32.mrf.mxu0
  %653 = vdwg.mxu0
  %655 = vrot.lane.b32.xlu0 %v511, 32
  %v656 = vpop.permute.xlu0 %655
  %v657 = vsel %vm342, %v656, 0
  %659 = vmatprep.subr.mxu0 0.0
  %660 = vmatpush1.msra.mxu0 0.0
  %661 = vmatprep.subr.mxu0 0.0
  %662 = vmatpush1.msra.mxu0 0.0
  %663 = vmatprep.subr.mxu0 0.0
  %664 = vmatpush1.msra.mxu0 0.0
  %665 = vmatprep.subr.mxu0 0.0
  %666 = vmatpush1.msra.mxu0 0.0
  %667 = vmatprep.subr.mxu0 0.0
  %668 = vmatpush1.msra.mxu0 0.0
  %669 = vmatprep.subr.mxu0 0.0
  %670 = vmatpush1.msra.mxu0 0.0
  %671 = vmatprep.subr.mxu0 0.0
  %672 = vmatpush1.msra.mxu0 0.0
  %673 = vmatprep.subr.mxu0 0.0
  %674 = vmatpush1.msra.mxu0 0.0
  %675 = vmatprep.subr.mxu0 0.0
  %676 = vmatpush1.msra.mxu0 0.0
  %677 = vmatprep.subr.mxu0 0.0
  %678 = vmatpush1.msra.mxu0 0.0
  %679 = vmatprep.subr.mxu0 0.0
  %680 = vmatpush1.msra.mxu0 0.0
  %681 = vmatprep.subr.mxu0 0.0
  %682 = vmatpush1.msra.mxu0 0.0
  %683 = vmatprep.subr.mxu0 0.0
  %684 = vmatpush1.msra.mxu0 %v222
  %685 = vmatprep.subr.mxu0 0.0
  %686 = vmatpush1.msra.mxu0 %v221
  %687 = vmatprep.subr.mxu0 0.0
  %688 = vmatpush1.msra.mxu0 %v220
  %689 = vmatprep.subr.mxu0 0.0
  %690 = vmatpush1.msra.mxu0 %v219
  %691 = vmatprep.subr.mxu0 0.0
  %692 = vmatpush2.msra.mxu0 0.0
  %693 = vmatprep.subr.mxu0 0.0
  %694 = vmatpush2.msra.mxu0 0.0
  %695 = vmatprep.subr.mxu0 0.0
  %696 = vmatpush2.msra.mxu0 0.0
  %697 = vmatprep.subr.mxu0 0.0
  %698 = vmatpush2.msra.mxu0 0.0
  %699 = vmatprep.subr.mxu0 0.0
  %700 = vmatpush2.msra.mxu0 0.0
  %701 = vmatprep.subr.mxu0 0.0
  %702 = vmatpush2.msra.mxu0 0.0
  %703 = vmatprep.subr.mxu0 0.0
  %704 = vmatpush2.msra.mxu0 0.0
  %705 = vmatprep.subr.mxu0 0.0
  %706 = vmatpush2.msra.mxu0 0.0
  %707 = vmatprep.subr.mxu0 0.0
  %708 = vmatpush2.msra.mxu0 0.0
  %709 = vmatprep.subr.mxu0 0.0
  %710 = vmatpush2.msra.mxu0 0.0
  %711 = vmatprep.subr.mxu0 0.0
  %712 = vmatpush2.msra.mxu0 0.0
  %713 = vmatprep.subr.mxu0 0.0
  %714 = vmatpush2.msra.mxu0 0.0
  %715 = vmatprep.subr.mxu0 0.0
  %716 = vmatpush2.msra.mxu0 0.0
  %717 = vmatprep.subr.mxu0 0.0
  %718 = vmatpush2.msra.mxu0 0.0
  %719 = vmatprep.subr.mxu0 0.0
  %720 = vmatpush2.msra.mxu0 0.0
  %721 = vmatprep.subr.mxu0 0.0
  %722 = vmatpush2.msra.mxu0 0.0
  %723 = vmatprep.mubr.f32.mxu0 0.0
  %724 = vmatmul.mubr.f32.gmra.mxu0 %v657
  %v725 = vpop.f32.mrf.mxu0
  %v726 = vadd.f32 %v206, %v725
  %v727 = vpop.f32.mrf.mxu0
  %728 = vdwg.mxu0
  %v729 = vadd.f32 %v726, %v651
  %v730 = vtanh.pop %v729
  %731 = vmatprep.subr.mxu0 0.0
  %732 = vmatpush1.msra.mxu0 %v240
  %733 = vmatprep.subr.mxu0 0.0
  %734 = vmatpush1.msra.mxu0 %v239
  %735 = vmatprep.subr.mxu0 0.0
  %736 = vmatpush1.msra.mxu0 %v238
  %737 = vmatprep.subr.mxu0 0.0
  %738 = vmatpush1.msra.mxu0 %v237
  %739 = vmatprep.subr.mxu0 0.0
  %740 = vmatpush1.msra.mxu0 %v236
  %741 = vmatprep.subr.mxu0 0.0
  %742 = vmatpush1.msra.mxu0 %v235
  %743 = vmatprep.subr.mxu0 0.0
  %744 = vmatpush1.msra.mxu0 %v234
  %745 = vmatprep.subr.mxu0 0.0
  %746 = vmatpush1.msra.mxu0 %v233
  %747 = vmatprep.subr.mxu0 0.0
  %748 = vmatpush1.msra.mxu0 %v232
  %749 = vmatprep.subr.mxu0 0.0
  %750 = vmatpush1.msra.mxu0 %v231
  %751 = vmatprep.subr.mxu0 0.0
  %752 = vmatpush1.msra.mxu0 %v230
  %753 = vmatprep.subr.mxu0 0.0
  %754 = vmatpush1.msra.mxu0 %v229
  %755 = vmatprep.subr.mxu0 0.0
  %756 = vmatpush1.msra.mxu0 %v228
  %757 = vmatprep.subr.mxu0 0.0
  %758 = vmatpush1.msra.mxu0 %v227
  %759 = vmatprep.subr.mxu0 0.0
  %760 = vmatpush1.msra.mxu0 %v226
  %761 = vmatprep.subr.mxu0 0.0
  %762 = vmatpush1.msra.mxu0 %v225
  %763 = vmatprep.subr.mxu0 0.0
  %764 = vmatpush2.msra.mxu0 0.0
  %765 = vmatprep.subr.mxu0 0.0
  %766 = vmatpush2.msra.mxu0 0.0
  %767 = vmatprep.subr.mxu0 0.0
  %768 = vmatpush2.msra.mxu0 0.0
  %769 = vmatprep.subr.mxu0 0.0
  %770 = vmatpush2.msra.mxu0 0.0
  %771 = vmatprep.subr.mxu0 0.0
  %772 = vmatpush2.msra.mxu0 0.0
  %773 = vmatprep.subr.mxu0 0.0
  %774 = vmatpush2.msra.mxu0 0.0
  %775 = vmatprep.subr.mxu0 0.0
  %776 = vmatpush2.msra.mxu0 0.0
  %777 = vmatprep.subr.mxu0 0.0
  %778 = vmatpush2.msra.mxu0 0.0
  %779 = vmatprep.subr.mxu0 0.0
  %780 = vmatpush2.msra.mxu0 0.0
  %781 = vmatprep.subr.mxu0 0.0
  %782 = vmatpush2.msra.mxu0 0.0
  %783 = vmatprep.subr.mxu0 0.0
  %784 = vmatpush2.msra.mxu0 0.0
  %785 = vmatprep.subr.mxu0 0.0
  %786 = vmatpush2.msra.mxu0 0.0
  %787 = vmatprep.subr.mxu0 0.0
  %788 = vmatpush2.msra.mxu0 0.0
  %789 = vmatprep.subr.mxu0 0.0
  %790 = vmatpush2.msra.mxu0 0.0
  %791 = vmatprep.subr.mxu0 0.0
  %792 = vmatpush2.msra.mxu0 0.0
  %793 = vmatprep.subr.mxu0 0.0
  %794 = vmatpush2.msra.mxu0 0.0
  %795 = vmatprep.mubr.f32.mxu0 0.0
  %796 = vmatmul.mubr.f32.gmra.mxu0 %v730
  %v797 = vpop.f32.mrf.mxu0
  %v798 = vadd.f32 %v207, %v797
  %v799 = vpop.f32.mrf.mxu0
  %800 = vdwg.mxu0
  %vm801 = vcmask 58368
  %v802 = vsel %vm801, %v798, -inf
  %803 = vmax.xlane.f32.xlu0 %v802
  %v804 = vpop.xlane.xlu0 %803
  %v805 = vsub.f32 %v798, %v804
  %v806 = vmul.f32 %v805, 1.442695
  %v807 = vpow.pop %v806
  %v808 = vsel %vm801, %v807, 0.0
  %809 = vadd.xlane.f32.xlu0 %v808
  %v810 = vpop.xlane.xlu0 %809
  %v811 = vrcp.pop %v810
  %v812 = vmul.f32 %v807, %v811
  %v813 = vlaneseq
  %v814 = vshrl.u32 %v813, 7
  %v815 = vsub.s32 0, %v814
  %v816 = vrot.slane %v812, %v815
  %818 = vbcast.lane.b32.xlu0 %v816, 256
  %v819 = vpop.permute.xlu0 %818
  %v820 = vlaneseq
  %v821 = vshrl.u32 %v820, 7
  %v822 = vsub.s32 1, %v821
  %v823 = vrot.slane %v812, %v822
  %825 = vbcast.lane.b32.xlu0 %v823, 256
  %v826 = vpop.permute.xlu0 %825
  %v827 = vmul.f32 %v819, %v204
  %v828 = vmul.f32 %v826, %v205
  %v829 = vsel %vm342, %v827, 0.0
  %v830 = vrot.slane %v829, 4
  %v831 = vadd.f32 %v829, %v830
  %v832 = vrot.slane %v831, 2
  %v833 = vadd.f32 %v831, %v832
  %v834 = vrot.slane %v833, 1
  %v835 = vadd.f32 %v833, %v834
  %v836 = vsel %vm342, %v828, 0.0
  %v837 = vrot.slane %v836, 4
  %v838 = vadd.f32 %v836, %v837
  %v839 = vrot.slane %v838, 2
  %v840 = vadd.f32 %v838, %v839
  %v841 = vrot.slane %v840, 1
  %v842 = vadd.f32 %v840, %v841
  %v843 = vadd.f32 %v812, 0.0
  %vm846 = vcmask 1041409
  %v847 = vsel %vm846, %v842, %v835
  %v848 = vsel %vm342, %v847, 0
  %850 = vmatprep.subr.mxu0 0.0
  %851 = vmatpush1.msra.mxu0 0.0
  %852 = vmatprep.subr.mxu0 0.0
  %853 = vmatpush1.msra.mxu0 0.0
  %854 = vmatprep.subr.mxu0 0.0
  %855 = vmatpush1.msra.mxu0 0.0
  %856 = vmatprep.subr.mxu0 0.0
  %857 = vmatpush1.msra.mxu0 0.0
  %858 = vmatprep.subr.mxu0 0.0
  %859 = vmatpush1.msra.mxu0 0.0
  %860 = vmatprep.subr.mxu0 0.0
  %861 = vmatpush1.msra.mxu0 0.0
  %862 = vmatprep.subr.mxu0 0.0
  %863 = vmatpush1.msra.mxu0 0.0
  %864 = vmatprep.subr.mxu0 0.0
  %865 = vmatpush1.msra.mxu0 0.0
  %866 = vmatprep.subr.mxu0 0.0
  %867 = vmatpush1.msra.mxu0 0.0
  %868 = vmatprep.subr.mxu0 0.0
  %869 = vmatpush1.msra.mxu0 0.0
  %870 = vmatprep.subr.mxu0 0.0
  %871 = vmatpush1.msra.mxu0 0.0
  %872 = vmatprep.subr.mxu0 0.0
  %873 = vmatpush1.msra.mxu0 0.0
  %874 = vmatprep.subr.mxu0 0.0
  %875 = vmatpush1.msra.mxu0 %v248
  %876 = vmatprep.subr.mxu0 0.0
  %877 = vmatpush1.msra.mxu0 %v247
  %878 = vmatprep.subr.mxu0 0.0
  %879 = vmatpush1.msra.mxu0 %v246
  %880 = vmatprep.subr.mxu0 0.0
  %881 = vmatpush1.msra.mxu0 %v245
  %882 = vmatprep.subr.mxu0 0.0
  %883 = vmatpush2.msra.mxu0 0.0
  %884 = vmatprep.subr.mxu0 0.0
  %885 = vmatpush2.msra.mxu0 0.0
  %886 = vmatprep.subr.mxu0 0.0
  %887 = vmatpush2.msra.mxu0 0.0
  %888 = vmatprep.subr.mxu0 0.0
  %889 = vmatpush2.msra.mxu0 0.0
  %890 = vmatprep.subr.mxu0 0.0
  %891 = vmatpush2.msra.mxu0 0.0
  %892 = vmatprep.subr.mxu0 0.0
  %893 = vmatpush2.msra.mxu0 0.0
  %894 = vmatprep.subr.mxu0 0.0
  %895 = vmatpush2.msra.mxu0 0.0
  %896 = vmatprep.subr.mxu0 0.0
  %897 = vmatpush2.msra.mxu0 0.0
  %898 = vmatprep.subr.mxu0 0.0
  %899 = vmatpush2.msra.mxu0 0.0
  %900 = vmatprep.subr.mxu0 0.0
  %901 = vmatpush2.msra.mxu0 0.0
  %902 = vmatprep.subr.mxu0 0.0
  %903 = vmatpush2.msra.mxu0 0.0
  %904 = vmatprep.subr.mxu0 0.0
  %905 = vmatpush2.msra.mxu0 0.0
  %906 = vmatprep.subr.mxu0 0.0
  %907 = vmatpush2.msra.mxu0 0.0
  %908 = vmatprep.subr.mxu0 0.0
  %909 = vmatpush2.msra.mxu0 0.0
  %910 = vmatprep.subr.mxu0 0.0
  %911 = vmatpush2.msra.mxu0 0.0
  %912 = vmatprep.subr.mxu0 0.0
  %913 = vmatpush2.msra.mxu0 0.0
  %914 = vmatprep.mubr.f32.mxu0 0.0
  %915 = vmatmul.mubr.f32.gmra.mxu0 %v848
  %v916 = vpop.f32.mrf.mxu0
  %v917 = vadd.f32 0.0, %v916
  %v918 = vpop.f32.mrf.mxu0
  %919 = vdwg.mxu0
  %920 = vmatprep.subr.mxu0 0.0
  %921 = vmatpush1.msra.mxu0 0.0
  %922 = vmatprep.subr.mxu0 0.0
  %923 = vmatpush1.msra.mxu0 0.0
  %924 = vmatprep.subr.mxu0 0.0
  %925 = vmatpush1.msra.mxu0 0.0
  %926 = vmatprep.subr.mxu0 0.0
  %927 = vmatpush1.msra.mxu0 0.0
  %928 = vmatprep.subr.mxu0 0.0
  %929 = vmatpush1.msra.mxu0 0.0
  %930 = vmatprep.subr.mxu0 0.0
  %931 = vmatpush1.msra.mxu0 0.0
  %932 = vmatprep.subr.mxu0 0.0
  %933 = vmatpush1.msra.mxu0 0.0
  %934 = vmatprep.subr.mxu0 0.0
  %935 = vmatpush1.msra.mxu0 0.0
  %936 = vmatprep.subr.mxu0 0.0
  %937 = vmatpush1.msra.mxu0 0.0
  %938 = vmatprep.subr.mxu0 0.0
  %939 = vmatpush1.msra.mxu0 0.0
  %940 = vmatprep.subr.mxu0 0.0
  %941 = vmatpush1.msra.mxu0 0.0
  %942 = vmatprep.subr.mxu0 0.0
  %943 = vmatpush1.msra.mxu0 0.0
  %944 = vmatprep.subr.mxu0 0.0
  %945 = vmatpush1.msra.mxu0 %v244
  %946 = vmatprep.subr.mxu0 0.0
  %947 = vmatpush1.msra.mxu0 %v243
  %948 = vmatprep.subr.mxu0 0.0
  %949 = vmatpush1.msra.mxu0 %v242
  %950 = vmatprep.subr.mxu0 0.0
  %951 = vmatpush1.msra.mxu0 %v241
  %952 = vmatprep.subr.mxu0 0.0
  %953 = vmatpush2.msra.mxu0 0.0
  %954 = vmatprep.subr.mxu0 0.0
  %955 = vmatpush2.msra.mxu0 0.0
  %956 = vmatprep.subr.mxu0 0.0
  %957 = vmatpush2.msra.mxu0 0.0
  %958 = vmatprep.subr.mxu0 0.0
  %959 = vmatpush2.msra.mxu0 0.0
  %960 = vmatprep.subr.mxu0 0.0
  %961 = vmatpush2.msra.mxu0 0.0
  %962 = vmatprep.subr.mxu0 0.0
  %963 = vmatpush2.msra.mxu0 0.0
  %964 = vmatprep.subr.mxu0 0.0
  %965 = vmatpush2.msra.mxu0 0.0
  %966 = vmatprep.subr.mxu0 0.0
  %967 = vmatpush2.msra.mxu0 0.0
  %968 = vmatprep.subr.mxu0 0.0
  %969 = vmatpush2.msra.mxu0 0.0
  %970 = vmatprep.subr.mxu0 0.0
  %971 = vmatpush2.msra.mxu0 0.0
  %972 = vmatprep.subr.mxu0 0.0
  %973 = vmatpush2.msra.mxu0 0.0
  %974 = vmatprep.subr.mxu0 0.0
  %975 = vmatpush2.msra.mxu0 0.0
  %976 = vmatprep.subr.mxu0 0.0
  %977 = vmatpush2.msra.mxu0 0.0
  %978 = vmatprep.subr.mxu0 0.0
  %979 = vmatpush2.msra.mxu0 0.0
  %980 = vmatprep.subr.mxu0 0.0
  %981 = vmatpush2.msra.mxu0 0.0
  %982 = vmatprep.subr.mxu0 0.0
  %983 = vmatpush2.msra.mxu0 0.0
  %984 = vmatprep.mubr.f32.mxu0 0.0
  %985 = vmatmul.mubr.f32.gmra.mxu0 %v657
  %v986 = vpop.f32.mrf.mxu0
  %v987 = vadd.f32 %v917, %v986
  %v988 = vpop.f32.mrf.mxu0
  %989 = vdwg.mxu0
  %990 = vmatprep.subr.mxu0 0.0
  %991 = vmatpush1.msra.mxu0 0.0
  %992 = vmatprep.subr.mxu0 0.0
  %993 = vmatpush1.msra.mxu0 0.0
  %994 = vmatprep.subr.mxu0 0.0
  %995 = vmatpush1.msra.mxu0 0.0
  %996 = vmatprep.subr.mxu0 0.0
  %997 = vmatpush1.msra.mxu0 0.0
  %998 = vmatprep.subr.mxu0 0.0
  %999 = vmatpush1.msra.mxu0 0.0
  %1000 = vmatprep.subr.mxu0 0.0
  %1001 = vmatpush1.msra.mxu0 0.0
  %1002 = vmatprep.subr.mxu0 0.0
  %1003 = vmatpush1.msra.mxu0 0.0
  %1004 = vmatprep.subr.mxu0 0.0
  %1005 = vmatpush1.msra.mxu0 0.0
  %1006 = vmatprep.subr.mxu0 0.0
  %1007 = vmatpush1.msra.mxu0 0.0
  %1008 = vmatprep.subr.mxu0 0.0
  %1009 = vmatpush1.msra.mxu0 0.0
  %1010 = vmatprep.subr.mxu0 0.0
  %1011 = vmatpush1.msra.mxu0 0.0
  %1012 = vmatprep.subr.mxu0 0.0
  %1013 = vmatpush1.msra.mxu0 0.0
  %1014 = vmatprep.subr.mxu0 0.0
  %1015 = vmatpush1.msra.mxu0 %v252
  %1016 = vmatprep.subr.mxu0 0.0
  %1017 = vmatpush1.msra.mxu0 %v251
  %1018 = vmatprep.subr.mxu0 0.0
  %1019 = vmatpush1.msra.mxu0 %v250
  %1020 = vmatprep.subr.mxu0 0.0
  %1021 = vmatpush1.msra.mxu0 %v249
  %1022 = vmatprep.subr.mxu0 0.0
  %1023 = vmatpush2.msra.mxu0 0.0
  %1024 = vmatprep.subr.mxu0 0.0
  %1025 = vmatpush2.msra.mxu0 0.0
  %1026 = vmatprep.subr.mxu0 0.0
  %1027 = vmatpush2.msra.mxu0 0.0
  %1028 = vmatprep.subr.mxu0 0.0
  %1029 = vmatpush2.msra.mxu0 0.0
  %1030 = vmatprep.subr.mxu0 0.0
  %1031 = vmatpush2.msra.mxu0 0.0
  %1032 = vmatprep.subr.mxu0 0.0
  %1033 = vmatpush2.msra.mxu0 0.0
  %1034 = vmatprep.subr.mxu0 0.0
  %1035 = vmatpush2.msra.mxu0 0.0
  %1036 = vmatprep.subr.mxu0 0.0
  %1037 = vmatpush2.msra.mxu0 0.0
  %1038 = vmatprep.subr.mxu0 0.0
  %1039 = vmatpush2.msra.mxu0 0.0
  %1040 = vmatprep.subr.mxu0 0.0
  %1041 = vmatpush2.msra.mxu0 0.0
  %1042 = vmatprep.subr.mxu0 0.0
  %1043 = vmatpush2.msra.mxu0 0.0
  %1044 = vmatprep.subr.mxu0 0.0
  %1045 = vmatpush2.msra.mxu0 0.0
  %1046 = vmatprep.subr.mxu0 0.0
  %1047 = vmatpush2.msra.mxu0 0.0
  %1048 = vmatprep.subr.mxu0 0.0
  %1049 = vmatpush2.msra.mxu0 0.0
  %1050 = vmatprep.subr.mxu0 0.0
  %1051 = vmatpush2.msra.mxu0 0.0
  %1052 = vmatprep.subr.mxu0 0.0
  %1053 = vmatpush2.msra.mxu0 0.0
  %1054 = vmatprep.mubr.f32.mxu0 0.0
  %1055 = vmatmul.mubr.f32.gmra.mxu0 %v344
  %v1056 = vpop.f32.mrf.mxu0
  %v1057 = vadd.f32 0.0, %v1056
  %v1058 = vpop.f32.mrf.mxu0
  %1059 = vdwg.mxu0
  %v1060 = vadd.f32 %v987, %v1057
  %v1062 = vlaneseq
  %v1063 = vshrl.u32 %v1062, 7
  %v1064 = vsub.s32 0, %v1063
  %v1065 = vrot.slane %v253, %v1064
  %v1067 = vadd.f32 %v1060, %v1065
  %v1068 = vxor.u32 %v1067, 2147483648
  %v1069 = vmul.f32 %v1068, 1.442695
  %v1070 = vpow.pop %v1069
  %v1071 = vadd.f32 %v1070, 1.0
  %v1072 = vrcp.pop %v1071
  %v1073 = vmul.f32 1.0, %v1072
  %v1074 = vtanh.pop %v1067
  %v1075 = vmul.f32 %v1073, 0.0
  %1077 = vrot.lane.b32.xlu0 %v1074, 64
  %v1078 = vpop.permute.xlu0 %1077
  %v1080 = vmul.f32 %v1073, %v1078
  %1082 = vrot.lane.b32.xlu0 %v1080, 32
  %v1083 = vpop.permute.xlu0 %1082
  %v1085 = vadd.f32 %v1075, %v1083
  %v1086 = vtanh.pop %v1085
  %1088 = vrot.lane.b32.xlu0 %v1086, 64
  %v1089 = vpop.permute.xlu0 %1088
  %v1091 = vmul.f32 %v1073, %v1089
  %1092 = vmatprep.subr.mxu0 0.0
  %1093 = vmatpush1.msra.mxu0 0.0
  %1094 = vmatprep.subr.mxu0 0.0
  %1095 = vmatpush1.msra.mxu0 0.0
  %1096 = vmatprep.subr.mxu0 0.0
  %1097 = vmatpush1.msra.mxu0 0.0
  %1098 = vmatprep.subr.mxu0 0.0
  %1099 = vmatpush1.msra.mxu0 0.0
  %1100 = vmatprep.subr.mxu0 0.0
  %1101 = vmatpush1.msra.mxu0 0.0
  %1102 = vmatprep.subr.mxu0 0.0
  %1103 = vmatpush1.msra.mxu0 0.0
  %1104 = vmatprep.subr.mxu0 0.0
  %1105 = vmatpush1.msra.mxu0 0.0
  %1106 = vmatprep.subr.mxu0 0.0
  %1107 = vmatpush1.msra.mxu0 0.0
  %1108 = vmatprep.subr.mxu0 0.0
  %1109 = vmatpush1.msra.mxu0 0.0
  %1110 = vmatprep.subr.mxu0 0.0
  %1111 = vmatpush1.msra.mxu0 0.0
  %1112 = vmatprep.subr.mxu0 0.0
  %1113 = vmatpush1.msra.mxu0 0.0
  %1114 = vmatprep.subr.mxu0 0.0
  %1115 = vmatpush1.msra.mxu0 0.0
  %1116 = vmatprep.subr.mxu0 0.0
  %1117 = vmatpush1.msra.mxu0 %v261
  %1118 = vmatprep.subr.mxu0 0.0
  %1119 = vmatpush1.msra.mxu0 %v260
  %1120 = vmatprep.subr.mxu0 0.0
  %1121 = vmatpush1.msra.mxu0 %v259
  %1122 = vmatprep.subr.mxu0 0.0
  %1123 = vmatpush1.msra.mxu0 %v258
  %1124 = vmatprep.subr.mxu0 0.0
  %1125 = vmatpush2.msra.mxu0 0.0
  %1126 = vmatprep.subr.mxu0 0.0
  %1127 = vmatpush2.msra.mxu0 0.0
  %1128 = vmatprep.subr.mxu0 0.0
  %1129 = vmatpush2.msra.mxu0 0.0
  %1130 = vmatprep.subr.mxu0 0.0
  %1131 = vmatpush2.msra.mxu0 0.0
  %1132 = vmatprep.subr.mxu0 0.0
  %1133 = vmatpush2.msra.mxu0 0.0
  %1134 = vmatprep.subr.mxu0 0.0
  %1135 = vmatpush2.msra.mxu0 0.0
  %1136 = vmatprep.subr.mxu0 0.0
  %1137 = vmatpush2.msra.mxu0 0.0
  %1138 = vmatprep.subr.mxu0 0.0
  %1139 = vmatpush2.msra.mxu0 0.0
  %1140 = vmatprep.subr.mxu0 0.0
  %1141 = vmatpush2.msra.mxu0 0.0
  %1142 = vmatprep.subr.mxu0 0.0
  %1143 = vmatpush2.msra.mxu0 0.0
  %1144 = vmatprep.subr.mxu0 0.0
  %1145 = vmatpush2.msra.mxu0 0.0
  %1146 = vmatprep.subr.mxu0 0.0
  %1147 = vmatpush2.msra.mxu0 0.0
  %1148 = vmatprep.subr.mxu0 0.0
  %1149 = vmatpush2.msra.mxu0 0.0
  %1150 = vmatprep.subr.mxu0 0.0
  %1151 = vmatpush2.msra.mxu0 0.0
  %1152 = vmatprep.subr.mxu0 0.0
  %1153 = vmatpush2.msra.mxu0 0.0
  %1154 = vmatprep.subr.mxu0 0.0
  %1155 = vmatpush2.msra.mxu0 0.0
  %1156 = vmatprep.mubr.f32.mxu0 0.0
  %1157 = vmatmul.mubr.f32.gmra.mxu0 %v848
  %v1158 = vpop.f32.mrf.mxu0
  %v1159 = vadd.f32 0.0, %v1158
  %v1160 = vpop.f32.mrf.mxu0
  %1161 = vdwg.mxu0
  %1163 = vrot.lane.b32.xlu0 %v1091, 32
  %v1164 = vpop.permute.xlu0 %1163
  %v1165 = vsel %vm342, %v1164, 0
  %1167 = vmatprep.subr.mxu0 0.0
  %1168 = vmatpush1.msra.mxu0 0.0
  %1169 = vmatprep.subr.mxu0 0.0
  %1170 = vmatpush1.msra.mxu0 0.0
  %1171 = vmatprep.subr.mxu0 0.0
  %1172 = vmatpush1.msra.mxu0 0.0
  %1173 = vmatprep.subr.mxu0 0.0
  %1174 = vmatpush1.msra.mxu0 0.0
  %1175 = vmatprep.subr.mxu0 0.0
  %1176 = vmatpush1.msra.mxu0 0.0
  %1177 = vmatprep.subr.mxu0 0.0
  %1178 = vmatpush1.msra.mxu0 0.0
  %1179 = vmatprep.subr.mxu0 0.0
  %1180 = vmatpush1.msra.mxu0 0.0
  %1181 = vmatprep.subr.mxu0 0.0
  %1182 = vmatpush1.msra.mxu0 0.0
  %1183 = vmatprep.subr.mxu0 0.0
  %1184 = vmatpush1.msra.mxu0 0.0
  %1185 = vmatprep.subr.mxu0 0.0
  %1186 = vmatpush1.msra.mxu0 0.0
  %1187 = vmatprep.subr.mxu0 0.0
  %1188 = vmatpush1.msra.mxu0 0.0
  %1189 = vmatprep.subr.mxu0 0.0
  %1190 = vmatpush1.msra.mxu0 0.0
  %1191 = vmatprep.subr.mxu0 0.0
  %1192 = vmatpush1.msra.mxu0 %v257
  %1193 = vmatprep.subr.mxu0 0.0
  %1194 = vmatpush1.msra.mxu0 %v256
  %1195 = vmatprep.subr.mxu0 0.0
  %1196 = vmatpush1.msra.mxu0 %v255
  %1197 = vmatprep.subr.mxu0 0.0
  %1198 = vmatpush1.msra.mxu0 %v254
  %1199 = vmatprep.subr.mxu0 0.0
  %1200 = vmatpush2.msra.mxu0 0.0
  %1201 = vmatprep.subr.mxu0 0.0
  %1202 = vmatpush2.msra.mxu0 0.0
  %1203 = vmatprep.subr.mxu0 0.0
  %1204 = vmatpush2.msra.mxu0 0.0
  %1205 = vmatprep.subr.mxu0 0.0
  %1206 = vmatpush2.msra.mxu0 0.0
  %1207 = vmatprep.subr.mxu0 0.0
  %1208 = vmatpush2.msra.mxu0 0.0
  %1209 = vmatprep.subr.mxu0 0.0
  %1210 = vmatpush2.msra.mxu0 0.0
  %1211 = vmatprep.subr.mxu0 0.0
  %1212 = vmatpush2.msra.mxu0 0.0
  %1213 = vmatprep.subr.mxu0 0.0
  %1214 = vmatpush2.msra.mxu0 0.0
  %1215 = vmatprep.subr.mxu0 0.0
  %1216 = vmatpush2.msra.mxu0 0.0
  %1217 = vmatprep.subr.mxu0 0.0
  %1218 = vmatpush2.msra.mxu0 0.0
  %1219 = vmatprep.subr.mxu0 0.0
  %1220 = vmatpush2.msra.mxu0 0.0
  %1221 = vmatprep.subr.mxu0 0.0
  %1222 = vmatpush2.msra.mxu0 0.0
  %1223 = vmatprep.subr.mxu0 0.0
  %1224 = vmatpush2.msra.mxu0 0.0
  %1225 = vmatprep.subr.mxu0 0.0
  %1226 = vmatpush2.msra.mxu0 0.0
  %1227 = vmatprep.subr.mxu0 0.0
  %1228 = vmatpush2.msra.mxu0 0.0
  %1229 = vmatprep.subr.mxu0 0.0
  %1230 = vmatpush2.msra.mxu0 0.0
  %1231 = vmatprep.mubr.f32.mxu0 0.0
  %1232 = vmatmul.mubr.f32.gmra.mxu0 %v1165
  %v1233 = vpop.f32.mrf.mxu0
  %v1234 = vadd.f32 %v1159, %v1233
  %v1235 = vpop.f32.mrf.mxu0
  %1236 = vdwg.mxu0
  %v1238 = vlaneseq
  %v1239 = vshrl.u32 %v1238, 7
  %v1240 = vsub.s32 0, %v1239
  %v1241 = vrot.slane %v262, %v1240
  %v1243 = vadd.f32 %v1234, %v1241
  %1245 = vrot.lane.b32.xlu0 %v812, 9
  %v1246 = vpop.permute.xlu0 %1245
  %vm1248 = vcmask 72704
  %v1249 = vsel %vm1248, %v1243, %v1246
  %1250 = vmatprep.subr.mxu0 0.0
  %1251 = vmatpush1.msra.mxu0 0.0
  %1252 = vmatprep.subr.mxu0 0.0
  %1253 = vmatpush1.msra.mxu0 0.0
  %1254 = vmatprep.subr.mxu0 0.0
  %1255 = vmatpush1.msra.mxu0 0.0
  %1256 = vmatprep.subr.mxu0 0.0
  %1257 = vmatpush1.msra.mxu0 0.0
  %1258 = vmatprep.subr.mxu0 0.0
  %1259 = vmatpush1.msra.mxu0 0.0
  %1260 = vmatprep.subr.mxu0 0.0
  %1261 = vmatpush1.msra.mxu0 0.0
  %1262 = vmatprep.subr.mxu0 0.0
  %1263 = vmatpush1.msra.mxu0 0.0
  %1264 = vmatprep.subr.mxu0 0.0
  %1265 = vmatpush1.msra.mxu0 0.0
  %1266 = vmatprep.subr.mxu0 0.0
  %1267 = vmatpush1.msra.mxu0 0.0
  %1268 = vmatprep.subr.mxu0 0.0
  %1269 = vmatpush1.msra.mxu0 0.0
  %1270 = vmatprep.subr.mxu0 0.0
  %1271 = vmatpush1.msra.mxu0 0.0
  %1272 = vmatprep.subr.mxu0 0.0
  %1273 = vmatpush1.msra.mxu0 0.0
  %1274 = vmatprep.subr.mxu0 0.0
  %1275 = vmatpush1.msra.mxu0 %v213
  %1276 = vmatprep.subr.mxu0 0.0
  %1277 = vmatpush1.msra.mxu0 %v212
  %1278 = vmatprep.subr.mxu0 0.0
  %1279 = vmatpush1.msra.mxu0 %v211
  %1280 = vmatprep.subr.mxu0 0.0
  %1281 = vmatpush1.msra.mxu0 %v210
  %1282 = vmatprep.subr.mxu0 0.0
  %1283 = vmatpush2.msra.mxu0 0.0
  %1284 = vmatprep.subr.mxu0 0.0
  %1285 = vmatpush2.msra.mxu0 0.0
  %1286 = vmatprep.subr.mxu0 0.0
  %1287 = vmatpush2.msra.mxu0 0.0
  %1288 = vmatprep.subr.mxu0 0.0
  %1289 = vmatpush2.msra.mxu0 0.0
  %1290 = vmatprep.subr.mxu0 0.0
  %1291 = vmatpush2.msra.mxu0 0.0
  %1292 = vmatprep.subr.mxu0 0.0
  %1293 = vmatpush2.msra.mxu0 0.0
  %1294 = vmatprep.subr.mxu0 0.0
  %1295 = vmatpush2.msra.mxu0 0.0
  %1296 = vmatprep.subr.mxu0 0.0
  %1297 = vmatpush2.msra.mxu0 0.0
  %1298 = vmatprep.subr.mxu0 0.0
  %1299 = vmatpush2.msra.mxu0 0.0
  %1300 = vmatprep.subr.mxu0 0.0
  %1301 = vmatpush2.msra.mxu0 0.0
  %1302 = vmatprep.subr.mxu0 0.0
  %1303 = vmatpush2.msra.mxu0 0.0
  %1304 = vmatprep.subr.mxu0 0.0
  %1305 = vmatpush2.msra.mxu0 0.0
  %1306 = vmatprep.subr.mxu0 0.0
  %1307 = vmatpush2.msra.mxu0 0.0
  %1308 = vmatprep.subr.mxu0 0.0
  %1309 = vmatpush2.msra.mxu0 0.0
  %1310 = vmatprep.subr.mxu0 0.0
  %1311 = vmatpush2.msra.mxu0 0.0
  %1312 = vmatprep.subr.mxu0 0.0
  %1313 = vmatpush2.msra.mxu0 0.0
  %1314 = vmatprep.mubr.f32.mxu0 0.0
  %1315 = vmatmul.mubr.f32.gmra.mxu0 %v848
  %v1316 = vpop.f32.mrf.mxu0
  %v1317 = vadd.f32 0.0, %v1316
  %v1318 = vpop.f32.mrf.mxu0
  %1319 = vdwg.mxu0
  %v1321 = vrot.slane %v1317, 6
  %v1323 = vadd.f32 %v339, %v1321
  %1324 = vmatprep.subr.mxu0 0.0
  %1325 = vmatpush1.msra.mxu0 0.0
  %1326 = vmatprep.subr.mxu0 0.0
  %1327 = vmatpush1.msra.mxu0 0.0
  %1328 = vmatprep.subr.mxu0 0.0
  %1329 = vmatpush1.msra.mxu0 0.0
  %1330 = vmatprep.subr.mxu0 0.0
  %1331 = vmatpush1.msra.mxu0 0.0
  %1332 = vmatprep.subr.mxu0 0.0
  %1333 = vmatpush1.msra.mxu0 0.0
  %1334 = vmatprep.subr.mxu0 0.0
  %1335 = vmatpush1.msra.mxu0 0.0
  %1336 = vmatprep.subr.mxu0 0.0
  %1337 = vmatpush1.msra.mxu0 0.0
  %1338 = vmatprep.subr.mxu0 0.0
  %1339 = vmatpush1.msra.mxu0 0.0
  %1340 = vmatprep.subr.mxu0 0.0
  %1341 = vmatpush1.msra.mxu0 0.0
  %1342 = vmatprep.subr.mxu0 0.0
  %1343 = vmatpush1.msra.mxu0 0.0
  %1344 = vmatprep.subr.mxu0 0.0
  %1345 = vmatpush1.msra.mxu0 0.0
  %1346 = vmatprep.subr.mxu0 0.0
  %1347 = vmatpush1.msra.mxu0 0.0
  %1348 = vmatprep.subr.mxu0 0.0
  %1349 = vmatpush1.msra.mxu0 %v217
  %1350 = vmatprep.subr.mxu0 0.0
  %1351 = vmatpush1.msra.mxu0 %v216
  %1352 = vmatprep.subr.mxu0 0.0
  %1353 = vmatpush1.msra.mxu0 %v215
  %1354 = vmatprep.subr.mxu0 0.0
  %1355 = vmatpush1.msra.mxu0 %v214
  %1356 = vmatprep.subr.mxu0 0.0
  %1357 = vmatpush2.msra.mxu0 0.0
  %1358 = vmatprep.subr.mxu0 0.0
  %1359 = vmatpush2.msra.mxu0 0.0
  %1360 = vmatprep.subr.mxu0 0.0
  %1361 = vmatpush2.msra.mxu0 0.0
  %1362 = vmatprep.subr.mxu0 0.0
  %1363 = vmatpush2.msra.mxu0 0.0
  %1364 = vmatprep.subr.mxu0 0.0
  %1365 = vmatpush2.msra.mxu0 0.0
  %1366 = vmatprep.subr.mxu0 0.0
  %1367 = vmatpush2.msra.mxu0 0.0
  %1368 = vmatprep.subr.mxu0 0.0
  %1369 = vmatpush2.msra.mxu0 0.0
  %1370 = vmatprep.subr.mxu0 0.0
  %1371 = vmatpush2.msra.mxu0 0.0
  %1372 = vmatprep.subr.mxu0 0.0
  %1373 = vmatpush2.msra.mxu0 0.0
  %1374 = vmatprep.subr.mxu0 0.0
  %1375 = vmatpush2.msra.mxu0 0.0
  %1376 = vmatprep.subr.mxu0 0.0
  %1377 = vmatpush2.msra.mxu0 0.0
  %1378 = vmatprep.subr.mxu0 0.0
  %1379 = vmatpush2.msra.mxu0 0.0
  %1380 = vmatprep.subr.mxu0 0.0
  %1381 = vmatpush2.msra.mxu0 0.0
  %1382 = vmatprep.subr.mxu0 0.0
  %1383 = vmatpush2.msra.mxu0 0.0
  %1384 = vmatprep.subr.mxu0 0.0
  %1385 = vmatpush2.msra.mxu0 0.0
  %1386 = vmatprep.subr.mxu0 0.0
  %1387 = vmatpush2.msra.mxu0 0.0
  %1388 = vmatprep.mubr.f32.mxu0 0.0
  %1389 = vmatmul.mubr.f32.gmra.mxu0 %v657
  %v1390 = vpop.f32.mrf.mxu0
  %v1391 = vadd.f32 0.0, %v1390
  %v1392 = vpop.f32.mrf.mxu0
  %1393 = vdwg.mxu0
  %v1395 = vrot.slane %v1391, 6
  %v1397 = vadd.f32 %v1323, %v1395
  %v1398 = vxor.u32 %v1397, 2147483648
  %v1399 = vmul.f32 %v1398, 1.442695
  %v1400 = vpow.pop %v1399
  %v1401 = vadd.f32 %v1400, 1.0
  %v1402 = vrcp.pop %v1401
  %v1403 = vmul.f32 1.0, %v1402
  %v1404 = vtanh.pop %v1397
  %v1406 = vrot.slane %v505, 6
  %v1408 = vmul.f32 %v1403, %v1406
  %1410 = vrot.lane.b32.xlu0 %v1404, 64
  %v1411 = vpop.permute.xlu0 %1410
  %v1413 = vmul.f32 %v1403, %v1411
  %1415 = vrot.lane.b32.xlu0 %v1413, 32
  %v1416 = vpop.permute.xlu0 %1415
  %v1418 = vadd.f32 %v1408, %v1416
  %v1419 = vtanh.pop %v1418
  %1421 = vrot.lane.b32.xlu0 %v1419, 64
  %v1422 = vpop.permute.xlu0 %1421
  %v1424 = vmul.f32 %v1403, %v1422
  %v1426 = vsel %vm52, %v843, 0
  %1428 = vmatprep.subr.mxu0 0.0
  %1429 = vmatpush1.msra.mxu0 0.0
  %1430 = vmatprep.subr.mxu0 0.0
  %1431 = vmatpush1.msra.mxu0 0.0
  %1432 = vmatprep.subr.mxu0 0.0
  %1433 = vmatpush1.msra.mxu0 0.0
  %1434 = vmatprep.subr.mxu0 0.0
  %1435 = vmatpush1.msra.mxu0 0.0
  %1436 = vmatprep.subr.mxu0 0.0
  %1437 = vmatpush1.msra.mxu0 0.0
  %1438 = vmatprep.subr.mxu0 0.0
  %1439 = vmatpush1.msra.mxu0 0.0
  %1440 = vmatprep.subr.mxu0 0.0
  %1441 = vmatpush1.msra.mxu0 0.0
  %1442 = vmatprep.subr.mxu0 0.0
  %1443 = vmatpush1.msra.mxu0 0.0
  %1444 = vmatprep.subr.mxu0 0.0
  %1445 = vmatpush1.msra.mxu0 0.0
  %1446 = vmatprep.subr.mxu0 0.0
  %1447 = vmatpush1.msra.mxu0 0.0
  %1448 = vmatprep.subr.mxu0 0.0
  %1449 = vmatpush1.msra.mxu0 0.0
  %1450 = vmatprep.subr.mxu0 0.0
  %1451 = vmatpush1.msra.mxu0 0.0
  %1452 = vmatprep.subr.mxu0 0.0
  %1453 = vmatpush1.msra.mxu0 0.0
  %1454 = vmatprep.subr.mxu0 0.0
  %1455 = vmatpush1.msra.mxu0 0.0
  %1456 = vmatprep.subr.mxu0 0.0
  %1457 = vmatpush1.msra.mxu0 0.0
  %1458 = vmatprep.subr.mxu0 0.0
  %1459 = vmatpush1.msra.mxu0 %v224
  %1460 = vmatprep.subr.mxu0 0.0
  %1461 = vmatpush2.msra.mxu0 0.0
  %1462 = vmatprep.subr.mxu0 0.0
  %1463 = vmatpush2.msra.mxu0 0.0
  %1464 = vmatprep.subr.mxu0 0.0
  %1465 = vmatpush2.msra.mxu0 0.0
  %1466 = vmatprep.subr.mxu0 0.0
  %1467 = vmatpush2.msra.mxu0 0.0
  %1468 = vmatprep.subr.mxu0 0.0
  %1469 = vmatpush2.msra.mxu0 0.0
  %1470 = vmatprep.subr.mxu0 0.0
  %1471 = vmatpush2.msra.mxu0 0.0
  %1472 = vmatprep.subr.mxu0 0.0
  %1473 = vmatpush2.msra.mxu0 0.0
  %1474 = vmatprep.subr.mxu0 0.0
  %1475 = vmatpush2.msra.mxu0 0.0
  %1476 = vmatprep.subr.mxu0 0.0
  %1477 = vmatpush2.msra.mxu0 0.0
  %1478 = vmatprep.subr.mxu0 0.0
  %1479 = vmatpush2.msra.mxu0 0.0
  %1480 = vmatprep.subr.mxu0 0.0
  %1481 = vmatpush2.msra.mxu0 0.0
  %1482 = vmatprep.subr.mxu0 0.0
  %1483 = vmatpush2.msra.mxu0 0.0
  %1484 = vmatprep.subr.mxu0 0.0
  %1485 = vmatpush2.msra.mxu0 0.0
  %1486 = vmatprep.subr.mxu0 0.0
  %1487 = vmatpush2.msra.mxu0 0.0
  %1488 = vmatprep.subr.mxu0 0.0
  %1489 = vmatpush2.msra.mxu0 0.0
  %1490 = vmatprep.subr.mxu0 0.0
  %1491 = vmatpush2.msra.mxu0 0.0
  %1492 = vmatprep.mubr.f32.mxu0 0.0
  %1493 = vmatmul.mubr.f32.gmra.mxu0 %v1426
  %v1494 = vpop.f32.mrf.mxu0
  %v1495 = vadd.f32 0.0, %v1494
  %v1496 = vpop.f32.mrf.mxu0
  %1497 = vdwg.mxu0
  %v1498 = vsel %vm52, %v812, 0
  %1500 = vmatprep.subr.mxu0 0.0
  %1501 = vmatpush1.msra.mxu0 0.0
  %1502 = vmatprep.subr.mxu0 0.0
  %1503 = vmatpush1.msra.mxu0 0.0
  %1504 = vmatprep.subr.mxu0 0.0
  %1505 = vmatpush1.msra.mxu0 0.0
  %1506 = vmatprep.subr.mxu0 0.0
  %1507 = vmatpush1.msra.mxu0 0.0
  %1508 = vmatprep.subr.mxu0 0.0
  %1509 = vmatpush1.msra.mxu0 0.0
  %1510 = vmatprep.subr.mxu0 0.0
  %1511 = vmatpush1.msra.mxu0 0.0
  %1512 = vmatprep.subr.mxu0 0.0
  %1513 = vmatpush1.msra.mxu0 0.0
  %1514 = vmatprep.subr.mxu0 0.0
  %1515 = vmatpush1.msra.mxu0 0.0
  %1516 = vmatprep.subr.mxu0 0.0
  %1517 = vmatpush1.msra.mxu0 0.0
  %1518 = vmatprep.subr.mxu0 0.0
  %1519 = vmatpush1.msra.mxu0 0.0
  %1520 = vmatprep.subr.mxu0 0.0
  %1521 = vmatpush1.msra.mxu0 0.0
  %1522 = vmatprep.subr.mxu0 0.0
  %1523 = vmatpush1.msra.mxu0 0.0
  %1524 = vmatprep.subr.mxu0 0.0
  %1525 = vmatpush1.msra.mxu0 0.0
  %1526 = vmatprep.subr.mxu0 0.0
  %1527 = vmatpush1.msra.mxu0 0.0
  %1528 = vmatprep.subr.mxu0 0.0
  %1529 = vmatpush1.msra.mxu0 0.0
  %1530 = vmatprep.subr.mxu0 0.0
  %1531 = vmatpush1.msra.mxu0 %v223
  %1532 = vmatprep.subr.mxu0 0.0
  %1533 = vmatpush2.msra.mxu0 0.0
  %1534 = vmatprep.subr.mxu0 0.0
  %1535 = vmatpush2.msra.mxu0 0.0
  %1536 = vmatprep.subr.mxu0 0.0
  %1537 = vmatpush2.msra.mxu0 0.0
  %1538 = vmatprep.subr.mxu0 0.0
  %1539 = vmatpush2.msra.mxu0 0.0
  %1540 = vmatprep.subr.mxu0 0.0
  %1541 = vmatpush2.msra.mxu0 0.0
  %1542 = vmatprep.subr.mxu0 0.0
  %1543 = vmatpush2.msra.mxu0 0.0
  %1544 = vmatprep.subr.mxu0 0.0
  %1545 = vmatpush2.msra.mxu0 0.0
  %1546 = vmatprep.subr.mxu0 0.0
  %1547 = vmatpush2.msra.mxu0 0.0
  %1548 = vmatprep.subr.mxu0 0.0
  %1549 = vmatpush2.msra.mxu0 0.0
  %1550 = vmatprep.subr.mxu0 0.0
  %1551 = vmatpush2.msra.mxu0 0.0
  %1552 = vmatprep.subr.mxu0 0.0
  %1553 = vmatpush2.msra.mxu0 0.0
  %1554 = vmatprep.subr.mxu0 0.0
  %1555 = vmatpush2.msra.mxu0 0.0
  %1556 = vmatprep.subr.mxu0 0.0
  %1557 = vmatpush2.msra.mxu0 0.0
  %1558 = vmatprep.subr.mxu0 0.0
  %1559 = vmatpush2.msra.mxu0 0.0
  %1560 = vmatprep.subr.mxu0 0.0
  %1561 = vmatpush2.msra.mxu0 0.0
  %1562 = vmatprep.subr.mxu0 0.0
  %1563 = vmatpush2.msra.mxu0 0.0
  %1564 = vmatprep.mubr.f32.mxu0 0.0
  %1565 = vmatmul.mubr.f32.gmra.mxu0 %v1498
  %v1566 = vpop.f32.mrf.mxu0
  %v1567 = vadd.f32 %v1495, %v1566
  %v1568 = vpop.f32.mrf.mxu0
  %1569 = vdwg.mxu0
  %v1571 = vrot.slane %v1424, 2
  %1572 = vrot.lane.b32.xlu0 %v1571, 32
  %v1573 = vpop.permute.xlu0 %1572
  %v1574 = vsel %vm342, %v1573, 0
  %1576 = vmatprep.subr.mxu0 0.0
  %1577 = vmatpush1.msra.mxu0 0.0
  %1578 = vmatprep.subr.mxu0 0.0
  %1579 = vmatpush1.msra.mxu0 0.0
  %1580 = vmatprep.subr.mxu0 0.0
  %1581 = vmatpush1.msra.mxu0 0.0
  %1582 = vmatprep.subr.mxu0 0.0
  %1583 = vmatpush1.msra.mxu0 0.0
  %1584 = vmatprep.subr.mxu0 0.0
  %1585 = vmatpush1.msra.mxu0 0.0
  %1586 = vmatprep.subr.mxu0 0.0
  %1587 = vmatpush1.msra.mxu0 0.0
  %1588 = vmatprep.subr.mxu0 0.0
  %1589 = vmatpush1.msra.mxu0 0.0
  %1590 = vmatprep.subr.mxu0 0.0
  %1591 = vmatpush1.msra.mxu0 0.0
  %1592 = vmatprep.subr.mxu0 0.0
  %1593 = vmatpush1.msra.mxu0 0.0
  %1594 = vmatprep.subr.mxu0 0.0
  %1595 = vmatpush1.msra.mxu0 0.0
  %1596 = vmatprep.subr.mxu0 0.0
  %1597 = vmatpush1.msra.mxu0 0.0
  %1598 = vmatprep.subr.mxu0 0.0
  %1599 = vmatpush1.msra.mxu0 0.0
  %1600 = vmatprep.subr.mxu0 0.0
  %1601 = vmatpush1.msra.mxu0 %v222
  %1602 = vmatprep.subr.mxu0 0.0
  %1603 = vmatpush1.msra.mxu0 %v221
  %1604 = vmatprep.subr.mxu0 0.0
  %1605 = vmatpush1.msra.mxu0 %v220
  %1606 = vmatprep.subr.mxu0 0.0
  %1607 = vmatpush1.msra.mxu0 %v219
  %1608 = vmatprep.subr.mxu0 0.0
  %1609 = vmatpush2.msra.mxu0 0.0
  %1610 = vmatprep.subr.mxu0 0.0
  %1611 = vmatpush2.msra.mxu0 0.0
  %1612 = vmatprep.subr.mxu0 0.0
  %1613 = vmatpush2.msra.mxu0 0.0
  %1614 = vmatprep.subr.mxu0 0.0
  %1615 = vmatpush2.msra.mxu0 0.0
  %1616 = vmatprep.subr.mxu0 0.0
  %1617 = vmatpush2.msra.mxu0 0.0
  %1618 = vmatprep.subr.mxu0 0.0
  %1619 = vmatpush2.msra.mxu0 0.0
  %1620 = vmatprep.subr.mxu0 0.0
  %1621 = vmatpush2.msra.mxu0 0.0
  %1622 = vmatprep.subr.mxu0 0.0
  %1623 = vmatpush2.msra.mxu0 0.0
  %1624 = vmatprep.subr.mxu0 0.0
  %1625 = vmatpush2.msra.mxu0 0.0
  %1626 = vmatprep.subr.mxu0 0.0
  %1627 = vmatpush2.msra.mxu0 0.0
  %1628 = vmatprep.subr.mxu0 0.0
  %1629 = vmatpush2.msra.mxu0 0.0
  %1630 = vmatprep.subr.mxu0 0.0
  %1631 = vmatpush2.msra.mxu0 0.0
  %1632 = vmatprep.subr.mxu0 0.0
  %1633 = vmatpush2.msra.mxu0 0.0
  %1634 = vmatprep.subr.mxu0 0.0
  %1635 = vmatpush2.msra.mxu0 0.0
  %1636 = vmatprep.subr.mxu0 0.0
  %1637 = vmatpush2.msra.mxu0 0.0
  %1638 = vmatprep.subr.mxu0 0.0
  %1639 = vmatpush2.msra.mxu0 0.0
  %1640 = vmatprep.mubr.f32.mxu0 0.0
  %1641 = vmatmul.mubr.f32.gmra.mxu0 %v1574
  %v1642 = vpop.f32.mrf.mxu0
  %v1643 = vadd.f32 %v206, %v1642
  %v1644 = vpop.f32.mrf.mxu0
  %1645 = vdwg.mxu0
  %v1646 = vadd.f32 %v1643, %v1567
  %v1647 = vtanh.pop %v1646
  %1648 = vmatprep.subr.mxu0 0.0
  %1649 = vmatpush1.msra.mxu0 %v240
  %1650 = vmatprep.subr.mxu0 0.0
  %1651 = vmatpush1.msra.mxu0 %v239
  %1652 = vmatprep.subr.mxu0 0.0
  %1653 = vmatpush1.msra.mxu0 %v238
  %1654 = vmatprep.subr.mxu0 0.0
  %1655 = vmatpush1.msra.mxu0 %v237
  %1656 = vmatprep.subr.mxu0 0.0
  %1657 = vmatpush1.msra.mxu0 %v236
  %1658 = vmatprep.subr.mxu0 0.0
  %1659 = vmatpush1.msra.mxu0 %v235
  %1660 = vmatprep.subr.mxu0 0.0
  %1661 = vmatpush1.msra.mxu0 %v234
  %1662 = vmatprep.subr.mxu0 0.0
  %1663 = vmatpush1.msra.mxu0 %v233
  %1664 = vmatprep.subr.mxu0 0.0
  %1665 = vmatpush1.msra.mxu0 %v232
  %1666 = vmatprep.subr.mxu0 0.0
  %1667 = vmatpush1.msra.mxu0 %v231
  %1668 = vmatprep.subr.mxu0 0.0
  %1669 = vmatpush1.msra.mxu0 %v230
  %1670 = vmatprep.subr.mxu0 0.0
  %1671 = vmatpush1.msra.mxu0 %v229
  %1672 = vmatprep.subr.mxu0 0.0
  %1673 = vmatpush1.msra.mxu0 %v228
  %1674 = vmatprep.subr.mxu0 0.0
  %1675 = vmatpush1.msra.mxu0 %v227
  %1676 = vmatprep.subr.mxu0 0.0
  %1677 = vmatpush1.msra.mxu0 %v226
  %1678 = vmatprep.subr.mxu0 0.0
  %1679 = vmatpush1.msra.mxu0 %v225
  %1680 = vmatprep.subr.mxu0 0.0
  %1681 = vmatpush2.msra.mxu0 0.0
  %1682 = vmatprep.subr.mxu0 0.0
  %1683 = vmatpush2.msra.mxu0 0.0
  %1684 = vmatprep.subr.mxu0 0.0
  %1685 = vmatpush2.msra.mxu0 0.0
  %1686 = vmatprep.subr.mxu0 0.0
  %1687 = vmatpush2.msra.mxu0 0.0
  %1688 = vmatprep.subr.mxu0 0.0
  %1689 = vmatpush2.msra.mxu0 0.0
  %1690 = vmatprep.subr.mxu0 0.0
  %1691 = vmatpush2.msra.mxu0 0.0
  %1692 = vmatprep.subr.mxu0 0.0
  %1693 = vmatpush2.msra.mxu0 0.0
  %1694 = vmatprep.subr.mxu0 0.0
  %1695 = vmatpush2.msra.mxu0 0.0
  %1696 = vmatprep.subr.mxu0 0.0
  %1697 = vmatpush2.msra.mxu0 0.0
  %1698 = vmatprep.subr.mxu0 0.0
  %1699 = vmatpush2.msra.mxu0 0.0
  %1700 = vmatprep.subr.mxu0 0.0
  %1701 = vmatpush2.msra.mxu0 0.0
  %1702 = vmatprep.subr.mxu0 0.0
  %1703 = vmatpush2.msra.mxu0 0.0
  %1704 = vmatprep.subr.mxu0 0.0
  %1705 = vmatpush2.msra.mxu0 0.0
  %1706 = vmatprep.subr.mxu0 0.0
  %1707 = vmatpush2.msra.mxu0 0.0
  %1708 = vmatprep.subr.mxu0 0.0
  %1709 = vmatpush2.msra.mxu0 0.0
  %1710 = vmatprep.subr.mxu0 0.0
  %1711 = vmatpush2.msra.mxu0 0.0
  %1712 = vmatprep.mubr.f32.mxu0 0.0
  %1713 = vmatmul.mubr.f32.gmra.mxu0 %v1647
  %v1714 = vpop.f32.mrf.mxu0
  %v1715 = vadd.f32 %v207, %v1714
  %v1716 = vpop.f32.mrf.mxu0
  %1717 = vdwg.mxu0
  %v1718 = vsel %vm801, %v1715, -inf
  %1719 = vmax.xlane.f32.xlu0 %v1718
  %v1720 = vpop.xlane.xlu0 %1719
  %v1721 = vsub.f32 %v1715, %v1720
  %v1722 = vmul.f32 %v1721, 1.442695
  %v1723 = vpow.pop %v1722
  %v1724 = vsel %vm801, %v1723, 0.0
  %1725 = vadd.xlane.f32.xlu0 %v1724
  %v1726 = vpop.xlane.xlu0 %1725
  %v1727 = vrcp.pop %v1726
  %v1728 = vmul.f32 %v1723, %v1727
  %v1729 = vlaneseq
  %v1730 = vshrl.u32 %v1729, 7
  %v1731 = vsub.s32 0, %v1730
  %v1732 = vrot.slane %v1728, %v1731
  %1734 = vbcast.lane.b32.xlu0 %v1732, 256
  %v1735 = vpop.permute.xlu0 %1734
  %v1736 = vlaneseq
  %v1737 = vshrl.u32 %v1736, 7
  %v1738 = vsub.s32 1, %v1737
  %v1739 = vrot.slane %v1728, %v1738
  %1741 = vbcast.lane.b32.xlu0 %v1739, 256
  %v1742 = vpop.permute.xlu0 %1741
  %v1743 = vmul.f32 %v1735, %v204
  %v1744 = vmul.f32 %v1742, %v205
  %v1745 = vsel %vm342, %v1743, 0.0
  %v1746 = vrot.slane %v1745, 4
  %v1747 = vadd.f32 %v1745, %v1746
  %v1748 = vrot.slane %v1747, 2
  %v1749 = vadd.f32 %v1747, %v1748
  %v1750 = vrot.slane %v1749, 1
  %v1751 = vadd.f32 %v1749, %v1750
  %v1752 = vsel %vm342, %v1744, 0.0
  %v1753 = vrot.slane %v1752, 4
  %v1754 = vadd.f32 %v1752, %v1753
  %v1755 = vrot.slane %v1754, 2
  %v1756 = vadd.f32 %v1754, %v1755
  %v1757 = vrot.slane %v1756, 1
  %v1758 = vadd.f32 %v1756, %v1757
  %v1759 = vadd.f32 %v843, %v1728
  %v1762 = vsel %vm846, %v1758, %v1751
  %v1763 = vsel %vm342, %v1762, 0
  %1765 = vmatprep.subr.mxu0 0.0
  %1766 = vmatpush1.msra.mxu0 0.0
  %1767 = vmatprep.subr.mxu0 0.0
  %1768 = vmatpush1.msra.mxu0 0.0
  %1769 = vmatprep.subr.mxu0 0.0
  %1770 = vmatpush1.msra.mxu0 0.0
  %1771 = vmatprep.subr.mxu0 0.0
  %1772 = vmatpush1.msra.mxu0 0.0
  %1773 = vmatprep.subr.mxu0 0.0
  %1774 = vmatpush1.msra.mxu0 0.0
  %1775 = vmatprep.subr.mxu0 0.0
  %1776 = vmatpush1.msra.mxu0 0.0
  %1777 = vmatprep.subr.mxu0 0.0
  %1778 = vmatpush1.msra.mxu0 0.0
  %1779 = vmatprep.subr.mxu0 0.0
  %1780 = vmatpush1.msra.mxu0 0.0
  %1781 = vmatprep.subr.mxu0 0.0
  %1782 = vmatpush1.msra.mxu0 0.0
  %1783 = vmatprep.subr.mxu0 0.0
  %1784 = vmatpush1.msra.mxu0 0.0
  %1785 = vmatprep.subr.mxu0 0.0
  %1786 = vmatpush1.msra.mxu0 0.0
  %1787 = vmatprep.subr.mxu0 0.0
  %1788 = vmatpush1.msra.mxu0 0.0
  %1789 = vmatprep.subr.mxu0 0.0
  %1790 = vmatpush1.msra.mxu0 %v248
  %1791 = vmatprep.subr.mxu0 0.0
  %1792 = vmatpush1.msra.mxu0 %v247
  %1793 = vmatprep.subr.mxu0 0.0
  %1794 = vmatpush1.msra.mxu0 %v246
  %1795 = vmatprep.subr.mxu0 0.0
  %1796 = vmatpush1.msra.mxu0 %v245
  %1797 = vmatprep.subr.mxu0 0.0
  %1798 = vmatpush2.msra.mxu0 0.0
  %1799 = vmatprep.subr.mxu0 0.0
  %1800 = vmatpush2.msra.mxu0 0.0
  %1801 = vmatprep.subr.mxu0 0.0
  %1802 = vmatpush2.msra.mxu0 0.0
  %1803 = vmatprep.subr.mxu0 0.0
  %1804 = vmatpush2.msra.mxu0 0.0
  %1805 = vmatprep.subr.mxu0 0.0
  %1806 = vmatpush2.msra.mxu0 0.0
  %1807 = vmatprep.subr.mxu0 0.0
  %1808 = vmatpush2.msra.mxu0 0.0
  %1809 = vmatprep.subr.mxu0 0.0
  %1810 = vmatpush2.msra.mxu0 0.0
  %1811 = vmatprep.subr.mxu0 0.0
  %1812 = vmatpush2.msra.mxu0 0.0
  %1813 = vmatprep.subr.mxu0 0.0
  %1814 = vmatpush2.msra.mxu0 0.0
  %1815 = vmatprep.subr.mxu0 0.0
  %1816 = vmatpush2.msra.mxu0 0.0
  %1817 = vmatprep.subr.mxu0 0.0
  %1818 = vmatpush2.msra.mxu0 0.0
  %1819 = vmatprep.subr.mxu0 0.0
  %1820 = vmatpush2.msra.mxu0 0.0
  %1821 = vmatprep.subr.mxu0 0.0
  %1822 = vmatpush2.msra.mxu0 0.0
  %1823 = vmatprep.subr.mxu0 0.0
  %1824 = vmatpush2.msra.mxu0 0.0
  %1825 = vmatprep.subr.mxu0 0.0
  %1826 = vmatpush2.msra.mxu0 0.0
  %1827 = vmatprep.subr.mxu0 0.0
  %1828 = vmatpush2.msra.mxu0 0.0
  %1829 = vmatprep.mubr.f32.mxu0 0.0
  %1830 = vmatmul.mubr.f32.gmra.mxu0 %v1763
  %v1831 = vpop.f32.mrf.mxu0
  %v1832 = vadd.f32 0.0, %v1831
  %v1833 = vpop.f32.mrf.mxu0
  %1834 = vdwg.mxu0
  %1835 = vmatprep.subr.mxu0 0.0
  %1836 = vmatpush1.msra.mxu0 0.0
  %1837 = vmatprep.subr.mxu0 0.0
  %1838 = vmatpush1.msra.mxu0 0.0
  %1839 = vmatprep.subr.mxu0 0.0
  %1840 = vmatpush1.msra.mxu0 0.0
  %1841 = vmatprep.subr.mxu0 0.0
  %1842 = vmatpush1.msra.mxu0 0.0
  %1843 = vmatprep.subr.mxu0 0.0
  %1844 = vmatpush1.msra.mxu0 0.0
  %1845 = vmatprep.subr.mxu0 0.0
  %1846 = vmatpush1.msra.mxu0 0.0
  %1847 = vmatprep.subr.mxu0 0.0
  %1848 = vmatpush1.msra.mxu0 0.0
  %1849 = vmatprep.subr.mxu0 0.0
  %1850 = vmatpush1.msra.mxu0 0.0
  %1851 = vmatprep.subr.mxu0 0.0
  %1852 = vmatpush1.msra.mxu0 0.0
  %1853 = vmatprep.subr.mxu0 0.0
  %1854 = vmatpush1.msra.mxu0 0.0
  %1855 = vmatprep.subr.mxu0 0.0
  %1856 = vmatpush1.msra.mxu0 0.0
  %1857 = vmatprep.subr.mxu0 0.0
  %1858 = vmatpush1.msra.mxu0 0.0
  %1859 = vmatprep.subr.mxu0 0.0
  %1860 = vmatpush1.msra.mxu0 %v244
  %1861 = vmatprep.subr.mxu0 0.0
  %1862 = vmatpush1.msra.mxu0 %v243
  %1863 = vmatprep.subr.mxu0 0.0
  %1864 = vmatpush1.msra.mxu0 %v242
  %1865 = vmatprep.subr.mxu0 0.0
  %1866 = vmatpush1.msra.mxu0 %v241
  %1867 = vmatprep.subr.mxu0 0.0
  %1868 = vmatpush2.msra.mxu0 0.0
  %1869 = vmatprep.subr.mxu0 0.0
  %1870 = vmatpush2.msra.mxu0 0.0
  %1871 = vmatprep.subr.mxu0 0.0
  %1872 = vmatpush2.msra.mxu0 0.0
  %1873 = vmatprep.subr.mxu0 0.0
  %1874 = vmatpush2.msra.mxu0 0.0
  %1875 = vmatprep.subr.mxu0 0.0
  %1876 = vmatpush2.msra.mxu0 0.0
  %1877 = vmatprep.subr.mxu0 0.0
  %1878 = vmatpush2.msra.mxu0 0.0
  %1879 = vmatprep.subr.mxu0 0.0
  %1880 = vmatpush2.msra.mxu0 0.0
  %1881 = vmatprep.subr.mxu0 0.0
  %1882 = vmatpush2.msra.mxu0 0.0
  %1883 = vmatprep.subr.mxu0 0.0
  %1884 = vmatpush2.msra.mxu0 0.0
  %1885 = vmatprep.subr.mxu0 0.0
  %1886 = vmatpush2.msra.mxu0 0.0
  %1887 = vmatprep.subr.mxu0 0.0
  %1888 = vmatpush2.msra.mxu0 0.0
  %1889 = vmatprep.subr.mxu0 0.0
  %1890 = vmatpush2.msra.mxu0 0.0
  %1891 = vmatprep.subr.mxu0 0.0
  %1892 = vmatpush2.msra.mxu0 0.0
  %1893 = vmatprep.subr.mxu0 0.0
  %1894 = vmatpush2.msra.mxu0 0.0
  %1895 = vmatprep.subr.mxu0 0.0
  %1896 = vmatpush2.msra.mxu0 0.0
  %1897 = vmatprep.subr.mxu0 0.0
  %1898 = vmatpush2.msra.mxu0 0.0
  %1899 = vmatprep.mubr.f32.mxu0 0.0
  %1900 = vmatmul.mubr.f32.gmra.mxu0 %v1574
  %v1901 = vpop.f32.mrf.mxu0
  %v1902 = vadd.f32 %v1832, %v1901
  %v1903 = vpop.f32.mrf.mxu0
  %1904 = vdwg.mxu0
  %1905 = vmatprep.subr.mxu0 0.0
  %1906 = vmatpush1.msra.mxu0 0.0
  %1907 = vmatprep.subr.mxu0 0.0
  %1908 = vmatpush1.msra.mxu0 0.0
  %1909 = vmatprep.subr.mxu0 0.0
  %1910 = vmatpush1.msra.mxu0 0.0
  %1911 = vmatprep.subr.mxu0 0.0
  %1912 = vmatpush1.msra.mxu0 0.0
  %1913 = vmatprep.subr.mxu0 0.0
  %1914 = vmatpush1.msra.mxu0 0.0
  %1915 = vmatprep.subr.mxu0 0.0
  %1916 = vmatpush1.msra.mxu0 0.0
  %1917 = vmatprep.subr.mxu0 0.0
  %1918 = vmatpush1.msra.mxu0 0.0
  %1919 = vmatprep.subr.mxu0 0.0
  %1920 = vmatpush1.msra.mxu0 0.0
  %1921 = vmatprep.subr.mxu0 0.0
  %1922 = vmatpush1.msra.mxu0 0.0
  %1923 = vmatprep.subr.mxu0 0.0
  %1924 = vmatpush1.msra.mxu0 0.0
  %1925 = vmatprep.subr.mxu0 0.0
  %1926 = vmatpush1.msra.mxu0 0.0
  %1927 = vmatprep.subr.mxu0 0.0
  %1928 = vmatpush1.msra.mxu0 0.0
  %1929 = vmatprep.subr.mxu0 0.0
  %1930 = vmatpush1.msra.mxu0 %v252
  %1931 = vmatprep.subr.mxu0 0.0
  %1932 = vmatpush1.msra.mxu0 %v251
  %1933 = vmatprep.subr.mxu0 0.0
  %1934 = vmatpush1.msra.mxu0 %v250
  %1935 = vmatprep.subr.mxu0 0.0
  %1936 = vmatpush1.msra.mxu0 %v249
  %1937 = vmatprep.subr.mxu0 0.0
  %1938 = vmatpush2.msra.mxu0 0.0
  %1939 = vmatprep.subr.mxu0 0.0
  %1940 = vmatpush2.msra.mxu0 0.0
  %1941 = vmatprep.subr.mxu0 0.0
  %1942 = vmatpush2.msra.mxu0 0.0
  %1943 = vmatprep.subr.mxu0 0.0
  %1944 = vmatpush2.msra.mxu0 0.0
  %1945 = vmatprep.subr.mxu0 0.0
  %1946 = vmatpush2.msra.mxu0 0.0
  %1947 = vmatprep.subr.mxu0 0.0
  %1948 = vmatpush2.msra.mxu0 0.0
  %1949 = vmatprep.subr.mxu0 0.0
  %1950 = vmatpush2.msra.mxu0 0.0
  %1951 = vmatprep.subr.mxu0 0.0
  %1952 = vmatpush2.msra.mxu0 0.0
  %1953 = vmatprep.subr.mxu0 0.0
  %1954 = vmatpush2.msra.mxu0 0.0
  %1955 = vmatprep.subr.mxu0 0.0
  %1956 = vmatpush2.msra.mxu0 0.0
  %1957 = vmatprep.subr.mxu0 0.0
  %1958 = vmatpush2.msra.mxu0 0.0
  %1959 = vmatprep.subr.mxu0 0.0
  %1960 = vmatpush2.msra.mxu0 0.0
  %1961 = vmatprep.subr.mxu0 0.0
  %1962 = vmatpush2.msra.mxu0 0.0
  %1963 = vmatprep.subr.mxu0 0.0
  %1964 = vmatpush2.msra.mxu0 0.0
  %1965 = vmatprep.subr.mxu0 0.0
  %1966 = vmatpush2.msra.mxu0 0.0
  %1967 = vmatprep.subr.mxu0 0.0
  %1968 = vmatpush2.msra.mxu0 0.0
  %1969 = vmatprep.mubr.f32.mxu0 0.0
  %1970 = vmatmul.mubr.f32.gmra.mxu0 %v1165
  %v1971 = vpop.f32.mrf.mxu0
  %v1972 = vadd.f32 0.0, %v1971
  %v1973 = vpop.f32.mrf.mxu0
  %1974 = vdwg.mxu0
  %v1975 = vadd.f32 %v1902, %v1972
  %v1976 = vadd.f32 %v1975, %v1065
  %v1977 = vxor.u32 %v1976, 2147483648
  %v1978 = vmul.f32 %v1977, 1.442695
  %v1979 = vpow.pop %v1978
  %v1980 = vadd.f32 %v1979, 1.0
  %v1981 = vrcp.pop %v1980
  %v1982 = vmul.f32 1.0, %v1981
  %v1983 = vtanh.pop %v1976
  %v1984 = vmul.f32 %v1982, %v1085
  %1986 = vrot.lane.b32.xlu0 %v1983, 64
  %v1987 = vpop.permute.xlu0 %1986
  %v1989 = vmul.f32 %v1982, %v1987
  %1991 = vrot.lane.b32.xlu0 %v1989, 32
  %v1992 = vpop.permute.xlu0 %1991
  %v1994 = vadd.f32 %v1984, %v1992
  %v1995 = vtanh.pop %v1994
  %1997 = vrot.lane.b32.xlu0 %v1995, 64
  %v1998 = vpop.permute.xlu0 %1997
  %v2000 = vmul.f32 %v1982, %v1998
  %2001 = vmatprep.subr.mxu0 0.0
  %2002 = vmatpush1.msra.mxu0 0.0
  %2003 = vmatprep.subr.mxu0 0.0
  %2004 = vmatpush1.msra.mxu0 0.0
  %2005 = vmatprep.subr.mxu0 0.0
  %2006 = vmatpush1.msra.mxu0 0.0
  %2007 = vmatprep.subr.mxu0 0.0
  %2008 = vmatpush1.msra.mxu0 0.0
  %2009 = vmatprep.subr.mxu0 0.0
  %2010 = vmatpush1.msra.mxu0 0.0
  %2011 = vmatprep.subr.mxu0 0.0
  %2012 = vmatpush1.msra.mxu0 0.0
  %2013 = vmatprep.subr.mxu0 0.0
  %2014 = vmatpush1.msra.mxu0 0.0
  %2015 = vmatprep.subr.mxu0 0.0
  %2016 = vmatpush1.msra.mxu0 0.0
  %2017 = vmatprep.subr.mxu0 0.0
  %2018 = vmatpush1.msra.mxu0 0.0
  %2019 = vmatprep.subr.mxu0 0.0
  %2020 = vmatpush1.msra.mxu0 0.0
  %2021 = vmatprep.subr.mxu0 0.0
  %2022 = vmatpush1.msra.mxu0 0.0
  %2023 = vmatprep.subr.mxu0 0.0
  %2024 = vmatpush1.msra.mxu0 0.0
  %2025 = vmatprep.subr.mxu0 0.0
  %2026 = vmatpush1.msra.mxu0 %v261
  %2027 = vmatprep.subr.mxu0 0.0
  %2028 = vmatpush1.msra.mxu0 %v260
  %2029 = vmatprep.subr.mxu0 0.0
  %2030 = vmatpush1.msra.mxu0 %v259
  %2031 = vmatprep.subr.mxu0 0.0
  %2032 = vmatpush1.msra.mxu0 %v258
  %2033 = vmatprep.subr.mxu0 0.0
  %2034 = vmatpush2.msra.mxu0 0.0
  %2035 = vmatprep.subr.mxu0 0.0
  %2036 = vmatpush2.msra.mxu0 0.0
  %2037 = vmatprep.subr.mxu0 0.0
  %2038 = vmatpush2.msra.mxu0 0.0
  %2039 = vmatprep.subr.mxu0 0.0
  %2040 = vmatpush2.msra.mxu0 0.0
  %2041 = vmatprep.subr.mxu0 0.0
  %2042 = vmatpush2.msra.mxu0 0.0
  %2043 = vmatprep.subr.mxu0 0.0
  %2044 = vmatpush2.msra.mxu0 0.0
  %2045 = vmatprep.subr.mxu0 0.0
  %2046 = vmatpush2.msra.mxu0 0.0
  %2047 = vmatprep.subr.mxu0 0.0
  %2048 = vmatpush2.msra.mxu0 0.0
  %2049 = vmatprep.subr.mxu0 0.0
  %2050 = vmatpush2.msra.mxu0 0.0
  %2051 = vmatprep.subr.mxu0 0.0
  %2052 = vmatpush2.msra.mxu0 0.0
  %2053 = vmatprep.subr.mxu0 0.0
  %2054 = vmatpush2.msra.mxu0 0.0
  %2055 = vmatprep.subr.mxu0 0.0
  %2056 = vmatpush2.msra.mxu0 0.0
  %2057 = vmatprep.subr.mxu0 0.0
  %2058 = vmatpush2.msra.mxu0 0.0
  %2059 = vmatprep.subr.mxu0 0.0
  %2060 = vmatpush2.msra.mxu0 0.0
  %2061 = vmatprep.subr.mxu0 0.0
  %2062 = vmatpush2.msra.mxu0 0.0
  %2063 = vmatprep.subr.mxu0 0.0
  %2064 = vmatpush2.msra.mxu0 0.0
  %2065 = vmatprep.mubr.f32.mxu0 0.0
  %2066 = vmatmul.mubr.f32.gmra.mxu0 %v1763
  %v2067 = vpop.f32.mrf.mxu0
  %v2068 = vadd.f32 0.0, %v2067
  %v2069 = vpop.f32.mrf.mxu0
  %2070 = vdwg.mxu0
  %2072 = vrot.lane.b32.xlu0 %v2000, 32
  %v2073 = vpop.permute.xlu0 %2072
  %v2074 = vsel %vm342, %v2073, 0
  %2076 = vmatprep.subr.mxu0 0.0
  %2077 = vmatpush1.msra.mxu0 0.0
  %2078 = vmatprep.subr.mxu0 0.0
  %2079 = vmatpush1.msra.mxu0 0.0
  %2080 = vmatprep.subr.mxu0 0.0
  %2081 = vmatpush1.msra.mxu0 0.0
  %2082 = vmatprep.subr.mxu0 0.0
  %2083 = vmatpush1.msra.mxu0 0.0
  %2084 = vmatprep.subr.mxu0 0.0
  %2085 = vmatpush1.msra.mxu0 0.0
  %2086 = vmatprep.subr.mxu0 0.0
  %2087 = vmatpush1.msra.mxu0 0.0
  %2088 = vmatprep.subr.mxu0 0.0
  %2089 = vmatpush1.msra.mxu0 0.0
  %2090 = vmatprep.subr.mxu0 0.0
  %2091 = vmatpush1.msra.mxu0 0.0
  %2092 = vmatprep.subr.mxu0 0.0
  %2093 = vmatpush1.msra.mxu0 0.0
  %2094 = vmatprep.subr.mxu0 0.0
  %2095 = vmatpush1.msra.mxu0 0.0
  %2096 = vmatprep.subr.mxu0 0.0
  %2097 = vmatpush1.msra.mxu0 0.0
  %2098 = vmatprep.subr.mxu0 0.0
  %2099 = vmatpush1.msra.mxu0 0.0
  %2100 = vmatprep.subr.mxu0 0.0
  %2101 = vmatpush1.msra.mxu0 %v257
  %2102 = vmatprep.subr.mxu0 0.0
  %2103 = vmatpush1.msra.mxu0 %v256
  %2104 = vmatprep.subr.mxu0 0.0
  %2105 = vmatpush1.msra.mxu0 %v255
  %2106 = vmatprep.subr.mxu0 0.0
  %2107 = vmatpush1.msra.mxu0 %v254
  %2108 = vmatprep.subr.mxu0 0.0
  %2109 = vmatpush2.msra.mxu0 0.0
  %2110 = vmatprep.subr.mxu0 0.0
  %2111 = vmatpush2.msra.mxu0 0.0
  %2112 = vmatprep.subr.mxu0 0.0
  %2113 = vmatpush2.msra.mxu0 0.0
  %2114 = vmatprep.subr.mxu0 0.0
  %2115 = vmatpush2.msra.mxu0 0.0
  %2116 = vmatprep.subr.mxu0 0.0
  %2117 = vmatpush2.msra.mxu0 0.0
  %2118 = vmatprep.subr.mxu0 0.0
  %2119 = vmatpush2.msra.mxu0 0.0
  %2120 = vmatprep.subr.mxu0 0.0
  %2121 = vmatpush2.msra.mxu0 0.0
  %2122 = vmatprep.subr.mxu0 0.0
  %2123 = vmatpush2.msra.mxu0 0.0
  %2124 = vmatprep.subr.mxu0 0.0
  %2125 = vmatpush2.msra.mxu0 0.0
  %2126 = vmatprep.subr.mxu0 0.0
  %2127 = vmatpush2.msra.mxu0 0.0
  %2128 = vmatprep.subr.mxu0 0.0
  %2129 = vmatpush2.msra.mxu0 0.0
  %2130 = vmatprep.subr.mxu0 0.0
  %2131 = vmatpush2.msra.mxu0 0.0
  %2132 = vmatprep.subr.mxu0 0.0
  %2133 = vmatpush2.msra.mxu0 0.0
  %2134 = vmatprep.subr.mxu0 0.0
  %2135 = vmatpush2.msra.mxu0 0.0
  %2136 = vmatprep.subr.mxu0 0.0
  %2137 = vmatpush2.msra.mxu0 0.0
  %2138 = vmatprep.subr.mxu0 0.0
  %2139 = vmatpush2.msra.mxu0 0.0
  %2140 = vmatprep.mubr.f32.mxu0 0.0
  %2141 = vmatmul.mubr.f32.gmra.mxu0 %v2074
  %v2142 = vpop.f32.mrf.mxu0
  %v2143 = vadd.f32 %v2068, %v2142
  %v2144 = vpop.f32.mrf.mxu0
  %2145 = vdwg.mxu0
  %v2146 = vadd.f32 %v2143, %v1241
  %2148 = vrot.lane.b32.xlu0 %v1728, 9
  %v2149 = vpop.permute.xlu0 %2148
  %v2151 = vsel %vm1248, %v2146, %v2149
  %2152 = vmatprep.subr.mxu0 0.0
  %2153 = vmatpush1.msra.mxu0 0.0
  %2154 = vmatprep.subr.mxu0 0.0
  %2155 = vmatpush1.msra.mxu0 0.0
  %2156 = vmatprep.subr.mxu0 0.0
  %2157 = vmatpush1.msra.mxu0 0.0
  %2158 = vmatprep.subr.mxu0 0.0
  %2159 = vmatpush1.msra.mxu0 0.0
  %2160 = vmatprep.subr.mxu0 0.0
  %2161 = vmatpush1.msra.mxu0 0.0
  %2162 = vmatprep.subr.mxu0 0.0
  %2163 = vmatpush1.msra.mxu0 0.0
  %2164 = vmatprep.subr.mxu0 0.0
  %2165 = vmatpush1.msra.mxu0 0.0
  %2166 = vmatprep.subr.mxu0 0.0
  %2167 = vmatpush1.msra.mxu0 0.0
  %2168 = vmatprep.subr.mxu0 0.0
  %2169 = vmatpush1.msra.mxu0 0.0
  %2170 = vmatprep.subr.mxu0 0.0
  %2171 = vmatpush1.msra.mxu0 0.0
  %2172 = vmatprep.subr.mxu0 0.0
  %2173 = vmatpush1.msra.mxu0 0.0
  %2174 = vmatprep.subr.mxu0 0.0
  %2175 = vmatpush1.msra.mxu0 0.0
  %2176 = vmatprep.subr.mxu0 0.0
  %2177 = vmatpush1.msra.mxu0 %v213
  %2178 = vmatprep.subr.mxu0 0.0
  %2179 = vmatpush1.msra.mxu0 %v212
  %2180 = vmatprep.subr.mxu0 0.0
  %2181 = vmatpush1.msra.mxu0 %v211
  %2182 = vmatprep.subr.mxu0 0.0
  %2183 = vmatpush1.msra.mxu0 %v210
  %2184 = vmatprep.subr.mxu0 0.0
  %2185 = vmatpush2.msra.mxu0 0.0
  %2186 = vmatprep.subr.mxu0 0.0
  %2187 = vmatpush2.msra.mxu0 0.0
  %2188 = vmatprep.subr.mxu0 0.0
  %2189 = vmatpush2.msra.mxu0 0.0
  %2190 = vmatprep.subr.mxu0 0.0
  %2191 = vmatpush2.msra.mxu0 0.0
  %2192 = vmatprep.subr.mxu0 0.0
  %2193 = vmatpush2.msra.mxu0 0.0
  %2194 = vmatprep.subr.mxu0 0.0
  %2195 = vmatpush2.msra.mxu0 0.0
  %2196 = vmatprep.subr.mxu0 0.0
  %2197 = vmatpush2.msra.mxu0 0.0
  %2198 = vmatprep.subr.mxu0 0.0
  %2199 = vmatpush2.msra.mxu0 0.0
  %2200 = vmatprep.subr.mxu0 0.0
  %2201 = vmatpush2.msra.mxu0 0.0
  %2202 = vmatprep.subr.mxu0 0.0
  %2203 = vmatpush2.msra.mxu0 0.0
  %2204 = vmatprep.subr.mxu0 0.0
  %2205 = vmatpush2.msra.mxu0 0.0
  %2206 = vmatprep.subr.mxu0 0.0
  %2207 = vmatpush2.msra.mxu0 0.0
  %2208 = vmatprep.subr.mxu0 0.0
  %2209 = vmatpush2.msra.mxu0 0.0
  %2210 = vmatprep.subr.mxu0 0.0
  %2211 = vmatpush2.msra.mxu0 0.0
  %2212 = vmatprep.subr.mxu0 0.0
  %2213 = vmatpush2.msra.mxu0 0.0
  %2214 = vmatprep.subr.mxu0 0.0
  %2215 = vmatpush2.msra.mxu0 0.0
  %2216 = vmatprep.mubr.f32.mxu0 0.0
  %2217 = vmatmul.mubr.f32.gmra.mxu0 %v1763
  %v2218 = vpop.f32.mrf.mxu0
  %v2219 = vadd.f32 0.0, %v2218
  %v2220 = vpop.f32.mrf.mxu0
  %2221 = vdwg.mxu0
  %v2223 = vrot.slane %v2219, 4
  %v2225 = vadd.f32 %v339, %v2223
  %2226 = vmatprep.subr.mxu0 0.0
  %2227 = vmatpush1.msra.mxu0 0.0
  %2228 = vmatprep.subr.mxu0 0.0
  %2229 = vmatpush1.msra.mxu0 0.0
  %2230 = vmatprep.subr.mxu0 0.0
  %2231 = vmatpush1.msra.mxu0 0.0
  %2232 = vmatprep.subr.mxu0 0.0
  %2233 = vmatpush1.msra.mxu0 0.0
  %2234 = vmatprep.subr.mxu0 0.0
  %2235 = vmatpush1.msra.mxu0 0.0
  %2236 = vmatprep.subr.mxu0 0.0
  %2237 = vmatpush1.msra.mxu0 0.0
  %2238 = vmatprep.subr.mxu0 0.0
  %2239 = vmatpush1.msra.mxu0 0.0
  %2240 = vmatprep.subr.mxu0 0.0
  %2241 = vmatpush1.msra.mxu0 0.0
  %2242 = vmatprep.subr.mxu0 0.0
  %2243 = vmatpush1.msra.mxu0 0.0
  %2244 = vmatprep.subr.mxu0 0.0
  %2245 = vmatpush1.msra.mxu0 0.0
  %2246 = vmatprep.subr.mxu0 0.0
  %2247 = vmatpush1.msra.mxu0 0.0
  %2248 = vmatprep.subr.mxu0 0.0
  %2249 = vmatpush1.msra.mxu0 0.0
  %2250 = vmatprep.subr.mxu0 0.0
  %2251 = vmatpush1.msra.mxu0 %v217
  %2252 = vmatprep.subr.mxu0 0.0
  %2253 = vmatpush1.msra.mxu0 %v216
  %2254 = vmatprep.subr.mxu0 0.0
  %2255 = vmatpush1.msra.mxu0 %v215
  %2256 = vmatprep.subr.mxu0 0.0
  %2257 = vmatpush1.msra.mxu0 %v214
  %2258 = vmatprep.subr.mxu0 0.0
  %2259 = vmatpush2.msra.mxu0 0.0
  %2260 = vmatprep.subr.mxu0 0.0
  %2261 = vmatpush2.msra.mxu0 0.0
  %2262 = vmatprep.subr.mxu0 0.0
  %2263 = vmatpush2.msra.mxu0 0.0
  %2264 = vmatprep.subr.mxu0 0.0
  %2265 = vmatpush2.msra.mxu0 0.0
  %2266 = vmatprep.subr.mxu0 0.0
  %2267 = vmatpush2.msra.mxu0 0.0
  %2268 = vmatprep.subr.mxu0 0.0
  %2269 = vmatpush2.msra.mxu0 0.0
  %2270 = vmatprep.subr.mxu0 0.0
  %2271 = vmatpush2.msra.mxu0 0.0
  %2272 = vmatprep.subr.mxu0 0.0
  %2273 = vmatpush2.msra.mxu0 0.0
  %2274 = vmatprep.subr.mxu0 0.0
  %2275 = vmatpush2.msra.mxu0 0.0
  %2276 = vmatprep.subr.mxu0 0.0
  %2277 = vmatpush2.msra.mxu0 0.0
  %2278 = vmatprep.subr.mxu0 0.0
  %2279 = vmatpush2.msra.mxu0 0.0
  %2280 = vmatprep.subr.mxu0 0.0
  %2281 = vmatpush2.msra.mxu0 0.0
  %2282 = vmatprep.subr.mxu0 0.0
  %2283 = vmatpush2.msra.mxu0 0.0
  %2284 = vmatprep.subr.mxu0 0.0
  %2285 = vmatpush2.msra.mxu0 0.0
  %2286 = vmatprep.subr.mxu0 0.0
  %2287 = vmatpush2.msra.mxu0 0.0
  %2288 = vmatprep.subr.mxu0 0.0
  %2289 = vmatpush2.msra.mxu0 0.0
  %2290 = vmatprep.mubr.f32.mxu0 0.0
  %2291 = vmatmul.mubr.f32.gmra.mxu0 %v1574
  %v2292 = vpop.f32.mrf.mxu0
  %v2293 = vadd.f32 0.0, %v2292
  %v2294 = vpop.f32.mrf.mxu0
  %2295 = vdwg.mxu0
  %v2297 = vrot.slane %v2293, 4
  %v2299 = vadd.f32 %v2225, %v2297
  %v2300 = vxor.u32 %v2299, 2147483648
  %v2301 = vmul.f32 %v2300, 1.442695
  %v2302 = vpow.pop %v2301
  %v2303 = vadd.f32 %v2302, 1.0
  %v2304 = vrcp.pop %v2303
  %v2305 = vmul.f32 1.0, %v2304
  %v2306 = vtanh.pop %v2299
  %v2308 = vrot.slane %v1418, 6
  %v2310 = vmul.f32 %v2305, %v2308
  %2312 = vrot.lane.b32.xlu0 %v2306, 64
  %v2313 = vpop.permute.xlu0 %2312
  %v2315 = vmul.f32 %v2305, %v2313
  %2317 = vrot.lane.b32.xlu0 %v2315, 32
  %v2318 = vpop.permute.xlu0 %2317
  %v2320 = vadd.f32 %v2310, %v2318
  %v2321 = vtanh.pop %v2320
  %2323 = vrot.lane.b32.xlu0 %v2321, 64
  %v2324 = vpop.permute.xlu0 %2323
  %v2326 = vmul.f32 %v2305, %v2324
  %v2328 = vsel %vm52, %v1759, 0
  %2330 = vmatprep.subr.mxu0 0.0
  %2331 = vmatpush1.msra.mxu0 0.0
  %2332 = vmatprep.subr.mxu0 0.0
  %2333 = vmatpush1.msra.mxu0 0.0
  %2334 = vmatprep.subr.mxu0 0.0
  %2335 = vmatpush1.msra.mxu0 0.0
  %2336 = vmatprep.subr.mxu0 0.0
  %2337 = vmatpush1.msra.mxu0 0.0
  %2338 = vmatprep.subr.mxu0 0.0
  %2339 = vmatpush1.msra.mxu0 0.0
  %2340 = vmatprep.subr.mxu0 0.0
  %2341 = vmatpush1.msra.mxu0 0.0
  %2342 = vmatprep.subr.mxu0 0.0
  %2343 = vmatpush1.msra.mxu0 0.0
  %2344 = vmatprep.subr.mxu0 0.0
  %2345 = vmatpush1.msra.mxu0 0.0
  %2346 = vmatprep.subr.mxu0 0.0
  %2347 = vmatpush1.msra.mxu0 0.0
  %2348 = vmatprep.subr.mxu0 0.0
  %2349 = vmatpush1.msra.mxu0 0.0
  %2350 = vmatprep.subr.mxu0 0.0
  %2351 = vmatpush1.msra.mxu0 0.0
  %2352 = vmatprep.subr.mxu0 0.0
  %2353 = vmatpush1.msra.mxu0 0.0
  %2354 = vmatprep.subr.mxu0 0.0
  %2355 = vmatpush1.msra.mxu0 0.0
  %2356 = vmatprep.subr.mxu0 0.0
  %2357 = vmatpush1.msra.mxu0 0.0
  %2358 = vmatprep.subr.mxu0 0.0
  %2359 = vmatpush1.msra.mxu0 0.0
  %2360 = vmatprep.subr.mxu0 0.0
  %2361 = vmatpush1.msra.mxu0 %v224
  %2362 = vmatprep.subr.mxu0 0.0
  %2363 = vmatpush2.msra.mxu0 0.0
  %2364 = vmatprep.subr.mxu0 0.0
  %2365 = vmatpush2.msra.mxu0 0.0
  %2366 = vmatprep.subr.mxu0 0.0
  %2367 = vmatpush2.msra.mxu0 0.0
  %2368 = vmatprep.subr.mxu0 0.0
  %2369 = vmatpush2.msra.mxu0 0.0
  %2370 = vmatprep.subr.mxu0 0.0
  %2371 = vmatpush2.msra.mxu0 0.0
  %2372 = vmatprep.subr.mxu0 0.0
  %2373 = vmatpush2.msra.mxu0 0.0
  %2374 = vmatprep.subr.mxu0 0.0
  %2375 = vmatpush2.msra.mxu0 0.0
  %2376 = vmatprep.subr.mxu0 0.0
  %2377 = vmatpush2.msra.mxu0 0.0
  %2378 = vmatprep.subr.mxu0 0.0
  %2379 = vmatpush2.msra.mxu0 0.0
  %2380 = vmatprep.subr.mxu0 0.0
  %2381 = vmatpush2.msra.mxu0 0.0
  %2382 = vmatprep.subr.mxu0 0.0
  %2383 = vmatpush2.msra.mxu0 0.0
  %2384 = vmatprep.subr.mxu0 0.0
  %2385 = vmatpush2.msra.mxu0 0.0
  %2386 = vmatprep.subr.mxu0 0.0
  %2387 = vmatpush2.msra.mxu0 0.0
  %2388 = vmatprep.subr.mxu0 0.0
  %2389 = vmatpush2.msra.mxu0 0.0
  %2390 = vmatprep.subr.mxu0 0.0
  %2391 = vmatpush2.msra.mxu0 0.0
  %2392 = vmatprep.subr.mxu0 0.0
  %2393 = vmatpush2.msra.mxu0 0.0
  %2394 = vmatprep.mubr.f32.mxu0 0.0
  %2395 = vmatmul.mubr.f32.gmra.mxu0 %v2328
  %v2396 = vpop.f32.mrf.mxu0
  %v2397 = vadd.f32 0.0, %v2396
  %v2398 = vpop.f32.mrf.mxu0
  %2399 = vdwg.mxu0
  %v2400 = vsel %vm52, %v1728, 0
  %2402 = vmatprep.subr.mxu0 0.0
  %2403 = vmatpush1.msra.mxu0 0.0
  %2404 = vmatprep.subr.mxu0 0.0
  %2405 = vmatpush1.msra.mxu0 0.0
  %2406 = vmatprep.subr.mxu0 0.0
  %2407 = vmatpush1.msra.mxu0 0.0
  %2408 = vmatprep.subr.mxu0 0.0
  %2409 = vmatpush1.msra.mxu0 0.0
  %2410 = vmatprep.subr.mxu0 0.0
  %2411 = vmatpush1.msra.mxu0 0.0
  %2412 = vmatprep.subr.mxu0 0.0
  %2413 = vmatpush1.msra.mxu0 0.0
  %2414 = vmatprep.subr.mxu0 0.0
  %2415 = vmatpush1.msra.mxu0 0.0
  %2416 = vmatprep.subr.mxu0 0.0
  %2417 = vmatpush1.msra.mxu0 0.0
  %2418 = vmatprep.subr.mxu0 0.0
  %2419 = vmatpush1.msra.mxu0 0.0
  %2420 = vmatprep.subr.mxu0 0.0
  %2421 = vmatpush1.msra.mxu0 0.0
  %2422 = vmatprep.subr.mxu0 0.0
  %2423 = vmatpush1.msra.mxu0 0.0
  %2424 = vmatprep.subr.mxu0 0.0
  %2425 = vmatpush1.msra.mxu0 0.0
  %2426 = vmatprep.subr.mxu0 0.0
  %2427 = vmatpush1.msra.mxu0 0.0
  %2428 = vmatprep.subr.mxu0 0.0
  %2429 = vmatpush1.msra.mxu0 0.0
  %2430 = vmatprep.subr.mxu0 0.0
  %2431 = vmatpush1.msra.mxu0 0.0
  %2432 = vmatprep.subr.mxu0 0.0
  %2433 = vmatpush1.msra.mxu0 %v223
  %2434 = vmatprep.subr.mxu0 0.0
  %2435 = vmatpush2.msra.mxu0 0.0
  %2436 = vmatprep.subr.mxu0 0.0
  %2437 = vmatpush2.msra.mxu0 0.0
  %2438 = vmatprep.subr.mxu0 0.0
  %2439 = vmatpush2.msra.mxu0 0.0
  %2440 = vmatprep.subr.mxu0 0.0
  %2441 = vmatpush2.msra.mxu0 0.0
  %2442 = vmatprep.subr.mxu0 0.0
  %2443 = vmatpush2.msra.mxu0 0.0
  %2444 = vmatprep.subr.mxu0 0.0
  %2445 = vmatpush2.msra.mxu0 0.0
  %2446 = vmatprep.subr.mxu0 0.0
  %2447 = vmatpush2.msra.mxu0 0.0
  %2448 = vmatprep.subr.mxu0 0.0
  %2449 = vmatpush2.msra.mxu0 0.0
  %2450 = vmatprep.subr.mxu0 0.0
  %2451 = vmatpush2.msra.mxu0 0.0
  %2452 = vmatprep.subr.mxu0 0.0
  %2453 = vmatpush2.msra.mxu0 0.0
  %2454 = vmatprep.subr.mxu0 0.0
  %2455 = vmatpush2.msra.mxu0 0.0
  %2456 = vmatprep.subr.mxu0 0.0
  %2457 = vmatpush2.msra.mxu0 0.0
  %2458 = vmatprep.subr.mxu0 0.0
  %2459 = vmatpush2.msra.mxu0 0.0
  %2460 = vmatprep.subr.mxu0 0.0
  %2461 = vmatpush2.msra.mxu0 0.0
  %2462 = vmatprep.subr.mxu0 0.0
  %2463 = vmatpush2.msra.mxu0 0.0
  %2464 = vmatprep.subr.mxu0 0.0
  %2465 = vmatpush2.msra.mxu0 0.0
  %2466 = vmatprep.mubr.f32.mxu0 0.0
  %2467 = vmatmul.mubr.f32.gmra.mxu0 %v2400
  %v2468 = vpop.f32.mrf.mxu0
  %v2469 = vadd.f32 %v2397, %v2468
  %v2470 = vpop.f32.mrf.mxu0
  %2471 = vdwg.mxu0
  %v2473 = vrot.slane %v2326, 4
  %2474 = vrot.lane.b32.xlu0 %v2473, 32
  %v2475 = vpop.permute.xlu0 %2474
  %v2476 = vsel %vm342, %v2475, 0
  %2478 = vmatprep.subr.mxu0 0.0
  %2479 = vmatpush1.msra.mxu0 0.0
  %2480 = vmatprep.subr.mxu0 0.0
  %2481 = vmatpush1.msra.mxu0 0.0
  %2482 = vmatprep.subr.mxu0 0.0
  %2483 = vmatpush1.msra.mxu0 0.0
  %2484 = vmatprep.subr.mxu0 0.0
  %2485 = vmatpush1.msra.mxu0 0.0
  %2486 = vmatprep.subr.mxu0 0.0
  %2487 = vmatpush1.msra.mxu0 0.0
  %2488 = vmatprep.subr.mxu0 0.0
  %2489 = vmatpush1.msra.mxu0 0.0
  %2490 = vmatprep.subr.mxu0 0.0
  %2491 = vmatpush1.msra.mxu0 0.0
  %2492 = vmatprep.subr.mxu0 0.0
  %2493 = vmatpush1.msra.mxu0 0.0
  %2494 = vmatprep.subr.mxu0 0.0
  %2495 = vmatpush1.msra.mxu0 0.0
  %2496 = vmatprep.subr.mxu0 0.0
  %2497 = vmatpush1.msra.mxu0 0.0
  %2498 = vmatprep.subr.mxu0 0.0
  %2499 = vmatpush1.msra.mxu0 0.0
  %2500 = vmatprep.subr.mxu0 0.0
  %2501 = vmatpush1.msra.mxu0 0.0
  %2502 = vmatprep.subr.mxu0 0.0
  %2503 = vmatpush1.msra.mxu0 %v222
  %2504 = vmatprep.subr.mxu0 0.0
  %2505 = vmatpush1.msra.mxu0 %v221
  %2506 = vmatprep.subr.mxu0 0.0
  %2507 = vmatpush1.msra.mxu0 %v220
  %2508 = vmatprep.subr.mxu0 0.0
  %2509 = vmatpush1.msra.mxu0 %v219
  %2510 = vmatprep.subr.mxu0 0.0
  %2511 = vmatpush2.msra.mxu0 0.0
  %2512 = vmatprep.subr.mxu0 0.0
  %2513 = vmatpush2.msra.mxu0 0.0
  %2514 = vmatprep.subr.mxu0 0.0
  %2515 = vmatpush2.msra.mxu0 0.0
  %2516 = vmatprep.subr.mxu0 0.0
  %2517 = vmatpush2.msra.mxu0 0.0
  %2518 = vmatprep.subr.mxu0 0.0
  %2519 = vmatpush2.msra.mxu0 0.0
  %2520 = vmatprep.subr.mxu0 0.0
  %2521 = vmatpush2.msra.mxu0 0.0
  %2522 = vmatprep.subr.mxu0 0.0
  %2523 = vmatpush2.msra.mxu0 0.0
  %2524 = vmatprep.subr.mxu0 0.0
  %2525 = vmatpush2.msra.mxu0 0.0
  %2526 = vmatprep.subr.mxu0 0.0
  %2527 = vmatpush2.msra.mxu0 0.0
  %2528 = vmatprep.subr.mxu0 0.0
  %2529 = vmatpush2.msra.mxu0 0.0
  %2530 = vmatprep.subr.mxu0 0.0
  %2531 = vmatpush2.msra.mxu0 0.0
  %2532 = vmatprep.subr.mxu0 0.0
  %2533 = vmatpush2.msra.mxu0 0.0
  %2534 = vmatprep.subr.mxu0 0.0
  %2535 = vmatpush2.msra.mxu0 0.0
  %2536 = vmatprep.subr.mxu0 0.0
  %2537 = vmatpush2.msra.mxu0 0.0
  %2538 = vmatprep.subr.mxu0 0.0
  %2539 = vmatpush2.msra.mxu0 0.0
  %2540 = vmatprep.subr.mxu0 0.0
  %2541 = vmatpush2.msra.mxu0 0.0
  %2542 = vmatprep.mubr.f32.mxu0 0.0
  %2543 = vmatmul.mubr.f32.gmra.mxu0 %v2476
  %v2544 = vpop.f32.mrf.mxu0
  %v2545 = vadd.f32 %v206, %v2544
  %v2546 = vpop.f32.mrf.mxu0
  %2547 = vdwg.mxu0
  %v2548 = vadd.f32 %v2545, %v2469
  %v2549 = vtanh.pop %v2548
  %2550 = vmatprep.subr.mxu0 0.0
  %2551 = vmatpush1.msra.mxu0 %v240
  %2552 = vmatprep.subr.mxu0 0.0
  %2553 = vmatpush1.msra.mxu0 %v239
  %2554 = vmatprep.subr.mxu0 0.0
  %2555 = vmatpush1.msra.mxu0 %v238
  %2556 = vmatprep.subr.mxu0 0.0
  %2557 = vmatpush1.msra.mxu0 %v237
  %2558 = vmatprep.subr.mxu0 0.0
  %2559 = vmatpush1.msra.mxu0 %v236
  %2560 = vmatprep.subr.mxu0 0.0
  %2561 = vmatpush1.msra.mxu0 %v235
  %2562 = vmatprep.subr.mxu0 0.0
  %2563 = vmatpush1.msra.mxu0 %v234
  %2564 = vmatprep.subr.mxu0 0.0
  %2565 = vmatpush1.msra.mxu0 %v233
  %2566 = vmatprep.subr.mxu0 0.0
  %2567 = vmatpush1.msra.mxu0 %v232
  %2568 = vmatprep.subr.mxu0 0.0
  %2569 = vmatpush1.msra.mxu0 %v231
  %2570 = vmatprep.subr.mxu0 0.0
  %2571 = vmatpush1.msra.mxu0 %v230
  %2572 = vmatprep.subr.mxu0 0.0
  %2573 = vmatpush1.msra.mxu0 %v229
  %2574 = vmatprep.subr.mxu0 0.0
  %2575 = vmatpush1.msra.mxu0 %v228
  %2576 = vmatprep.subr.mxu0 0.0
  %2577 = vmatpush1.msra.mxu0 %v227
  %2578 = vmatprep.subr.mxu0 0.0
  %2579 = vmatpush1.msra.mxu0 %v226
  %2580 = vmatprep.subr.mxu0 0.0
  %2581 = vmatpush1.msra.mxu0 %v225
  %2582 = vmatprep.subr.mxu0 0.0
  %2583 = vmatpush2.msra.mxu0 0.0
  %2584 = vmatprep.subr.mxu0 0.0
  %2585 = vmatpush2.msra.mxu0 0.0
  %2586 = vmatprep.subr.mxu0 0.0
  %2587 = vmatpush2.msra.mxu0 0.0
  %2588 = vmatprep.subr.mxu0 0.0
  %2589 = vmatpush2.msra.mxu0 0.0
  %2590 = vmatprep.subr.mxu0 0.0
  %2591 = vmatpush2.msra.mxu0 0.0
  %2592 = vmatprep.subr.mxu0 0.0
  %2593 = vmatpush2.msra.mxu0 0.0
  %2594 = vmatprep.subr.mxu0 0.0
  %2595 = vmatpush2.msra.mxu0 0.0
  %2596 = vmatprep.subr.mxu0 0.0
  %2597 = vmatpush2.msra.mxu0 0.0
  %2598 = vmatprep.subr.mxu0 0.0
  %2599 = vmatpush2.msra.mxu0 0.0
  %2600 = vmatprep.subr.mxu0 0.0
  %2601 = vmatpush2.msra.mxu0 0.0
  %2602 = vmatprep.subr.mxu0 0.0
  %2603 = vmatpush2.msra.mxu0 0.0
  %2604 = vmatprep.subr.mxu0 0.0
  %2605 = vmatpush2.msra.mxu0 0.0
  %2606 = vmatprep.subr.mxu0 0.0
  %2607 = vmatpush2.msra.mxu0 0.0
  %2608 = vmatprep.subr.mxu0 0.0
  %2609 = vmatpush2.msra.mxu0 0.0
  %2610 = vmatprep.subr.mxu0 0.0
  %2611 = vmatpush2.msra.mxu0 0.0
  %2612 = vmatprep.subr.mxu0 0.0
  %2613 = vmatpush2.msra.mxu0 0.0
  %2614 = vmatprep.mubr.f32.mxu0 0.0
  %2615 = vmatmul.mubr.f32.gmra.mxu0 %v2549
  %v2616 = vpop.f32.mrf.mxu0
  %v2617 = vadd.f32 %v207, %v2616
  %v2618 = vpop.f32.mrf.mxu0
  %2619 = vdwg.mxu0
  %v2620 = vsel %vm801, %v2617, -inf
  %2621 = vmax.xlane.f32.xlu0 %v2620
  %v2622 = vpop.xlane.xlu0 %2621
  %v2623 = vsub.f32 %v2617, %v2622
  %v2624 = vmul.f32 %v2623, 1.442695
  %v2625 = vpow.pop %v2624
  %v2626 = vsel %vm801, %v2625, 0.0
  %2627 = vadd.xlane.f32.xlu0 %v2626
  %v2628 = vpop.xlane.xlu0 %2627
  %v2629 = vrcp.pop %v2628
  %v2630 = vmul.f32 %v2625, %v2629
  %v2631 = vlaneseq
  %v2632 = vshrl.u32 %v2631, 7
  %v2633 = vsub.s32 0, %v2632
  %v2634 = vrot.slane %v2630, %v2633
  %2636 = vbcast.lane.b32.xlu0 %v2634, 256
  %v2637 = vpop.permute.xlu0 %2636
  %v2638 = vlaneseq
  %v2639 = vshrl.u32 %v2638, 7
  %v2640 = vsub.s32 1, %v2639
  %v2641 = vrot.slane %v2630, %v2640
  %2643 = vbcast.lane.b32.xlu0 %v2641, 256
  %v2644 = vpop.permute.xlu0 %2643
  %v2645 = vmul.f32 %v2637, %v204
  %v2646 = vmul.f32 %v2644, %v205
  %v2647 = vsel %vm342, %v2645, 0.0
  %v2648 = vrot.slane %v2647, 4
  %v2649 = vadd.f32 %v2647, %v2648
  %v2650 = vrot.slane %v2649, 2
  %v2651 = vadd.f32 %v2649, %v2650
  %v2652 = vrot.slane %v2651, 1
  %v2653 = vadd.f32 %v2651, %v2652
  %v2654 = vsel %vm342, %v2646, 0.0
  %v2655 = vrot.slane %v2654, 4
  %v2656 = vadd.f32 %v2654, %v2655
  %v2657 = vrot.slane %v2656, 2
  %v2658 = vadd.f32 %v2656, %v2657
  %v2659 = vrot.slane %v2658, 1
  %v2660 = vadd.f32 %v2658, %v2659
  %v2661 = vadd.f32 %v1759, %v2630
  %v2664 = vsel %vm846, %v2660, %v2653
  %v2665 = vsel %vm342, %v2664, 0
  %2667 = vmatprep.subr.mxu0 0.0
  %2668 = vmatpush1.msra.mxu0 0.0
  %2669 = vmatprep.subr.mxu0 0.0
  %2670 = vmatpush1.msra.mxu0 0.0
  %2671 = vmatprep.subr.mxu0 0.0
  %2672 = vmatpush1.msra.mxu0 0.0
  %2673 = vmatprep.subr.mxu0 0.0
  %2674 = vmatpush1.msra.mxu0 0.0
  %2675 = vmatprep.subr.mxu0 0.0
  %2676 = vmatpush1.msra.mxu0 0.0
  %2677 = vmatprep.subr.mxu0 0.0
  %2678 = vmatpush1.msra.mxu0 0.0
  %2679 = vmatprep.subr.mxu0 0.0
  %2680 = vmatpush1.msra.mxu0 0.0
  %2681 = vmatprep.subr.mxu0 0.0
  %2682 = vmatpush1.msra.mxu0 0.0
  %2683 = vmatprep.subr.mxu0 0.0
  %2684 = vmatpush1.msra.mxu0 0.0
  %2685 = vmatprep.subr.mxu0 0.0
  %2686 = vmatpush1.msra.mxu0 0.0
  %2687 = vmatprep.subr.mxu0 0.0
  %2688 = vmatpush1.msra.mxu0 0.0
  %2689 = vmatprep.subr.mxu0 0.0
  %2690 = vmatpush1.msra.mxu0 0.0
  %2691 = vmatprep.subr.mxu0 0.0
  %2692 = vmatpush1.msra.mxu0 %v248
  %2693 = vmatprep.subr.mxu0 0.0
  %2694 = vmatpush1.msra.mxu0 %v247
  %2695 = vmatprep.subr.mxu0 0.0
  %2696 = vmatpush1.msra.mxu0 %v246
  %2697 = vmatprep.subr.mxu0 0.0
  %2698 = vmatpush1.msra.mxu0 %v245
  %2699 = vmatprep.subr.mxu0 0.0
  %2700 = vmatpush2.msra.mxu0 0.0
  %2701 = vmatprep.subr.mxu0 0.0
  %2702 = vmatpush2.msra.mxu0 0.0
  %2703 = vmatprep.subr.mxu0 0.0
  %2704 = vmatpush2.msra.mxu0 0.0
  %2705 = vmatprep.subr.mxu0 0.0
  %2706 = vmatpush2.msra.mxu0 0.0
  %2707 = vmatprep.subr.mxu0 0.0
  %2708 = vmatpush2.msra.mxu0 0.0
  %2709 = vmatprep.subr.mxu0 0.0
  %2710 = vmatpush2.msra.mxu0 0.0
  %2711 = vmatprep.subr.mxu0 0.0
  %2712 = vmatpush2.msra.mxu0 0.0
  %2713 = vmatprep.subr.mxu0 0.0
  %2714 = vmatpush2.msra.mxu0 0.0
  %2715 = vmatprep.subr.mxu0 0.0
  %2716 = vmatpush2.msra.mxu0 0.0
  %2717 = vmatprep.subr.mxu0 0.0
  %2718 = vmatpush2.msra.mxu0 0.0
  %2719 = vmatprep.subr.mxu0 0.0
  %2720 = vmatpush2.msra.mxu0 0.0
  %2721 = vmatprep.subr.mxu0 0.0
  %2722 = vmatpush2.msra.mxu0 0.0
  %2723 = vmatprep.subr.mxu0 0.0
  %2724 = vmatpush2.msra.mxu0 0.0
  %2725 = vmatprep.subr.mxu0 0.0
  %2726 = vmatpush2.msra.mxu0 0.0
  %2727 = vmatprep.subr.mxu0 0.0
  %2728 = vmatpush2.msra.mxu0 0.0
  %2729 = vmatprep.subr.mxu0 0.0
  %2730 = vmatpush2.msra.mxu0 0.0
  %2731 = vmatprep.mubr.f32.mxu0 0.0
  %2732 = vmatmul.mubr.f32.gmra.mxu0 %v2665
  %v2733 = vpop.f32.mrf.mxu0
  %v2734 = vadd.f32 0.0, %v2733
  %v2735 = vpop.f32.mrf.mxu0
  %2736 = vdwg.mxu0
  %2737 = vmatprep.subr.mxu0 0.0
  %2738 = vmatpush1.msra.mxu0 0.0
  %2739 = vmatprep.subr.mxu0 0.0
  %2740 = vmatpush1.msra.mxu0 0.0
  %2741 = vmatprep.subr.mxu0 0.0
  %2742 = vmatpush1.msra.mxu0 0.0
  %2743 = vmatprep.subr.mxu0 0.0
  %2744 = vmatpush1.msra.mxu0 0.0
  %2745 = vmatprep.subr.mxu0 0.0
  %2746 = vmatpush1.msra.mxu0 0.0
  %2747 = vmatprep.subr.mxu0 0.0
  %2748 = vmatpush1.msra.mxu0 0.0
  %2749 = vmatprep.subr.mxu0 0.0
  %2750 = vmatpush1.msra.mxu0 0.0
  %2751 = vmatprep.subr.mxu0 0.0
  %2752 = vmatpush1.msra.mxu0 0.0
  %2753 = vmatprep.subr.mxu0 0.0
  %2754 = vmatpush1.msra.mxu0 0.0
  %2755 = vmatprep.subr.mxu0 0.0
  %2756 = vmatpush1.msra.mxu0 0.0
  %2757 = vmatprep.subr.mxu0 0.0
  %2758 = vmatpush1.msra.mxu0 0.0
  %2759 = vmatprep.subr.mxu0 0.0
  %2760 = vmatpush1.msra.mxu0 0.0
  %2761 = vmatprep.subr.mxu0 0.0
  %2762 = vmatpush1.msra.mxu0 %v244
  %2763 = vmatprep.subr.mxu0 0.0
  %2764 = vmatpush1.msra.mxu0 %v243
  %2765 = vmatprep.subr.mxu0 0.0
  %2766 = vmatpush1.msra.mxu0 %v242
  %2767 = vmatprep.subr.mxu0 0.0
  %2768 = vmatpush1.msra.mxu0 %v241
  %2769 = vmatprep.subr.mxu0 0.0
  %2770 = vmatpush2.msra.mxu0 0.0
  %2771 = vmatprep.subr.mxu0 0.0
  %2772 = vmatpush2.msra.mxu0 0.0
  %2773 = vmatprep.subr.mxu0 0.0
  %2774 = vmatpush2.msra.mxu0 0.0
  %2775 = vmatprep.subr.mxu0 0.0
  %2776 = vmatpush2.msra.mxu0 0.0
  %2777 = vmatprep.subr.mxu0 0.0
  %2778 = vmatpush2.msra.mxu0 0.0
  %2779 = vmatprep.subr.mxu0 0.0
  %2780 = vmatpush2.msra.mxu0 0.0
  %2781 = vmatprep.subr.mxu0 0.0
  %2782 = vmatpush2.msra.mxu0 0.0
  %2783 = vmatprep.subr.mxu0 0.0
  %2784 = vmatpush2.msra.mxu0 0.0
  %2785 = vmatprep.subr.mxu0 0.0
  %2786 = vmatpush2.msra.mxu0 0.0
  %2787 = vmatprep.subr.mxu0 0.0
  %2788 = vmatpush2.msra.mxu0 0.0
  %2789 = vmatprep.subr.mxu0 0.0
  %2790 = vmatpush2.msra.mxu0 0.0
  %2791 = vmatprep.subr.mxu0 0.0
  %2792 = vmatpush2.msra.mxu0 0.0
  %2793 = vmatprep.subr.mxu0 0.0
  %2794 = vmatpush2.msra.mxu0 0.0
  %2795 = vmatprep.subr.mxu0 0.0
  %2796 = vmatpush2.msra.mxu0 0.0
  %2797 = vmatprep.subr.mxu0 0.0
  %2798 = vmatpush2.msra.mxu0 0.0
  %2799 = vmatprep.subr.mxu0 0.0
  %2800 = vmatpush2.msra.mxu0 0.0
  %2801 = vmatprep.mubr.f32.mxu0 0.0
  %2802 = vmatmul.mubr.f32.gmra.mxu0 %v2476
  %v2803 = vpop.f32.mrf.mxu0
  %v2804 = vadd.f32 %v2734, %v2803
  %v2805 = vpop.f32.mrf.mxu0
  %2806 = vdwg.mxu0
  %2807 = vmatprep.subr.mxu0 0.0
  %2808 = vmatpush1.msra.mxu0 0.0
  %2809 = vmatprep.subr.mxu0 0.0
  %2810 = vmatpush1.msra.mxu0 0.0
  %2811 = vmatprep.subr.mxu0 0.0
  %2812 = vmatpush1.msra.mxu0 0.0
  %2813 = vmatprep.subr.mxu0 0.0
  %2814 = vmatpush1.msra.mxu0 0.0
  %2815 = vmatprep.subr.mxu0 0.0
  %2816 = vmatpush1.msra.mxu0 0.0
  %2817 = vmatprep.subr.mxu0 0.0
  %2818 = vmatpush1.msra.mxu0 0.0
  %2819 = vmatprep.subr.mxu0 0.0
  %2820 = vmatpush1.msra.mxu0 0.0
  %2821 = vmatprep.subr.mxu0 0.0
  %2822 = vmatpush1.msra.mxu0 0.0
  %2823 = vmatprep.subr.mxu0 0.0
  %2824 = vmatpush1.msra.mxu0 0.0
  %2825 = vmatprep.subr.mxu0 0.0
  %2826 = vmatpush1.msra.mxu0 0.0
  %2827 = vmatprep.subr.mxu0 0.0
  %2828 = vmatpush1.msra.mxu0 0.0
  %2829 = vmatprep.subr.mxu0 0.0
  %2830 = vmatpush1.msra.mxu0 0.0
  %2831 = vmatprep.subr.mxu0 0.0
  %2832 = vmatpush1.msra.mxu0 %v252
  %2833 = vmatprep.subr.mxu0 0.0
  %2834 = vmatpush1.msra.mxu0 %v251
  %2835 = vmatprep.subr.mxu0 0.0
  %2836 = vmatpush1.msra.mxu0 %v250
  %2837 = vmatprep.subr.mxu0 0.0
  %2838 = vmatpush1.msra.mxu0 %v249
  %2839 = vmatprep.subr.mxu0 0.0
  %2840 = vmatpush2.msra.mxu0 0.0
  %2841 = vmatprep.subr.mxu0 0.0
  %2842 = vmatpush2.msra.mxu0 0.0
  %2843 = vmatprep.subr.mxu0 0.0
  %2844 = vmatpush2.msra.mxu0 0.0
  %2845 = vmatprep.subr.mxu0 0.0
  %2846 = vmatpush2.msra.mxu0 0.0
  %2847 = vmatprep.subr.mxu0 0.0
  %2848 = vmatpush2.msra.mxu0 0.0
  %2849 = vmatprep.subr.mxu0 0.0
  %2850 = vmatpush2.msra.mxu0 0.0
  %2851 = vmatprep.subr.mxu0 0.0
  %2852 = vmatpush2.msra.mxu0 0.0
  %2853 = vmatprep.subr.mxu0 0.0
  %2854 = vmatpush2.msra.mxu0 0.0
  %2855 = vmatprep.subr.mxu0 0.0
  %2856 = vmatpush2.msra.mxu0 0.0
  %2857 = vmatprep.subr.mxu0 0.0
  %2858 = vmatpush2.msra.mxu0 0.0
  %2859 = vmatprep.subr.mxu0 0.0
  %2860 = vmatpush2.msra.mxu0 0.0
  %2861 = vmatprep.subr.mxu0 0.0
  %2862 = vmatpush2.msra.mxu0 0.0
  %2863 = vmatprep.subr.mxu0 0.0
  %2864 = vmatpush2.msra.mxu0 0.0
  %2865 = vmatprep.subr.mxu0 0.0
  %2866 = vmatpush2.msra.mxu0 0.0
  %2867 = vmatprep.subr.mxu0 0.0
  %2868 = vmatpush2.msra.mxu0 0.0
  %2869 = vmatprep.subr.mxu0 0.0
  %2870 = vmatpush2.msra.mxu0 0.0
  %2871 = vmatprep.mubr.f32.mxu0 0.0
  %2872 = vmatmul.mubr.f32.gmra.mxu0 %v2074
  %v2873 = vpop.f32.mrf.mxu0
  %v2874 = vadd.f32 0.0, %v2873
  %v2875 = vpop.f32.mrf.mxu0
  %2876 = vdwg.mxu0
  %v2877 = vadd.f32 %v2804, %v2874
  %v2878 = vadd.f32 %v2877, %v1065
  %v2879 = vxor.u32 %v2878, 2147483648
  %v2880 = vmul.f32 %v2879, 1.442695
  %v2881 = vpow.pop %v2880
  %v2882 = vadd.f32 %v2881, 1.0
  %v2883 = vrcp.pop %v2882
  %v2884 = vmul.f32 1.0, %v2883
  %v2885 = vtanh.pop %v2878
  %v2886 = vmul.f32 %v2884, %v1994
  %2888 = vrot.lane.b32.xlu0 %v2885, 64
  %v2889 = vpop.permute.xlu0 %2888
  %v2891 = vmul.f32 %v2884, %v2889
  %2893 = vrot.lane.b32.xlu0 %v2891, 32
  %v2894 = vpop.permute.xlu0 %2893
  %v2896 = vadd.f32 %v2886, %v2894
  %v2897 = vtanh.pop %v2896
  %2899 = vrot.lane.b32.xlu0 %v2897, 64
  %v2900 = vpop.permute.xlu0 %2899
  %v2902 = vmul.f32 %v2884, %v2900
  %2903 = vmatprep.subr.mxu0 0.0
  %2904 = vmatpush1.msra.mxu0 0.0
  %2905 = vmatprep.subr.mxu0 0.0
  %2906 = vmatpush1.msra.mxu0 0.0
  %2907 = vmatprep.subr.mxu0 0.0
  %2908 = vmatpush1.msra.mxu0 0.0
  %2909 = vmatprep.subr.mxu0 0.0
  %2910 = vmatpush1.msra.mxu0 0.0
  %2911 = vmatprep.subr.mxu0 0.0
  %2912 = vmatpush1.msra.mxu0 0.0
  %2913 = vmatprep.subr.mxu0 0.0
  %2914 = vmatpush1.msra.mxu0 0.0
  %2915 = vmatprep.subr.mxu0 0.0
  %2916 = vmatpush1.msra.mxu0 0.0
  %2917 = vmatprep.subr.mxu0 0.0
  %2918 = vmatpush1.msra.mxu0 0.0
  %2919 = vmatprep.subr.mxu0 0.0
  %2920 = vmatpush1.msra.mxu0 0.0
  %2921 = vmatprep.subr.mxu0 0.0
  %2922 = vmatpush1.msra.mxu0 0.0
  %2923 = vmatprep.subr.mxu0 0.0
  %2924 = vmatpush1.msra.mxu0 0.0
  %2925 = vmatprep.subr.mxu0 0.0
  %2926 = vmatpush1.msra.mxu0 0.0
  %2927 = vmatprep.subr.mxu0 0.0
  %2928 = vmatpush1.msra.mxu0 %v261
  %2929 = vmatprep.subr.mxu0 0.0
  %2930 = vmatpush1.msra.mxu0 %v260
  %2931 = vmatprep.subr.mxu0 0.0
  %2932 = vmatpush1.msra.mxu0 %v259
  %2933 = vmatprep.subr.mxu0 0.0
  %2934 = vmatpush1.msra.mxu0 %v258
  %2935 = vmatprep.subr.mxu0 0.0
  %2936 = vmatpush2.msra.mxu0 0.0
  %2937 = vmatprep.subr.mxu0 0.0
  %2938 = vmatpush2.msra.mxu0 0.0
  %2939 = vmatprep.subr.mxu0 0.0
  %2940 = vmatpush2.msra.mxu0 0.0
  %2941 = vmatprep.subr.mxu0 0.0
  %2942 = vmatpush2.msra.mxu0 0.0
  %2943 = vmatprep.subr.mxu0 0.0
  %2944 = vmatpush2.msra.mxu0 0.0
  %2945 = vmatprep.subr.mxu0 0.0
  %2946 = vmatpush2.msra.mxu0 0.0
  %2947 = vmatprep.subr.mxu0 0.0
  %2948 = vmatpush2.msra.mxu0 0.0
  %2949 = vmatprep.subr.mxu0 0.0
  %2950 = vmatpush2.msra.mxu0 0.0
  %2951 = vmatprep.subr.mxu0 0.0
  %2952 = vmatpush2.msra.mxu0 0.0
  %2953 = vmatprep.subr.mxu0 0.0
  %2954 = vmatpush2.msra.mxu0 0.0
  %2955 = vmatprep.subr.mxu0 0.0
  %2956 = vmatpush2.msra.mxu0 0.0
  %2957 = vmatprep.subr.mxu0 0.0
  %2958 = vmatpush2.msra.mxu0 0.0
  %2959 = vmatprep.subr.mxu0 0.0
  %2960 = vmatpush2.msra.mxu0 0.0
  %2961 = vmatprep.subr.mxu0 0.0
  %2962 = vmatpush2.msra.mxu0 0.0
  %2963 = vmatprep.subr.mxu0 0.0
  %2964 = vmatpush2.msra.mxu0 0.0
  %2965 = vmatprep.subr.mxu0 0.0
  %2966 = vmatpush2.msra.mxu0 0.0
  %2967 = vmatprep.mubr.f32.mxu0 0.0
  %2968 = vmatmul.mubr.f32.gmra.mxu0 %v2665
  %v2969 = vpop.f32.mrf.mxu0
  %v2970 = vadd.f32 0.0, %v2969
  %v2971 = vpop.f32.mrf.mxu0
  %2972 = vdwg.mxu0
  %2974 = vrot.lane.b32.xlu0 %v2902, 32
  %v2975 = vpop.permute.xlu0 %2974
  %v2976 = vsel %vm342, %v2975, 0
  %2978 = vmatprep.subr.mxu0 0.0
  %2979 = vmatpush1.msra.mxu0 0.0
  %2980 = vmatprep.subr.mxu0 0.0
  %2981 = vmatpush1.msra.mxu0 0.0
  %2982 = vmatprep.subr.mxu0 0.0
  %2983 = vmatpush1.msra.mxu0 0.0
  %2984 = vmatprep.subr.mxu0 0.0
  %2985 = vmatpush1.msra.mxu0 0.0
  %2986 = vmatprep.subr.mxu0 0.0
  %2987 = vmatpush1.msra.mxu0 0.0
  %2988 = vmatprep.subr.mxu0 0.0
  %2989 = vmatpush1.msra.mxu0 0.0
  %2990 = vmatprep.subr.mxu0 0.0
  %2991 = vmatpush1.msra.mxu0 0.0
  %2992 = vmatprep.subr.mxu0 0.0
  %2993 = vmatpush1.msra.mxu0 0.0
  %2994 = vmatprep.subr.mxu0 0.0
  %2995 = vmatpush1.msra.mxu0 0.0
  %2996 = vmatprep.subr.mxu0 0.0
  %2997 = vmatpush1.msra.mxu0 0.0
  %2998 = vmatprep.subr.mxu0 0.0
  %2999 = vmatpush1.msra.mxu0 0.0
  %3000 = vmatprep.subr.mxu0 0.0
  %3001 = vmatpush1.msra.mxu0 0.0
  %3002 = vmatprep.subr.mxu0 0.0
  %3003 = vmatpush1.msra.mxu0 %v257
  %3004 = vmatprep.subr.mxu0 0.0
  %3005 = vmatpush1.msra.mxu0 %v256
  %3006 = vmatprep.subr.mxu0 0.0
  %3007 = vmatpush1.msra.mxu0 %v255
  %3008 = vmatprep.subr.mxu0 0.0
  %3009 = vmatpush1.msra.mxu0 %v254
  %3010 = vmatprep.subr.mxu0 0.0
  %3011 = vmatpush2.msra.mxu0 0.0
  %3012 = vmatprep.subr.mxu0 0.0
  %3013 = vmatpush2.msra.mxu0 0.0
  %3014 = vmatprep.subr.mxu0 0.0
  %3015 = vmatpush2.msra.mxu0 0.0
  %3016 = vmatprep.subr.mxu0 0.0
  %3017 = vmatpush2.msra.mxu0 0.0
  %3018 = vmatprep.subr.mxu0 0.0
  %3019 = vmatpush2.msra.mxu0 0.0
  %3020 = vmatprep.subr.mxu0 0.0
  %3021 = vmatpush2.msra.mxu0 0.0
  %3022 = vmatprep.subr.mxu0 0.0
  %3023 = vmatpush2.msra.mxu0 0.0
  %3024 = vmatprep.subr.mxu0 0.0
  %3025 = vmatpush2.msra.mxu0 0.0
  %3026 = vmatprep.subr.mxu0 0.0
  %3027 = vmatpush2.msra.mxu0 0.0
  %3028 = vmatprep.subr.mxu0 0.0
  %3029 = vmatpush2.msra.mxu0 0.0
  %3030 = vmatprep.subr.mxu0 0.0
  %3031 = vmatpush2.msra.mxu0 0.0
  %3032 = vmatprep.subr.mxu0 0.0
  %3033 = vmatpush2.msra.mxu0 0.0
  %3034 = vmatprep.subr.mxu0 0.0
  %3035 = vmatpush2.msra.mxu0 0.0
  %3036 = vmatprep.subr.mxu0 0.0
  %3037 = vmatpush2.msra.mxu0 0.0
  %3038 = vmatprep.subr.mxu0 0.0
  %3039 = vmatpush2.msra.mxu0 0.0
  %3040 = vmatprep.subr.mxu0 0.0
  %3041 = vmatpush2.msra.mxu0 0.0
  %3042 = vmatprep.mubr.f32.mxu0 0.0
  %3043 = vmatmul.mubr.f32.gmra.mxu0 %v2976
  %v3044 = vpop.f32.mrf.mxu0
  %v3045 = vadd.f32 %v2970, %v3044
  %v3046 = vpop.f32.mrf.mxu0
  %3047 = vdwg.mxu0
  %v3048 = vadd.f32 %v3045, %v1241
  %3050 = vrot.lane.b32.xlu0 %v2630, 9
  %v3051 = vpop.permute.xlu0 %3050
  %v3053 = vsel %vm1248, %v3048, %v3051
  %3054 = vmatprep.subr.mxu0 0.0
  %3055 = vmatpush1.msra.mxu0 0.0
  %3056 = vmatprep.subr.mxu0 0.0
  %3057 = vmatpush1.msra.mxu0 0.0
  %3058 = vmatprep.subr.mxu0 0.0
  %3059 = vmatpush1.msra.mxu0 0.0
  %3060 = vmatprep.subr.mxu0 0.0
  %3061 = vmatpush1.msra.mxu0 0.0
  %3062 = vmatprep.subr.mxu0 0.0
  %3063 = vmatpush1.msra.mxu0 0.0
  %3064 = vmatprep.subr.mxu0 0.0
  %3065 = vmatpush1.msra.mxu0 0.0
  %3066 = vmatprep.subr.mxu0 0.0
  %3067 = vmatpush1.msra.mxu0 0.0
  %3068 = vmatprep.subr.mxu0 0.0
  %3069 = vmatpush1.msra.mxu0 0.0
  %3070 = vmatprep.subr.mxu0 0.0
  %3071 = vmatpush1.msra.mxu0 0.0
  %3072 = vmatprep.subr.mxu0 0.0
  %3073 = vmatpush1.msra.mxu0 0.0
  %3074 = vmatprep.subr.mxu0 0.0
  %3075 = vmatpush1.msra.mxu0 0.0
  %3076 = vmatprep.subr.mxu0 0.0
  %3077 = vmatpush1.msra.mxu0 0.0
  %3078 = vmatprep.subr.mxu0 0.0
  %3079 = vmatpush1.msra.mxu0 %v213
  %3080 = vmatprep.subr.mxu0 0.0
  %3081 = vmatpush1.msra.mxu0 %v212
  %3082 = vmatprep.subr.mxu0 0.0
  %3083 = vmatpush1.msra.mxu0 %v211
  %3084 = vmatprep.subr.mxu0 0.0
  %3085 = vmatpush1.msra.mxu0 %v210
  %3086 = vmatprep.subr.mxu0 0.0
  %3087 = vmatpush2.msra.mxu0 0.0
  %3088 = vmatprep.subr.mxu0 0.0
  %3089 = vmatpush2.msra.mxu0 0.0
  %3090 = vmatprep.subr.mxu0 0.0
  %3091 = vmatpush2.msra.mxu0 0.0
  %3092 = vmatprep.subr.mxu0 0.0
  %3093 = vmatpush2.msra.mxu0 0.0
  %3094 = vmatprep.subr.mxu0 0.0
  %3095 = vmatpush2.msra.mxu0 0.0
  %3096 = vmatprep.subr.mxu0 0.0
  %3097 = vmatpush2.msra.mxu0 0.0
  %3098 = vmatprep.subr.mxu0 0.0
  %3099 = vmatpush2.msra.mxu0 0.0
  %3100 = vmatprep.subr.mxu0 0.0
  %3101 = vmatpush2.msra.mxu0 0.0
  %3102 = vmatprep.subr.mxu0 0.0
  %3103 = vmatpush2.msra.mxu0 0.0
  %3104 = vmatprep.subr.mxu0 0.0
  %3105 = vmatpush2.msra.mxu0 0.0
  %3106 = vmatprep.subr.mxu0 0.0
  %3107 = vmatpush2.msra.mxu0 0.0
  %3108 = vmatprep.subr.mxu0 0.0
  %3109 = vmatpush2.msra.mxu0 0.0
  %3110 = vmatprep.subr.mxu0 0.0
  %3111 = vmatpush2.msra.mxu0 0.0
  %3112 = vmatprep.subr.mxu0 0.0
  %3113 = vmatpush2.msra.mxu0 0.0
  %3114 = vmatprep.subr.mxu0 0.0
  %3115 = vmatpush2.msra.mxu0 0.0
  %3116 = vmatprep.subr.mxu0 0.0
  %3117 = vmatpush2.msra.mxu0 0.0
  %3118 = vmatprep.mubr.f32.mxu0 0.0
  %3119 = vmatmul.mubr.f32.gmra.mxu0 %v2665
  %v3120 = vpop.f32.mrf.mxu0
  %v3121 = vadd.f32 0.0, %v3120
  %v3122 = vpop.f32.mrf.mxu0
  %3123 = vdwg.mxu0
  %v3125 = vrot.slane %v3121, 2
  %v3127 = vadd.f32 %v339, %v3125
  %3128 = vmatprep.subr.mxu0 0.0
  %3129 = vmatpush1.msra.mxu0 0.0
  %3130 = vmatprep.subr.mxu0 0.0
  %3131 = vmatpush1.msra.mxu0 0.0
  %3132 = vmatprep.subr.mxu0 0.0
  %3133 = vmatpush1.msra.mxu0 0.0
  %3134 = vmatprep.subr.mxu0 0.0
  %3135 = vmatpush1.msra.mxu0 0.0
  %3136 = vmatprep.subr.mxu0 0.0
  %3137 = vmatpush1.msra.mxu0 0.0
  %3138 = vmatprep.subr.mxu0 0.0
  %3139 = vmatpush1.msra.mxu0 0.0
  %3140 = vmatprep.subr.mxu0 0.0
  %3141 = vmatpush1.msra.mxu0 0.0
  %3142 = vmatprep.subr.mxu0 0.0
  %3143 = vmatpush1.msra.mxu0 0.0
  %3144 = vmatprep.subr.mxu0 0.0
  %3145 = vmatpush1.msra.mxu0 0.0
  %3146 = vmatprep.subr.mxu0 0.0
  %3147 = vmatpush1.msra.mxu0 0.0
  %3148 = vmatprep.subr.mxu0 0.0
  %3149 = vmatpush1.msra.mxu0 0.0
  %3150 = vmatprep.subr.mxu0 0.0
  %3151 = vmatpush1.msra.mxu0 0.0
  %3152 = vmatprep.subr.mxu0 0.0
  %3153 = vmatpush1.msra.mxu0 %v217
  %3154 = vmatprep.subr.mxu0 0.0
  %3155 = vmatpush1.msra.mxu0 %v216
  %3156 = vmatprep.subr.mxu0 0.0
  %3157 = vmatpush1.msra.mxu0 %v215
  %3158 = vmatprep.subr.mxu0 0.0
  %3159 = vmatpush1.msra.mxu0 %v214
  %3160 = vmatprep.subr.mxu0 0.0
  %3161 = vmatpush2.msra.mxu0 0.0
  %3162 = vmatprep.subr.mxu0 0.0
  %3163 = vmatpush2.msra.mxu0 0.0
  %3164 = vmatprep.subr.mxu0 0.0
  %3165 = vmatpush2.msra.mxu0 0.0
  %3166 = vmatprep.subr.mxu0 0.0
  %3167 = vmatpush2.msra.mxu0 0.0
  %3168 = vmatprep.subr.mxu0 0.0
  %3169 = vmatpush2.msra.mxu0 0.0
  %3170 = vmatprep.subr.mxu0 0.0
  %3171 = vmatpush2.msra.mxu0 0.0
  %3172 = vmatprep.subr.mxu0 0.0
  %3173 = vmatpush2.msra.mxu0 0.0
  %3174 = vmatprep.subr.mxu0 0.0
  %3175 = vmatpush2.msra.mxu0 0.0
  %3176 = vmatprep.subr.mxu0 0.0
  %3177 = vmatpush2.msra.mxu0 0.0
  %3178 = vmatprep.subr.mxu0 0.0
  %3179 = vmatpush2.msra.mxu0 0.0
  %3180 = vmatprep.subr.mxu0 0.0
  %3181 = vmatpush2.msra.mxu0 0.0
  %3182 = vmatprep.subr.mxu0 0.0
  %3183 = vmatpush2.msra.mxu0 0.0
  %3184 = vmatprep.subr.mxu0 0.0
  %3185 = vmatpush2.msra.mxu0 0.0
  %3186 = vmatprep.subr.mxu0 0.0
  %3187 = vmatpush2.msra.mxu0 0.0
  %3188 = vmatprep.subr.mxu0 0.0
  %3189 = vmatpush2.msra.mxu0 0.0
  %3190 = vmatprep.subr.mxu0 0.0
  %3191 = vmatpush2.msra.mxu0 0.0
  %3192 = vmatprep.mubr.f32.mxu0 0.0
  %3193 = vmatmul.mubr.f32.gmra.mxu0 %v2476
  %v3194 = vpop.f32.mrf.mxu0
  %v3195 = vadd.f32 0.0, %v3194
  %v3196 = vpop.f32.mrf.mxu0
  %3197 = vdwg.mxu0
  %v3199 = vrot.slane %v3195, 2
  %v3201 = vadd.f32 %v3127, %v3199
  %v3202 = vxor.u32 %v3201, 2147483648
  %v3203 = vmul.f32 %v3202, 1.442695
  %v3204 = vpow.pop %v3203
  %v3205 = vadd.f32 %v3204, 1.0
  %v3206 = vrcp.pop %v3205
  %v3207 = vmul.f32 1.0, %v3206
  %v3208 = vtanh.pop %v3201
  %v3210 = vrot.slane %v2320, 6
  %v3212 = vmul.f32 %v3207, %v3210
  %3214 = vrot.lane.b32.xlu0 %v3208, 64
  %v3215 = vpop.permute.xlu0 %3214
  %v3217 = vmul.f32 %v3207, %v3215
  %3219 = vrot.lane.b32.xlu0 %v3217, 32
  %v3220 = vpop.permute.xlu0 %3219
  %v3222 = vadd.f32 %v3212, %v3220
  %v3223 = vtanh.pop %v3222
  %3225 = vrot.lane.b32.xlu0 %v3223, 64
  %v3226 = vpop.permute.xlu0 %3225
  %v3228 = vmul.f32 %v3207, %v3226
  %v3230 = vsel %vm52, %v2661, 0
  %3232 = vmatprep.subr.mxu0 0.0
  %3233 = vmatpush1.msra.mxu0 0.0
  %3234 = vmatprep.subr.mxu0 0.0
  %3235 = vmatpush1.msra.mxu0 0.0
  %3236 = vmatprep.subr.mxu0 0.0
  %3237 = vmatpush1.msra.mxu0 0.0
  %3238 = vmatprep.subr.mxu0 0.0
  %3239 = vmatpush1.msra.mxu0 0.0
  %3240 = vmatprep.subr.mxu0 0.0
  %3241 = vmatpush1.msra.mxu0 0.0
  %3242 = vmatprep.subr.mxu0 0.0
  %3243 = vmatpush1.msra.mxu0 0.0
  %3244 = vmatprep.subr.mxu0 0.0
  %3245 = vmatpush1.msra.mxu0 0.0
  %3246 = vmatprep.subr.mxu0 0.0
  %3247 = vmatpush1.msra.mxu0 0.0
  %3248 = vmatprep.subr.mxu0 0.0
  %3249 = vmatpush1.msra.mxu0 0.0
  %3250 = vmatprep.subr.mxu0 0.0
  %3251 = vmatpush1.msra.mxu0 0.0
  %3252 = vmatprep.subr.mxu0 0.0
  %3253 = vmatpush1.msra.mxu0 0.0
  %3254 = vmatprep.subr.mxu0 0.0
  %3255 = vmatpush1.msra.mxu0 0.0
  %3256 = vmatprep.subr.mxu0 0.0
  %3257 = vmatpush1.msra.mxu0 0.0
  %3258 = vmatprep.subr.mxu0 0.0
  %3259 = vmatpush1.msra.mxu0 0.0
  %3260 = vmatprep.subr.mxu0 0.0
  %3261 = vmatpush1.msra.mxu0 0.0
  %3262 = vmatprep.subr.mxu0 0.0
  %3263 = vmatpush1.msra.mxu0 %v224
  %3264 = vmatprep.subr.mxu0 0.0
  %3265 = vmatpush2.msra.mxu0 0.0
  %3266 = vmatprep.subr.mxu0 0.0
  %3267 = vmatpush2.msra.mxu0 0.0
  %3268 = vmatprep.subr.mxu0 0.0
  %3269 = vmatpush2.msra.mxu0 0.0
  %3270 = vmatprep.subr.mxu0 0.0
  %3271 = vmatpush2.msra.mxu0 0.0
  %3272 = vmatprep.subr.mxu0 0.0
  %3273 = vmatpush2.msra.mxu0 0.0
  %3274 = vmatprep.subr.mxu0 0.0
  %3275 = vmatpush2.msra.mxu0 0.0
  %3276 = vmatprep.subr.mxu0 0.0
  %3277 = vmatpush2.msra.mxu0 0.0
  %3278 = vmatprep.subr.mxu0 0.0
  %3279 = vmatpush2.msra.mxu0 0.0
  %3280 = vmatprep.subr.mxu0 0.0
  %3281 = vmatpush2.msra.mxu0 0.0
  %3282 = vmatprep.subr.mxu0 0.0
  %3283 = vmatpush2.msra.mxu0 0.0
  %3284 = vmatprep.subr.mxu0 0.0
  %3285 = vmatpush2.msra.mxu0 0.0
  %3286 = vmatprep.subr.mxu0 0.0
  %3287 = vmatpush2.msra.mxu0 0.0
  %3288 = vmatprep.subr.mxu0 0.0
  %3289 = vmatpush2.msra.mxu0 0.0
  %3290 = vmatprep.subr.mxu0 0.0
  %3291 = vmatpush2.msra.mxu0 0.0
  %3292 = vmatprep.subr.mxu0 0.0
  %3293 = vmatpush2.msra.mxu0 0.0
  %3294 = vmatprep.subr.mxu0 0.0
  %3295 = vmatpush2.msra.mxu0 0.0
  %3296 = vmatprep.mubr.f32.mxu0 0.0
  %3297 = vmatmul.mubr.f32.gmra.mxu0 %v3230
  %v3298 = vpop.f32.mrf.mxu0
  %v3299 = vadd.f32 0.0, %v3298
  %v3300 = vpop.f32.mrf.mxu0
  %3301 = vdwg.mxu0
  %v3302 = vsel %vm52, %v2630, 0
  %3304 = vmatprep.subr.mxu0 0.0
  %3305 = vmatpush1.msra.mxu0 0.0
  %3306 = vmatprep.subr.mxu0 0.0
  %3307 = vmatpush1.msra.mxu0 0.0
  %3308 = vmatprep.subr.mxu0 0.0
  %3309 = vmatpush1.msra.mxu0 0.0
  %3310 = vmatprep.subr.mxu0 0.0
  %3311 = vmatpush1.msra.mxu0 0.0
  %3312 = vmatprep.subr.mxu0 0.0
  %3313 = vmatpush1.msra.mxu0 0.0
  %3314 = vmatprep.subr.mxu0 0.0
  %3315 = vmatpush1.msra.mxu0 0.0
  %3316 = vmatprep.subr.mxu0 0.0
  %3317 = vmatpush1.msra.mxu0 0.0
  %3318 = vmatprep.subr.mxu0 0.0
  %3319 = vmatpush1.msra.mxu0 0.0
  %3320 = vmatprep.subr.mxu0 0.0
  %3321 = vmatpush1.msra.mxu0 0.0
  %3322 = vmatprep.subr.mxu0 0.0
  %3323 = vmatpush1.msra.mxu0 0.0
  %3324 = vmatprep.subr.mxu0 0.0
  %3325 = vmatpush1.msra.mxu0 0.0
  %3326 = vmatprep.subr.mxu0 0.0
  %3327 = vmatpush1.msra.mxu0 0.0
  %3328 = vmatprep.subr.mxu0 0.0
  %3329 = vmatpush1.msra.mxu0 0.0
  %3330 = vmatprep.subr.mxu0 0.0
  %3331 = vmatpush1.msra.mxu0 0.0
  %3332 = vmatprep.subr.mxu0 0.0
  %3333 = vmatpush1.msra.mxu0 0.0
  %3334 = vmatprep.subr.mxu0 0.0
  %3335 = vmatpush1.msra.mxu0 %v223
  %3336 = vmatprep.subr.mxu0 0.0
  %3337 = vmatpush2.msra.mxu0 0.0
  %3338 = vmatprep.subr.mxu0 0.0
  %3339 = vmatpush2.msra.mxu0 0.0
  %3340 = vmatprep.subr.mxu0 0.0
  %3341 = vmatpush2.msra.mxu0 0.0
  %3342 = vmatprep.subr.mxu0 0.0
  %3343 = vmatpush2.msra.mxu0 0.0
  %3344 = vmatprep.subr.mxu0 0.0
  %3345 = vmatpush2.msra.mxu0 0.0
  %3346 = vmatprep.subr.mxu0 0.0
  %3347 = vmatpush2.msra.mxu0 0.0
  %3348 = vmatprep.subr.mxu0 0.0
  %3349 = vmatpush2.msra.mxu0 0.0
  %3350 = vmatprep.subr.mxu0 0.0
  %3351 = vmatpush2.msra.mxu0 0.0
  %3352 = vmatprep.subr.mxu0 0.0
  %3353 = vmatpush2.msra.mxu0 0.0
  %3354 = vmatprep.subr.mxu0 0.0
  %3355 = vmatpush2.msra.mxu0 0.0
  %3356 = vmatprep.subr.mxu0 0.0
  %3357 = vmatpush2.msra.mxu0 0.0
  %3358 = vmatprep.subr.mxu0 0.0
  %3359 = vmatpush2.msra.mxu0 0.0
  %3360 = vmatprep.subr.mxu0 0.0
  %3361 = vmatpush2.msra.mxu0 0.0
  %3362 = vmatprep.subr.mxu0 0.0
  %3363 = vmatpush2.msra.mxu0 0.0
  %3364 = vmatprep.subr.mxu0 0.0
  %3365 = vmatpush2.msra.mxu0 0.0
  %3366 = vmatprep.subr.mxu0 0.0
  %3367 = vmatpush2.msra.mxu0 0.0
  %3368 = vmatprep.mubr.f32.mxu0 0.0
  %3369 = vmatmul.mubr.f32.gmra.mxu0 %v3302
  %v3370 = vpop.f32.mrf.mxu0
  %v3371 = vadd.f32 %v3299, %v3370
  %v3372 = vpop.f32.mrf.mxu0
  %3373 = vdwg.mxu0
  %v3375 = vrot.slane %v3228, 6
  %3376 = vrot.lane.b32.xlu0 %v3375, 32
  %v3377 = vpop.permute.xlu0 %3376
  %v3378 = vsel %vm342, %v3377, 0
  %3380 = vmatprep.subr.mxu0 0.0
  %3381 = vmatpush1.msra.mxu0 0.0
  %3382 = vmatprep.subr.mxu0 0.0
  %3383 = vmatpush1.msra.mxu0 0.0
  %3384 = vmatprep.subr.mxu0 0.0
  %3385 = vmatpush1.msra.mxu0 0.0
  %3386 = vmatprep.subr.mxu0 0.0
  %3387 = vmatpush1.msra.mxu0 0.0
  %3388 = vmatprep.subr.mxu0 0.0
  %3389 = vmatpush1.msra.mxu0 0.0
  %3390 = vmatprep.subr.mxu0 0.0
  %3391 = vmatpush1.msra.mxu0 0.0
  %3392 = vmatprep.subr.mxu0 0.0
  %3393 = vmatpush1.msra.mxu0 0.0
  %3394 = vmatprep.subr.mxu0 0.0
  %3395 = vmatpush1.msra.mxu0 0.0
  %3396 = vmatprep.subr.mxu0 0.0
  %3397 = vmatpush1.msra.mxu0 0.0
  %3398 = vmatprep.subr.mxu0 0.0
  %3399 = vmatpush1.msra.mxu0 0.0
  %3400 = vmatprep.subr.mxu0 0.0
  %3401 = vmatpush1.msra.mxu0 0.0
  %3402 = vmatprep.subr.mxu0 0.0
  %3403 = vmatpush1.msra.mxu0 0.0
  %3404 = vmatprep.subr.mxu0 0.0
  %3405 = vmatpush1.msra.mxu0 %v222
  %3406 = vmatprep.subr.mxu0 0.0
  %3407 = vmatpush1.msra.mxu0 %v221
  %3408 = vmatprep.subr.mxu0 0.0
  %3409 = vmatpush1.msra.mxu0 %v220
  %3410 = vmatprep.subr.mxu0 0.0
  %3411 = vmatpush1.msra.mxu0 %v219
  %3412 = vmatprep.subr.mxu0 0.0
  %3413 = vmatpush2.msra.mxu0 0.0
  %3414 = vmatprep.subr.mxu0 0.0
  %3415 = vmatpush2.msra.mxu0 0.0
  %3416 = vmatprep.subr.mxu0 0.0
  %3417 = vmatpush2.msra.mxu0 0.0
  %3418 = vmatprep.subr.mxu0 0.0
  %3419 = vmatpush2.msra.mxu0 0.0
  %3420 = vmatprep.subr.mxu0 0.0
  %3421 = vmatpush2.msra.mxu0 0.0
  %3422 = vmatprep.subr.mxu0 0.0
  %3423 = vmatpush2.msra.mxu0 0.0
  %3424 = vmatprep.subr.mxu0 0.0
  %3425 = vmatpush2.msra.mxu0 0.0
  %3426 = vmatprep.subr.mxu0 0.0
  %3427 = vmatpush2.msra.mxu0 0.0
  %3428 = vmatprep.subr.mxu0 0.0
  %3429 = vmatpush2.msra.mxu0 0.0
  %3430 = vmatprep.subr.mxu0 0.0
  %3431 = vmatpush2.msra.mxu0 0.0
  %3432 = vmatprep.subr.mxu0 0.0
  %3433 = vmatpush2.msra.mxu0 0.0
  %3434 = vmatprep.subr.mxu0 0.0
  %3435 = vmatpush2.msra.mxu0 0.0
  %3436 = vmatprep.subr.mxu0 0.0
  %3437 = vmatpush2.msra.mxu0 0.0
  %3438 = vmatprep.subr.mxu0 0.0
  %3439 = vmatpush2.msra.mxu0 0.0
  %3440 = vmatprep.subr.mxu0 0.0
  %3441 = vmatpush2.msra.mxu0 0.0
  %3442 = vmatprep.subr.mxu0 0.0
  %3443 = vmatpush2.msra.mxu0 0.0
  %3444 = vmatprep.mubr.f32.mxu0 0.0
  %3445 = vmatmul.mubr.f32.gmra.mxu0 %v3378
  %v3446 = vpop.f32.mrf.mxu0
  %v3447 = vadd.f32 %v206, %v3446
  %v3448 = vpop.f32.mrf.mxu0
  %3449 = vdwg.mxu0
  %v3450 = vadd.f32 %v3447, %v3371
  %v3451 = vtanh.pop %v3450
  %3452 = vmatprep.subr.mxu0 0.0
  %3453 = vmatpush1.msra.mxu0 %v240
  %3454 = vmatprep.subr.mxu0 0.0
  %3455 = vmatpush1.msra.mxu0 %v239
  %3456 = vmatprep.subr.mxu0 0.0
  %3457 = vmatpush1.msra.mxu0 %v238
  %3458 = vmatprep.subr.mxu0 0.0
  %3459 = vmatpush1.msra.mxu0 %v237
  %3460 = vmatprep.subr.mxu0 0.0
  %3461 = vmatpush1.msra.mxu0 %v236
  %3462 = vmatprep.subr.mxu0 0.0
  %3463 = vmatpush1.msra.mxu0 %v235
  %3464 = vmatprep.subr.mxu0 0.0
  %3465 = vmatpush1.msra.mxu0 %v234
  %3466 = vmatprep.subr.mxu0 0.0
  %3467 = vmatpush1.msra.mxu0 %v233
  %3468 = vmatprep.subr.mxu0 0.0
  %3469 = vmatpush1.msra.mxu0 %v232
  %3470 = vmatprep.subr.mxu0 0.0
  %3471 = vmatpush1.msra.mxu0 %v231
  %3472 = vmatprep.subr.mxu0 0.0
  %3473 = vmatpush1.msra.mxu0 %v230
  %3474 = vmatprep.subr.mxu0 0.0
  %3475 = vmatpush1.msra.mxu0 %v229
  %3476 = vmatprep.subr.mxu0 0.0
  %3477 = vmatpush1.msra.mxu0 %v228
  %3478 = vmatprep.subr.mxu0 0.0
  %3479 = vmatpush1.msra.mxu0 %v227
  %3480 = vmatprep.subr.mxu0 0.0
  %3481 = vmatpush1.msra.mxu0 %v226
  %3482 = vmatprep.subr.mxu0 0.0
  %3483 = vmatpush1.msra.mxu0 %v225
  %3484 = vmatprep.subr.mxu0 0.0
  %3485 = vmatpush2.msra.mxu0 0.0
  %3486 = vmatprep.subr.mxu0 0.0
  %3487 = vmatpush2.msra.mxu0 0.0
  %3488 = vmatprep.subr.mxu0 0.0
  %3489 = vmatpush2.msra.mxu0 0.0
  %3490 = vmatprep.subr.mxu0 0.0
  %3491 = vmatpush2.msra.mxu0 0.0
  %3492 = vmatprep.subr.mxu0 0.0
  %3493 = vmatpush2.msra.mxu0 0.0
  %3494 = vmatprep.subr.mxu0 0.0
  %3495 = vmatpush2.msra.mxu0 0.0
  %3496 = vmatprep.subr.mxu0 0.0
  %3497 = vmatpush2.msra.mxu0 0.0
  %3498 = vmatprep.subr.mxu0 0.0
  %3499 = vmatpush2.msra.mxu0 0.0
  %3500 = vmatprep.subr.mxu0 0.0
  %3501 = vmatpush2.msra.mxu0 0.0
  %3502 = vmatprep.subr.mxu0 0.0
  %3503 = vmatpush2.msra.mxu0 0.0
  %3504 = vmatprep.subr.mxu0 0.0
  %3505 = vmatpush2.msra.mxu0 0.0
  %3506 = vmatprep.subr.mxu0 0.0
  %3507 = vmatpush2.msra.mxu0 0.0
  %3508 = vmatprep.subr.mxu0 0.0
  %3509 = vmatpush2.msra.mxu0 0.0
  %3510 = vmatprep.subr.mxu0 0.0
  %3511 = vmatpush2.msra.mxu0 0.0
  %3512 = vmatprep.subr.mxu0 0.0
  %3513 = vmatpush2.msra.mxu0 0.0
  %3514 = vmatprep.subr.mxu0 0.0
  %3515 = vmatpush2.msra.mxu0 0.0
  %3516 = vmatprep.mubr.f32.mxu0 0.0
  %3517 = vmatmul.mubr.f32.gmra.mxu0 %v3451
  %v3518 = vpop.f32.mrf.mxu0
  %v3519 = vadd.f32 %v207, %v3518
  %v3520 = vpop.f32.mrf.mxu0
  %3521 = vdwg.mxu0
  %v3522 = vsel %vm801, %v3519, -inf
  %3523 = vmax.xlane.f32.xlu0 %v3522
  %v3524 = vpop.xlane.xlu0 %3523
  %v3525 = vsub.f32 %v3519, %v3524
  %v3526 = vmul.f32 %v3525, 1.442695
  %v3527 = vpow.pop %v3526
  %v3528 = vsel %vm801, %v3527, 0.0
  %3529 = vadd.xlane.f32.xlu0 %v3528
  %v3530 = vpop.xlane.xlu0 %3529
  %v3531 = vrcp.pop %v3530
  %v3532 = vmul.f32 %v3527, %v3531
  %v3533 = vlaneseq
  %v3534 = vshrl.u32 %v3533, 7
  %v3535 = vsub.s32 0, %v3534
  %v3536 = vrot.slane %v3532, %v3535
  %3538 = vbcast.lane.b32.xlu0 %v3536, 256
  %v3539 = vpop.permute.xlu0 %3538
  %v3540 = vlaneseq
  %v3541 = vshrl.u32 %v3540, 7
  %v3542 = vsub.s32 1, %v3541
  %v3543 = vrot.slane %v3532, %v3542
  %3545 = vbcast.lane.b32.xlu0 %v3543, 256
  %v3546 = vpop.permute.xlu0 %3545
  %v3547 = vmul.f32 %v3539, %v204
  %v3548 = vmul.f32 %v3546, %v205
  %v3549 = vsel %vm342, %v3547, 0.0
  %v3550 = vrot.slane %v3549, 4
  %v3551 = vadd.f32 %v3549, %v3550
  %v3552 = vrot.slane %v3551, 2
  %v3553 = vadd.f32 %v3551, %v3552
  %v3554 = vrot.slane %v3553, 1
  %v3555 = vadd.f32 %v3553, %v3554
  %v3556 = vsel %vm342, %v3548, 0.0
  %v3557 = vrot.slane %v3556, 4
  %v3558 = vadd.f32 %v3556, %v3557
  %v3559 = vrot.slane %v3558, 2
  %v3560 = vadd.f32 %v3558, %v3559
  %v3561 = vrot.slane %v3560, 1
  %v3562 = vadd.f32 %v3560, %v3561
  %v3565 = vsel %vm846, %v3562, %v3555
  %v3566 = vsel %vm342, %v3565, 0
  %3568 = vmatprep.subr.mxu0 0.0
  %3569 = vmatpush1.msra.mxu0 0.0
  %3570 = vmatprep.subr.mxu0 0.0
  %3571 = vmatpush1.msra.mxu0 0.0
  %3572 = vmatprep.subr.mxu0 0.0
  %3573 = vmatpush1.msra.mxu0 0.0
  %3574 = vmatprep.subr.mxu0 0.0
  %3575 = vmatpush1.msra.mxu0 0.0
  %3576 = vmatprep.subr.mxu0 0.0
  %3577 = vmatpush1.msra.mxu0 0.0
  %3578 = vmatprep.subr.mxu0 0.0
  %3579 = vmatpush1.msra.mxu0 0.0
  %3580 = vmatprep.subr.mxu0 0.0
  %3581 = vmatpush1.msra.mxu0 0.0
  %3582 = vmatprep.subr.mxu0 0.0
  %3583 = vmatpush1.msra.mxu0 0.0
  %3584 = vmatprep.subr.mxu0 0.0
  %3585 = vmatpush1.msra.mxu0 0.0
  %3586 = vmatprep.subr.mxu0 0.0
  %3587 = vmatpush1.msra.mxu0 0.0
  %3588 = vmatprep.subr.mxu0 0.0
  %3589 = vmatpush1.msra.mxu0 0.0
  %3590 = vmatprep.subr.mxu0 0.0
  %3591 = vmatpush1.msra.mxu0 0.0
  %3592 = vmatprep.subr.mxu0 0.0
  %3593 = vmatpush1.msra.mxu0 %v248
  %3594 = vmatprep.subr.mxu0 0.0
  %3595 = vmatpush1.msra.mxu0 %v247
  %3596 = vmatprep.subr.mxu0 0.0
  %3597 = vmatpush1.msra.mxu0 %v246
  %3598 = vmatprep.subr.mxu0 0.0
  %3599 = vmatpush1.msra.mxu0 %v245
  %3600 = vmatprep.subr.mxu0 0.0
  %3601 = vmatpush2.msra.mxu0 0.0
  %3602 = vmatprep.subr.mxu0 0.0
  %3603 = vmatpush2.msra.mxu0 0.0
  %3604 = vmatprep.subr.mxu0 0.0
  %3605 = vmatpush2.msra.mxu0 0.0
  %3606 = vmatprep.subr.mxu0 0.0
  %3607 = vmatpush2.msra.mxu0 0.0
  %3608 = vmatprep.subr.mxu0 0.0
  %3609 = vmatpush2.msra.mxu0 0.0
  %3610 = vmatprep.subr.mxu0 0.0
  %3611 = vmatpush2.msra.mxu0 0.0
  %3612 = vmatprep.subr.mxu0 0.0
  %3613 = vmatpush2.msra.mxu0 0.0
  %3614 = vmatprep.subr.mxu0 0.0
  %3615 = vmatpush2.msra.mxu0 0.0
  %3616 = vmatprep.subr.mxu0 0.0
  %3617 = vmatpush2.msra.mxu0 0.0
  %3618 = vmatprep.subr.mxu0 0.0
  %3619 = vmatpush2.msra.mxu0 0.0
  %3620 = vmatprep.subr.mxu0 0.0
  %3621 = vmatpush2.msra.mxu0 0.0
  %3622 = vmatprep.subr.mxu0 0.0
  %3623 = vmatpush2.msra.mxu0 0.0
  %3624 = vmatprep.subr.mxu0 0.0
  %3625 = vmatpush2.msra.mxu0 0.0
  %3626 = vmatprep.subr.mxu0 0.0
  %3627 = vmatpush2.msra.mxu0 0.0
  %3628 = vmatprep.subr.mxu0 0.0
  %3629 = vmatpush2.msra.mxu0 0.0
  %3630 = vmatprep.subr.mxu0 0.0
  %3631 = vmatpush2.msra.mxu0 0.0
  %3632 = vmatprep.mubr.f32.mxu0 0.0
  %3633 = vmatmul.mubr.f32.gmra.mxu0 %v3566
  %v3634 = vpop.f32.mrf.mxu0
  %v3635 = vadd.f32 0.0, %v3634
  %v3636 = vpop.f32.mrf.mxu0
  %3637 = vdwg.mxu0
  %3638 = vmatprep.subr.mxu0 0.0
  %3639 = vmatpush1.msra.mxu0 0.0
  %3640 = vmatprep.subr.mxu0 0.0
  %3641 = vmatpush1.msra.mxu0 0.0
  %3642 = vmatprep.subr.mxu0 0.0
  %3643 = vmatpush1.msra.mxu0 0.0
  %3644 = vmatprep.subr.mxu0 0.0
  %3645 = vmatpush1.msra.mxu0 0.0
  %3646 = vmatprep.subr.mxu0 0.0
  %3647 = vmatpush1.msra.mxu0 0.0
  %3648 = vmatprep.subr.mxu0 0.0
  %3649 = vmatpush1.msra.mxu0 0.0
  %3650 = vmatprep.subr.mxu0 0.0
  %3651 = vmatpush1.msra.mxu0 0.0
  %3652 = vmatprep.subr.mxu0 0.0
  %3653 = vmatpush1.msra.mxu0 0.0
  %3654 = vmatprep.subr.mxu0 0.0
  %3655 = vmatpush1.msra.mxu0 0.0
  %3656 = vmatprep.subr.mxu0 0.0
  %3657 = vmatpush1.msra.mxu0 0.0
  %3658 = vmatprep.subr.mxu0 0.0
  %3659 = vmatpush1.msra.mxu0 0.0
  %3660 = vmatprep.subr.mxu0 0.0
  %3661 = vmatpush1.msra.mxu0 0.0
  %3662 = vmatprep.subr.mxu0 0.0
  %3663 = vmatpush1.msra.mxu0 %v244
  %3664 = vmatprep.subr.mxu0 0.0
  %3665 = vmatpush1.msra.mxu0 %v243
  %3666 = vmatprep.subr.mxu0 0.0
  %3667 = vmatpush1.msra.mxu0 %v242
  %3668 = vmatprep.subr.mxu0 0.0
  %3669 = vmatpush1.msra.mxu0 %v241
  %3670 = vmatprep.subr.mxu0 0.0
  %3671 = vmatpush2.msra.mxu0 0.0
  %3672 = vmatprep.subr.mxu0 0.0
  %3673 = vmatpush2.msra.mxu0 0.0
  %3674 = vmatprep.subr.mxu0 0.0
  %3675 = vmatpush2.msra.mxu0 0.0
  %3676 = vmatprep.subr.mxu0 0.0
  %3677 = vmatpush2.msra.mxu0 0.0
  %3678 = vmatprep.subr.mxu0 0.0
  %3679 = vmatpush2.msra.mxu0 0.0
  %3680 = vmatprep.subr.mxu0 0.0
  %3681 = vmatpush2.msra.mxu0 0.0
  %3682 = vmatprep.subr.mxu0 0.0
  %3683 = vmatpush2.msra.mxu0 0.0
  %3684 = vmatprep.subr.mxu0 0.0
  %3685 = vmatpush2.msra.mxu0 0.0
  %3686 = vmatprep.subr.mxu0 0.0
  %3687 = vmatpush2.msra.mxu0 0.0
  %3688 = vmatprep.subr.mxu0 0.0
  %3689 = vmatpush2.msra.mxu0 0.0
  %3690 = vmatprep.subr.mxu0 0.0
  %3691 = vmatpush2.msra.mxu0 0.0
  %3692 = vmatprep.subr.mxu0 0.0
  %3693 = vmatpush2.msra.mxu0 0.0
  %3694 = vmatprep.subr.mxu0 0.0
  %3695 = vmatpush2.msra.mxu0 0.0
  %3696 = vmatprep.subr.mxu0 0.0
  %3697 = vmatpush2.msra.mxu0 0.0
  %3698 = vmatprep.subr.mxu0 0.0
  %3699 = vmatpush2.msra.mxu0 0.0
  %3700 = vmatprep.subr.mxu0 0.0
  %3701 = vmatpush2.msra.mxu0 0.0
  %3702 = vmatprep.mubr.f32.mxu0 0.0
  %3703 = vmatmul.mubr.f32.gmra.mxu0 %v3378
  %v3704 = vpop.f32.mrf.mxu0
  %v3705 = vadd.f32 %v3635, %v3704
  %v3706 = vpop.f32.mrf.mxu0
  %3707 = vdwg.mxu0
  %3708 = vmatprep.subr.mxu0 0.0
  %3709 = vmatpush1.msra.mxu0 0.0
  %3710 = vmatprep.subr.mxu0 0.0
  %3711 = vmatpush1.msra.mxu0 0.0
  %3712 = vmatprep.subr.mxu0 0.0
  %3713 = vmatpush1.msra.mxu0 0.0
  %3714 = vmatprep.subr.mxu0 0.0
  %3715 = vmatpush1.msra.mxu0 0.0
  %3716 = vmatprep.subr.mxu0 0.0
  %3717 = vmatpush1.msra.mxu0 0.0
  %3718 = vmatprep.subr.mxu0 0.0
  %3719 = vmatpush1.msra.mxu0 0.0
  %3720 = vmatprep.subr.mxu0 0.0
  %3721 = vmatpush1.msra.mxu0 0.0
  %3722 = vmatprep.subr.mxu0 0.0
  %3723 = vmatpush1.msra.mxu0 0.0
  %3724 = vmatprep.subr.mxu0 0.0
  %3725 = vmatpush1.msra.mxu0 0.0
  %3726 = vmatprep.subr.mxu0 0.0
  %3727 = vmatpush1.msra.mxu0 0.0
  %3728 = vmatprep.subr.mxu0 0.0
  %3729 = vmatpush1.msra.mxu0 0.0
  %3730 = vmatprep.subr.mxu0 0.0
  %3731 = vmatpush1.msra.mxu0 0.0
  %3732 = vmatprep.subr.mxu0 0.0
  %3733 = vmatpush1.msra.mxu0 %v252
  %3734 = vmatprep.subr.mxu0 0.0
  %3735 = vmatpush1.msra.mxu0 %v251
  %3736 = vmatprep.subr.mxu0 0.0
  %3737 = vmatpush1.msra.mxu0 %v250
  %3738 = vmatprep.subr.mxu0 0.0
  %3739 = vmatpush1.msra.mxu0 %v249
  %3740 = vmatprep.subr.mxu0 0.0
  %3741 = vmatpush2.msra.mxu0 0.0
  %3742 = vmatprep.subr.mxu0 0.0
  %3743 = vmatpush2.msra.mxu0 0.0
  %3744 = vmatprep.subr.mxu0 0.0
  %3745 = vmatpush2.msra.mxu0 0.0
  %3746 = vmatprep.subr.mxu0 0.0
  %3747 = vmatpush2.msra.mxu0 0.0
  %3748 = vmatprep.subr.mxu0 0.0
  %3749 = vmatpush2.msra.mxu0 0.0
  %3750 = vmatprep.subr.mxu0 0.0
  %3751 = vmatpush2.msra.mxu0 0.0
  %3752 = vmatprep.subr.mxu0 0.0
  %3753 = vmatpush2.msra.mxu0 0.0
  %3754 = vmatprep.subr.mxu0 0.0
  %3755 = vmatpush2.msra.mxu0 0.0
  %3756 = vmatprep.subr.mxu0 0.0
  %3757 = vmatpush2.msra.mxu0 0.0
  %3758 = vmatprep.subr.mxu0 0.0
  %3759 = vmatpush2.msra.mxu0 0.0
  %3760 = vmatprep.subr.mxu0 0.0
  %3761 = vmatpush2.msra.mxu0 0.0
  %3762 = vmatprep.subr.mxu0 0.0
  %3763 = vmatpush2.msra.mxu0 0.0
  %3764 = vmatprep.subr.mxu0 0.0
  %3765 = vmatpush2.msra.mxu0 0.0
  %3766 = vmatprep.subr.mxu0 0.0
  %3767 = vmatpush2.msra.mxu0 0.0
  %3768 = vmatprep.subr.mxu0 0.0
  %3769 = vmatpush2.msra.mxu0 0.0
  %3770 = vmatprep.subr.mxu0 0.0
  %3771 = vmatpush2.msra.mxu0 0.0
  %3772 = vmatprep.mubr.f32.mxu0 0.0
  %3773 = vmatmul.mubr.f32.gmra.mxu0 %v2976
  %v3774 = vpop.f32.mrf.mxu0
  %v3775 = vadd.f32 0.0, %v3774
  %v3776 = vpop.f32.mrf.mxu0
  %3777 = vdwg.mxu0
  %v3778 = vadd.f32 %v3705, %v3775
  %v3779 = vadd.f32 %v3778, %v1065
  %v3780 = vxor.u32 %v3779, 2147483648
  %v3781 = vmul.f32 %v3780, 1.442695
  %v3782 = vpow.pop %v3781
  %v3783 = vadd.f32 %v3782, 1.0
  %v3784 = vrcp.pop %v3783
  %v3785 = vmul.f32 1.0, %v3784
  %v3786 = vtanh.pop %v3779
  %v3787 = vmul.f32 %v3785, %v2896
  %3789 = vrot.lane.b32.xlu0 %v3786, 64
  %v3790 = vpop.permute.xlu0 %3789
  %v3792 = vmul.f32 %v3785, %v3790
  %3794 = vrot.lane.b32.xlu0 %v3792, 32
  %v3795 = vpop.permute.xlu0 %3794
  %v3797 = vadd.f32 %v3787, %v3795
  %v3798 = vtanh.pop %v3797
  %3800 = vrot.lane.b32.xlu0 %v3798, 64
  %v3801 = vpop.permute.xlu0 %3800
  %v3803 = vmul.f32 %v3785, %v3801
  %3804 = vmatprep.subr.mxu0 0.0
  %3805 = vmatpush1.msra.mxu0 0.0
  %3806 = vmatprep.subr.mxu0 0.0
  %3807 = vmatpush1.msra.mxu0 0.0
  %3808 = vmatprep.subr.mxu0 0.0
  %3809 = vmatpush1.msra.mxu0 0.0
  %3810 = vmatprep.subr.mxu0 0.0
  %3811 = vmatpush1.msra.mxu0 0.0
  %3812 = vmatprep.subr.mxu0 0.0
  %3813 = vmatpush1.msra.mxu0 0.0
  %3814 = vmatprep.subr.mxu0 0.0
  %3815 = vmatpush1.msra.mxu0 0.0
  %3816 = vmatprep.subr.mxu0 0.0
  %3817 = vmatpush1.msra.mxu0 0.0
  %3818 = vmatprep.subr.mxu0 0.0
  %3819 = vmatpush1.msra.mxu0 0.0
  %3820 = vmatprep.subr.mxu0 0.0
  %3821 = vmatpush1.msra.mxu0 0.0
  %3822 = vmatprep.subr.mxu0 0.0
  %3823 = vmatpush1.msra.mxu0 0.0
  %3824 = vmatprep.subr.mxu0 0.0
  %3825 = vmatpush1.msra.mxu0 0.0
  %3826 = vmatprep.subr.mxu0 0.0
  %3827 = vmatpush1.msra.mxu0 0.0
  %3828 = vmatprep.subr.mxu0 0.0
  %3829 = vmatpush1.msra.mxu0 %v261
  %3830 = vmatprep.subr.mxu0 0.0
  %3831 = vmatpush1.msra.mxu0 %v260
  %3832 = vmatprep.subr.mxu0 0.0
  %3833 = vmatpush1.msra.mxu0 %v259
  %3834 = vmatprep.subr.mxu0 0.0
  %3835 = vmatpush1.msra.mxu0 %v258
  %3836 = vmatprep.subr.mxu0 0.0
  %3837 = vmatpush2.msra.mxu0 0.0
  %3838 = vmatprep.subr.mxu0 0.0
  %3839 = vmatpush2.msra.mxu0 0.0
  %3840 = vmatprep.subr.mxu0 0.0
  %3841 = vmatpush2.msra.mxu0 0.0
  %3842 = vmatprep.subr.mxu0 0.0
  %3843 = vmatpush2.msra.mxu0 0.0
  %3844 = vmatprep.subr.mxu0 0.0
  %3845 = vmatpush2.msra.mxu0 0.0
  %3846 = vmatprep.subr.mxu0 0.0
  %3847 = vmatpush2.msra.mxu0 0.0
  %3848 = vmatprep.subr.mxu0 0.0
  %3849 = vmatpush2.msra.mxu0 0.0
  %3850 = vmatprep.subr.mxu0 0.0
  %3851 = vmatpush2.msra.mxu0 0.0
  %3852 = vmatprep.subr.mxu0 0.0
  %3853 = vmatpush2.msra.mxu0 0.0
  %3854 = vmatprep.subr.mxu0 0.0
  %3855 = vmatpush2.msra.mxu0 0.0
  %3856 = vmatprep.subr.mxu0 0.0
  %3857 = vmatpush2.msra.mxu0 0.0
  %3858 = vmatprep.subr.mxu0 0.0
  %3859 = vmatpush2.msra.mxu0 0.0
  %3860 = vmatprep.subr.mxu0 0.0
  %3861 = vmatpush2.msra.mxu0 0.0
  %3862 = vmatprep.subr.mxu0 0.0
  %3863 = vmatpush2.msra.mxu0 0.0
  %3864 = vmatprep.subr.mxu0 0.0
  %3865 = vmatpush2.msra.mxu0 0.0
  %3866 = vmatprep.subr.mxu0 0.0
  %3867 = vmatpush2.msra.mxu0 0.0
  %3868 = vmatprep.mubr.f32.mxu0 0.0
  %3869 = vmatmul.mubr.f32.gmra.mxu0 %v3566
  %v3870 = vpop.f32.mrf.mxu0
  %v3871 = vadd.f32 0.0, %v3870
  %v3872 = vpop.f32.mrf.mxu0
  %3873 = vdwg.mxu0
  %3875 = vrot.lane.b32.xlu0 %v3803, 32
  %v3876 = vpop.permute.xlu0 %3875
  %v3877 = vsel %vm342, %v3876, 0
  %3879 = vmatprep.subr.mxu0 0.0
  %3880 = vmatpush1.msra.mxu0 0.0
  %3881 = vmatprep.subr.mxu0 0.0
  %3882 = vmatpush1.msra.mxu0 0.0
  %3883 = vmatprep.subr.mxu0 0.0
  %3884 = vmatpush1.msra.mxu0 0.0
  %3885 = vmatprep.subr.mxu0 0.0
  %3886 = vmatpush1.msra.mxu0 0.0
  %3887 = vmatprep.subr.mxu0 0.0
  %3888 = vmatpush1.msra.mxu0 0.0
  %3889 = vmatprep.subr.mxu0 0.0
  %3890 = vmatpush1.msra.mxu0 0.0
  %3891 = vmatprep.subr.mxu0 0.0
  %3892 = vmatpush1.msra.mxu0 0.0
  %3893 = vmatprep.subr.mxu0 0.0
  %3894 = vmatpush1.msra.mxu0 0.0
  %3895 = vmatprep.subr.mxu0 0.0
  %3896 = vmatpush1.msra.mxu0 0.0
  %3897 = vmatprep.subr.mxu0 0.0
  %3898 = vmatpush1.msra.mxu0 0.0
  %3899 = vmatprep.subr.mxu0 0.0
  %3900 = vmatpush1.msra.mxu0 0.0
  %3901 = vmatprep.subr.mxu0 0.0
  %3902 = vmatpush1.msra.mxu0 0.0
  %3903 = vmatprep.subr.mxu0 0.0
  %3904 = vmatpush1.msra.mxu0 %v257
  %3905 = vmatprep.subr.mxu0 0.0
  %3906 = vmatpush1.msra.mxu0 %v256
  %3907 = vmatprep.subr.mxu0 0.0
  %3908 = vmatpush1.msra.mxu0 %v255
  %3909 = vmatprep.subr.mxu0 0.0
  %3910 = vmatpush1.msra.mxu0 %v254
  %3911 = vmatprep.subr.mxu0 0.0
  %3912 = vmatpush2.msra.mxu0 0.0
  %3913 = vmatprep.subr.mxu0 0.0
  %3914 = vmatpush2.msra.mxu0 0.0
  %3915 = vmatprep.subr.mxu0 0.0
  %3916 = vmatpush2.msra.mxu0 0.0
  %3917 = vmatprep.subr.mxu0 0.0
  %3918 = vmatpush2.msra.mxu0 0.0
  %3919 = vmatprep.subr.mxu0 0.0
  %3920 = vmatpush2.msra.mxu0 0.0
  %3921 = vmatprep.subr.mxu0 0.0
  %3922 = vmatpush2.msra.mxu0 0.0
  %3923 = vmatprep.subr.mxu0 0.0
  %3924 = vmatpush2.msra.mxu0 0.0
  %3925 = vmatprep.subr.mxu0 0.0
  %3926 = vmatpush2.msra.mxu0 0.0
  %3927 = vmatprep.subr.mxu0 0.0
  %3928 = vmatpush2.msra.mxu0 0.0
  %3929 = vmatprep.subr.mxu0 0.0
  %3930 = vmatpush2.msra.mxu0 0.0
  %3931 = vmatprep.subr.mxu0 0.0
  %3932 = vmatpush2.msra.mxu0 0.0
  %3933 = vmatprep.subr.mxu0 0.0
  %3934 = vmatpush2.msra.mxu0 0.0
  %3935 = vmatprep.subr.mxu0 0.0
  %3936 = vmatpush2.msra.mxu0 0.0
  %3937 = vmatprep.subr.mxu0 0.0
  %3938 = vmatpush2.msra.mxu0 0.0
  %3939 = vmatprep.subr.mxu0 0.0
  %3940 = vmatpush2.msra.mxu0 0.0
  %3941 = vmatprep.subr.mxu0 0.0
  %3942 = vmatpush2.msra.mxu0 0.0
  %3943 = vmatprep.mubr.f32.mxu0 0.0
  %3944 = vmatmul.mubr.f32.gmra.mxu0 %v3877
  %v3945 = vpop.f32.mrf.mxu0
  %v3946 = vadd.f32 %v3871, %v3945
  %v3947 = vpop.f32.mrf.mxu0
  %3948 = vdwg.mxu0
  %v3949 = vadd.f32 %v3946, %v1241
  %3951 = vrot.lane.b32.xlu0 %v3532, 9
  %v3952 = vpop.permute.xlu0 %3951
  %v3954 = vsel %vm1248, %v3949, %v3952
  %v3956 = vrot.slane %v2151, 6
  %v3959 = vrot.slane %v3053, 4
  %v3962 = vrot.slane %v3954, 2
  %vm3964 = vcmask 1041408
  %v3965 = vsel %vm3964, %v1249, %v3956
  %vm3966 = vcmask 1043456
  %v3967 = vsel %vm3966, %v3965, %v3959
  %vm3968 = vcmask 1045504
  %v3969 = vsel %vm3968, %v3967, %v3962
  %vm3970 = vcmask 138240
  %3971 = vst.msk [vmem:[%s15] sm:$0xff] %vm3970, %v3969
  // Predicated region
  $region62: #{decoder_forward.1} parent=0 // pred_check
    _
  $region63: #{decoder_forward.1} parent=0 // pred_check_branch
    %3973 = sbr.rel (0) target = $region65
  $region64: #{decoder_forward.1} parent=0 // pred_region
    _
  $region65: #{decoder_forward.1} parent=0 // pred_fallthru
    _
  // Predicated region
  $region66: #{decoder_forward.1} parent=0 // pred_check
    _
  $region67: #{decoder_forward.1} parent=0 // pred_check_branch
    %3975 = sbr.rel (0) target = $region69
  $region68: #{decoder_forward.1} parent=0 // pred_region
    _
  $region69: #{decoder_forward.1} parent=0 // pred_fallthru
    _

</llo_original>
